<compile_context>
chip_gen: v7x
topology: tpu7x:2x2x1
jax: 0.10.0
libtpu: 0.0.40
codegen_flags: <defaults>
</compile_context>

<pallas_src>
import jax
import jax.numpy as jnp
from jax import lax
from jax.experimental import pallas as pl
from jax.experimental.pallas import tpu as pltpu

EPS = 1e-5
LANE = 128


def _round_up(x, m):
    return (x + m - 1) // m * m


def _tpu_vmem_capacity_bytes():
    try:
        return int(pltpu.get_tpu_info().vmem_capacity_bytes)
    except Exception:
        return 64 * 1024 * 1024  # conservative (v7x-sized) fallback


def _make_conv_stats_kernel(taps, TL, halo, Wp, Wo, L):
    """Implicit-GEMM conv over one L-tile + masked per-tile BN partial stats."""
    inv_wp = 1.0 / float(Wp)

    def kernel(x_ref, w_ref, conv_ref, stats_ref):
        # x_ref:     [1, X_LEN, Cin] bf16 — whole padded sample (resident over l)
        # w_ref:     [KH*KW, Cin, Cp] bf16 — resident across the grid
        # conv_ref:  [1, TL, Cp]  bf16 — conv tile (wrap-around junk rows included)
        # stats_ref: [1, 2, Cp]   f32  — (sum, sum_sq) over valid rows of this tile
        row0 = pl.multiple_of(pl.program_id(1) * TL, TL)

        # One aligned dynamic load of tile + halo rows; per-tap shifts are static.
        window = x_ref[0, pl.ds(row0, TL + halo), :]          # [TL+halo, Cin]

        acc = None                                            # f32 accumulator value
        for t, off in taps:
            lhs = window[off:off + TL, :]                     # [TL, Cin], static shift
            contrib = jnp.dot(lhs, w_ref[t],
                              preferred_element_type=jnp.float32)
            acc = contrib if acc is None else acc + contrib

        # Row-validity mask built in-kernel (no resident mask input).
        # col = row % Wp via exact float arithmetic (VPU only, no integer division);
        # the +0.5 keeps floor() robust to f32 rounding of the quotient.
        rows = row0 + lax.broadcasted_iota(jnp.int32, (TL, 1), 0)
        rows_f = rows.astype(jnp.float32)
        col = rows_f - jnp.floor((rows_f + 0.5) * inv_wp) * float(Wp)
        mask = ((col < Wo) & (rows < L)).astype(jnp.float32)  # [TL, 1]

        # Per-tile masked statistics, taken from the f32 accumulator (pre bf16 cast).
        masked = acc * mask
        stats_ref[0, 0:1, :] = jnp.sum(masked, axis=0, keepdims=True)
        stats_ref[0, 1:2, :] = jnp.sum(masked * acc, axis=0, keepdims=True)

        # Single bf16 store of the conv tile.
        conv_ref[0] = acc.astype(conv_ref.dtype)

    return kernel


def _bn_apply_kernel(conv_ref, scale_ref, shift_ref, o_ref):
    """Streaming FMA: y = conv * scale + shift (scale/shift folded on the host)."""
    y = conv_ref[0].astype(jnp.float32) * scale_ref[...] + shift_ref[...]
    o_ref[0] = y.astype(o_ref.dtype)


def conv2d_normed(x_nchw, weight, gamma, beta, *, stride=(1, 1), padding=(0, 0),
                  dilation=(1, 1), groups=1, tile_rows=None):
    """x_nchw: [N, Cin, H, W]; weight: [Cout, Cin, KH, KW]; gamma/beta: [Cout]."""
    assert stride == (1, 1) and dilation == (1, 1) and groups == 1

    N, Cin, H, W = x_nchw.shape
    Cout, Cin_w, KH, KW = weight.shape
    assert Cin_w == Cin
    ph, pw = padding
    Hp, Wp = H + 2 * ph, W + 2 * pw
    Ho, Wo = Hp - KH + 1, Wp - KW + 1
    assert Ho > 0 and Wo > 0
    M = N * Ho * Wo                             # number of real output pixels
    L = (Ho - 1) * Wp + Wo                      # flattened valid-row bound
    Cp = _round_up(Cout, LANE)                  # lane-dense padded channel count

    # ---- generation-aware tiling / VMEM budget ----
    vmem_cap = _tpu_vmem_capacity_bytes()
    if vmem_cap <= 64 * 1024 * 1024:            # v7x-class: 64 MiB per TensorCore
        tl_target, vmem_limit = 1024, 48 * 1024 * 1024
    else:                                       # v5e / v6e: 128 MiB
        tl_target, vmem_limit = 2048, min(vmem_cap * 3 // 4, 100 * 1024 * 1024)
    if tile_rows is not None:
        tl_target = tile_rows

    TL = _round_up(min(tl_target, _round_up(Ho * Wp, 32)), 32)
    Lp = _round_up(Ho * Wp, TL)                 # padded flattened row count (>= Ho*Wp)
    num_l = Lp // TL
    halo = (KH - 1) * Wp + (KW - 1)             # max tap offset
    X_LEN = Lp + halo                           # rows of padded, flattened input

    # ---- host-side layout plumbing (pad/reshape/transpose only, no im2col) ----
    x_nhwc = jnp.transpose(x_nchw, (0, 2, 3, 1))
    xp = jnp.pad(x_nhwc, ((0, 0), (ph, ph), (pw, pw), (0, 0)))
    x_flat = xp.reshape(N, Hp * Wp, Cin)
    x_flat = jnp.pad(x_flat, ((0, 0), (0, X_LEN - Hp * Wp), (0, 0))).astype(jnp.bfloat16)

    # weight [Cout, Cin, KH, KW] -> [KH*KW, Cin, Cp] (zero-padded channels), bf16
    w_taps = jnp.transpose(weight, (2, 3, 1, 0)).reshape(KH * KW, Cin, Cout)
    w_taps = jnp.pad(w_taps, ((0, 0), (0, 0), (0, Cp - Cout))).astype(jnp.bfloat16)

    taps = [(kh * KW + kw, kh * Wp + kw) for kh in range(KH) for kw in range(KW)]

    cparams = pltpu.CompilerParams(
        dimension_semantics=("parallel", "parallel"),   # both axes splittable (v7x 2-TC)
        vmem_limit_bytes=vmem_limit)

    # ---- pass 1: implicit-GEMM conv + per-(n,l)-tile BN partial stats ----
    conv_flat, stats_blocks = pl.pallas_call(
        _make_conv_stats_kernel(taps, TL, halo, Wp, Wo, L),
        grid=(N, num_l),
        in_specs=[
            pl.BlockSpec((1, X_LEN, Cin), lambda n, l: (n, 0, 0)),       # resident sample
            pl.BlockSpec((KH * KW, Cin, Cp), lambda n, l: (0, 0, 0)),    # resident weights
        ],
        out_specs=(
            pl.BlockSpec((1, TL, Cp), lambda n, l: (n, l, 0)),
            pl.BlockSpec((1, 2, Cp), lambda n, l: (n * num_l + l, 0, 0)),
        ),
        out_shape=(
            jax.ShapeDtypeStruct((N, Lp, Cp), jnp.bfloat16),
            jax.ShapeDtypeStruct((N * num_l, 2, Cp), jnp.float32),
        ),
        compiler_params=cparams,
        cost_estimate=pl.CostEstimate(
            flops=2 * N * Lp * Cin * Cp * KH * KW,
            transcendentals=0,
            bytes_accessed=(x_flat.size * 2 + w_taps.size * 2
                            + N * Lp * Cp * 2 + N * num_l * 2 * Cp * 4)),
    )(x_flat, w_taps)

    # ---- tiny cross-tile combine + folded BN affine (host side, Cp-sized) ----
    # TODO(synk): E[x^2]-mean^2 in f32 can cancel for very large counts/magnitudes;
    #             acceptable at these scales.
    stats = jnp.sum(stats_blocks, axis=0)                  # [2, Cp] f32
    mean = stats[0] / M
    var = jnp.maximum(stats[1] / M - mean * mean, 0.0)
    gamma_p = jnp.pad(gamma.astype(jnp.float32), (0, Cp - Cout))
    beta_p = jnp.pad(beta.astype(jnp.float32), (0, Cp - Cout))
    scale1 = gamma_p * lax.rsqrt(var + EPS)
    shift1 = beta_p - mean * scale1
    scale = scale1.reshape(1, Cp)
    shift = shift1.reshape(1, Cp)

    # ---- pass 2: streaming BN apply, in-place over the conv intermediate ----
    out2 = pl.pallas_call(
        _bn_apply_kernel,
        grid=(N, num_l),
        in_specs=[
            pl.BlockSpec((1, TL, Cp), lambda n, l: (n, l, 0)),
            pl.BlockSpec((1, Cp), lambda n, l: (0, 0)),
            pl.BlockSpec((1, Cp), lambda n, l: (0, 0)),
        ],
        out_specs=pl.BlockSpec((1, TL, Cp), lambda n, l: (n, l, 0)),
        out_shape=jax.ShapeDtypeStruct((N, Lp, Cp), jnp.bfloat16),
        input_output_aliases={0: 0},
        compiler_params=cparams,
    )(conv_flat, scale, shift)

    # ---- host-side epilogue on bf16: drop padded channels / wrap rows, to NCHW ----
    out_nlc = out2[:, :Ho * Wp, :Cout]
    out_nhwc = out_nlc.reshape(N, Ho, Wp, Cout)[:, :, :Wo, :]
    return jnp.transpose(out_nhwc, (0, 3, 1, 2)).astype(jnp.float32)


# ------------------------------ references ------------------------------------

def _reference(x, weight, gamma, beta, *, stride, padding):
    y = lax.conv_general_dilated(
        x, weight, window_strides=stride,
        padding=[(padding[0], padding[0]), (padding[1], padding[1])],
        dimension_numbers=("NCHW", "OIHW", "NCHW"),
        precision=lax.Precision.HIGHEST)
    mean = jnp.mean(y, axis=(0, 2, 3), keepdims=True)
    var = jnp.mean((y - mean) ** 2, axis=(0, 2, 3), keepdims=True)
    yn = (y - mean) * lax.rsqrt(var + EPS)
    return yn * gamma.reshape(1, -1, 1, 1) + beta.reshape(1, -1, 1, 1)


def _reference_matched(x, weight, gamma, beta, *, stride, padding):
    # Mirrors the kernel's numerics: bf16 operands, f32 conv accumulate, BN stats
    # from the f32 conv, bf16 conv intermediate, bf16 output.
    f32 = jnp.float32
    x_bf = x.astype(jnp.bfloat16).astype(f32)
    w_bf = weight.astype(jnp.bfloat16).astype(f32)
    y = lax.conv_general_dilated(
        x_bf, w_bf, window_strides=stride,
        padding=[(padding[0], padding[0]), (padding[1], padding[1])],
        dimension_numbers=("NCHW", "OIHW", "NCHW"),
        precision=lax.Precision.HIGHEST)
    mean = jnp.mean(y, axis=(0, 2, 3), keepdims=True)
    var = jnp.maximum(jnp.mean(y * y, axis=(0, 2, 3), keepdims=True) - mean * mean, 0.0)
    scale = gamma.reshape(1, -1, 1, 1) * lax.rsqrt(var + EPS)
    shift = beta.reshape(1, -1, 1, 1) - mean * scale
    y_q = y.astype(jnp.bfloat16).astype(f32)
    out = y_q * scale + shift
    return out.astype(jnp.bfloat16).astype(f32)


if __name__ == "__main__":
    key = jax.random.PRNGKey(0)
    kx, kw = jax.random.split(key)

    N, Cin, H, W = 2, 4, 16, 16
    Cout, KH, KW = 8, 3, 3
    stride, padding = (1, 1), (1, 1)

    x = jax.random.normal(kx, (N, Cin, H, W), dtype=jnp.float32)
    weight = jax.random.normal(kw, (Cout, Cin, KH, KW), dtype=jnp.float32) * 0.1
    gamma = jnp.ones((Cout,), dtype=jnp.float32)   # BatchNorm2d default affine init
    beta = jnp.zeros((Cout,), dtype=jnp.float32)

    out = conv2d_normed(x, weight, gamma, beta, stride=stride, padding=padding)
    out = jax.block_until_ready(out)
    assert out.shape == (N, Cout, H, W)

    # Check against a reference that mirrors the kernel's bf16 pipeline.
    ref_m = _reference_matched(x, weight, gamma, beta, stride=stride, padding=padding)
    assert jnp.allclose(out, ref_m, rtol=3e-2, atol=3e-2), \
        "mismatch vs bf16-pipeline-matched reference"

    # Loose sanity check against full-f32 module semantics.
    ref = _reference(x, weight, gamma, beta, stride=stride, padding=padding)
    assert jnp.allclose(out, ref, rtol=8e-2, atol=8e-2), "mismatch vs f32 reference"

    # Exercise the multi-tile (L-tiled) path with a small forced tile size.
    out_tiled = conv2d_normed(x, weight, gamma, beta, stride=stride, padding=padding,
                              tile_rows=64)
    out_tiled = jax.block_until_ready(out_tiled)
    assert out_tiled.shape == (N, Cout, H, W)
    assert jnp.allclose(out_tiled, out, rtol=2e-2, atol=2e-2), \
        "multi-tile path disagrees with single-tile path"

    print("KERNEL_OK")
</pallas_src>

<mosaic_0001>
module attributes {stable_mosaic.version = 11 : i64} {
  func.func @kernel(%arg0: i32, %arg1: i32, %arg2: memref<1x326x4xbf16, #tpu.memory_space<vmem>>, %arg3: memref<9x4x128xbf16, #tpu.memory_space<vmem>>, %arg4: memref<1x288x128xbf16, #tpu.memory_space<vmem>>, %arg5: memref<1x2x128xf32, #tpu.memory_space<vmem>>) attributes {dimension_semantics = [#tpu.dimension_semantics<parallel>, #tpu.dimension_semantics<parallel>], iteration_bounds = array<i64: 2, 1>, scalar_prefetch = 0 : i64, scratch_operands = 0 : i64, tpu.core_type = #tpu.core_type<tc>, window_params = [{transform_indices = @transform_0, window_bounds = array<i64: 1, 326, 4>}, {pipeline_mode = #tpu.pipeline_mode<synchronous>, transform_indices = @transform_1, window_bounds = array<i64: 9, 4, 128>}, {transform_indices = @transform_2, window_bounds = array<i64: 1, 288, 128>}, {transform_indices = @transform_3, window_bounds = array<i64: 1, 2, 128>}]} {
    %c288_i32 = arith.constant 288 : i32
    %0 = arith.muli %arg1, %c288_i32 : i32
    %1 = tpu.assume_multiple %0, 288 : i32
    %c0 = arith.constant 0 : index
    %2 = arith.index_cast %1 : i32 to index
    %c0_0 = arith.constant 0 : index
    %3 = vector.load %arg2[%c0, %2, %c0_0] : memref<1x326x4xbf16, #tpu.memory_space<vmem>>, vector<1x326x4xbf16>
    %4 = vector.shape_cast %3 : vector<1x326x4xbf16> to vector<326x4xbf16>
    %5 = vector.extract_strided_slice %4 {offsets = [0, 0], sizes = [288, 4], strides = [1, 1]} : vector<326x4xbf16> to vector<288x4xbf16>
    %c0_1 = arith.constant 0 : index
    %c0_2 = arith.constant 0 : index
    %c0_3 = arith.constant 0 : index
    %6 = vector.load %arg3[%c0_1, %c0_2, %c0_3] : memref<9x4x128xbf16, #tpu.memory_space<vmem>>, vector<1x4x128xbf16>
    %7 = vector.shape_cast %6 : vector<1x4x128xbf16> to vector<4x128xbf16>
    %cst = arith.constant dense<0.000000e+00> : vector<288x128xf32>
    %8 = tpu.matmul %5, %7, %cst {dimension_numbers = #tpu.dot_dimension_numbers<[1], [0], [0], [1], [0, 0, 1, 1], [], []>} : vector<288x4xbf16>, vector<4x128xbf16>, vector<288x128xf32> -> vector<288x128xf32>
    %9 = vector.extract_strided_slice %4 {offsets = [1, 0], sizes = [288, 4], strides = [1, 1]} : vector<326x4xbf16> to vector<288x4xbf16>
    %c1 = arith.constant 1 : index
    %c0_4 = arith.constant 0 : index
    %c0_5 = arith.constant 0 : index
    %10 = vector.load %arg3[%c1, %c0_4, %c0_5] : memref<9x4x128xbf16, #tpu.memory_space<vmem>>, vector<1x4x128xbf16>
    %11 = vector.shape_cast %10 : vector<1x4x128xbf16> to vector<4x128xbf16>
    %cst_6 = arith.constant dense<0.000000e+00> : vector<288x128xf32>
    %12 = tpu.matmul %9, %11, %cst_6 {dimension_numbers = #tpu.dot_dimension_numbers<[1], [0], [0], [1], [0, 0, 1, 1], [], []>} : vector<288x4xbf16>, vector<4x128xbf16>, vector<288x128xf32> -> vector<288x128xf32>
    %13 = arith.addf %8, %12 : vector<288x128xf32>
    %14 = vector.extract_strided_slice %4 {offsets = [2, 0], sizes = [288, 4], strides = [1, 1]} : vector<326x4xbf16> to vector<288x4xbf16>
    %c2 = arith.constant 2 : index
    %c0_7 = arith.constant 0 : index
    %c0_8 = arith.constant 0 : index
    %15 = vector.load %arg3[%c2, %c0_7, %c0_8] : memref<9x4x128xbf16, #tpu.memory_space<vmem>>, vector<1x4x128xbf16>
    %16 = vector.shape_cast %15 : vector<1x4x128xbf16> to vector<4x128xbf16>
    %cst_9 = arith.constant dense<0.000000e+00> : vector<288x128xf32>
    %17 = tpu.matmul %14, %16, %cst_9 {dimension_numbers = #tpu.dot_dimension_numbers<[1], [0], [0], [1], [0, 0, 1, 1], [], []>} : vector<288x4xbf16>, vector<4x128xbf16>, vector<288x128xf32> -> vector<288x128xf32>
    %18 = arith.addf %13, %17 : vector<288x128xf32>
    %19 = vector.extract_strided_slice %4 {offsets = [18, 0], sizes = [288, 4], strides = [1, 1]} : vector<326x4xbf16> to vector<288x4xbf16>
    %c3 = arith.constant 3 : index
    %c0_10 = arith.constant 0 : index
    %c0_11 = arith.constant 0 : index
    %20 = vector.load %arg3[%c3, %c0_10, %c0_11] : memref<9x4x128xbf16, #tpu.memory_space<vmem>>, vector<1x4x128xbf16>
    %21 = vector.shape_cast %20 : vector<1x4x128xbf16> to vector<4x128xbf16>
    %cst_12 = arith.constant dense<0.000000e+00> : vector<288x128xf32>
    %22 = tpu.matmul %19, %21, %cst_12 {dimension_numbers = #tpu.dot_dimension_numbers<[1], [0], [0], [1], [0, 0, 1, 1], [], []>} : vector<288x4xbf16>, vector<4x128xbf16>, vector<288x128xf32> -> vector<288x128xf32>
    %23 = arith.addf %18, %22 : vector<288x128xf32>
    %24 = vector.extract_strided_slice %4 {offsets = [19, 0], sizes = [288, 4], strides = [1, 1]} : vector<326x4xbf16> to vector<288x4xbf16>
    %c4 = arith.constant 4 : index
    %c0_13 = arith.constant 0 : index
    %c0_14 = arith.constant 0 : index
    %25 = vector.load %arg3[%c4, %c0_13, %c0_14] : memref<9x4x128xbf16, #tpu.memory_space<vmem>>, vector<1x4x128xbf16>
    %26 = vector.shape_cast %25 : vector<1x4x128xbf16> to vector<4x128xbf16>
    %cst_15 = arith.constant dense<0.000000e+00> : vector<288x128xf32>
    %27 = tpu.matmul %24, %26, %cst_15 {dimension_numbers = #tpu.dot_dimension_numbers<[1], [0], [0], [1], [0, 0, 1, 1], [], []>} : vector<288x4xbf16>, vector<4x128xbf16>, vector<288x128xf32> -> vector<288x128xf32>
    %28 = arith.addf %23, %27 : vector<288x128xf32>
    %29 = vector.extract_strided_slice %4 {offsets = [20, 0], sizes = [288, 4], strides = [1, 1]} : vector<326x4xbf16> to vector<288x4xbf16>
    %c5 = arith.constant 5 : index
    %c0_16 = arith.constant 0 : index
    %c0_17 = arith.constant 0 : index
    %30 = vector.load %arg3[%c5, %c0_16, %c0_17] : memref<9x4x128xbf16, #tpu.memory_space<vmem>>, vector<1x4x128xbf16>
    %31 = vector.shape_cast %30 : vector<1x4x128xbf16> to vector<4x128xbf16>
    %cst_18 = arith.constant dense<0.000000e+00> : vector<288x128xf32>
    %32 = tpu.matmul %29, %31, %cst_18 {dimension_numbers = #tpu.dot_dimension_numbers<[1], [0], [0], [1], [0, 0, 1, 1], [], []>} : vector<288x4xbf16>, vector<4x128xbf16>, vector<288x128xf32> -> vector<288x128xf32>
    %33 = arith.addf %28, %32 : vector<288x128xf32>
    %34 = vector.extract_strided_slice %4 {offsets = [36, 0], sizes = [288, 4], strides = [1, 1]} : vector<326x4xbf16> to vector<288x4xbf16>
    %c6 = arith.constant 6 : index
    %c0_19 = arith.constant 0 : index
    %c0_20 = arith.constant 0 : index
    %35 = vector.load %arg3[%c6, %c0_19, %c0_20] : memref<9x4x128xbf16, #tpu.memory_space<vmem>>, vector<1x4x128xbf16>
    %36 = vector.shape_cast %35 : vector<1x4x128xbf16> to vector<4x128xbf16>
    %cst_21 = arith.constant dense<0.000000e+00> : vector<288x128xf32>
    %37 = tpu.matmul %34, %36, %cst_21 {dimension_numbers = #tpu.dot_dimension_numbers<[1], [0], [0], [1], [0, 0, 1, 1], [], []>} : vector<288x4xbf16>, vector<4x128xbf16>, vector<288x128xf32> -> vector<288x128xf32>
    %38 = arith.addf %33, %37 : vector<288x128xf32>
    %39 = vector.extract_strided_slice %4 {offsets = [37, 0], sizes = [288, 4], strides = [1, 1]} : vector<326x4xbf16> to vector<288x4xbf16>
    %c7 = arith.constant 7 : index
    %c0_22 = arith.constant 0 : index
    %c0_23 = arith.constant 0 : index
    %40 = vector.load %arg3[%c7, %c0_22, %c0_23] : memref<9x4x128xbf16, #tpu.memory_space<vmem>>, vector<1x4x128xbf16>
    %41 = vector.shape_cast %40 : vector<1x4x128xbf16> to vector<4x128xbf16>
    %cst_24 = arith.constant dense<0.000000e+00> : vector<288x128xf32>
    %42 = tpu.matmul %39, %41, %cst_24 {dimension_numbers = #tpu.dot_dimension_numbers<[1], [0], [0], [1], [0, 0, 1, 1], [], []>} : vector<288x4xbf16>, vector<4x128xbf16>, vector<288x128xf32> -> vector<288x128xf32>
    %43 = arith.addf %38, %42 : vector<288x128xf32>
    %44 = vector.extract_strided_slice %4 {offsets = [38, 0], sizes = [288, 4], strides = [1, 1]} : vector<326x4xbf16> to vector<288x4xbf16>
    %c8 = arith.constant 8 : index
    %c0_25 = arith.constant 0 : index
    %c0_26 = arith.constant 0 : index
    %45 = vector.load %arg3[%c8, %c0_25, %c0_26] : memref<9x4x128xbf16, #tpu.memory_space<vmem>>, vector<1x4x128xbf16>
    %46 = vector.shape_cast %45 : vector<1x4x128xbf16> to vector<4x128xbf16>
    %cst_27 = arith.constant dense<0.000000e+00> : vector<288x128xf32>
    %47 = tpu.matmul %44, %46, %cst_27 {dimension_numbers = #tpu.dot_dimension_numbers<[1], [0], [0], [1], [0, 0, 1, 1], [], []>} : vector<288x4xbf16>, vector<4x128xbf16>, vector<288x128xf32> -> vector<288x128xf32>
    %48 = arith.addf %43, %47 : vector<288x128xf32>
    %49 = tpu.iota {dimensions = array<i32: 0>} : vector<288x1xi32>
    %50 = vector.broadcast %1 : i32 to vector<288x1xi32>
    %51 = arith.addi %50, %49 : vector<288x1xi32>
    %52 = arith.sitofp %51 : vector<288x1xi32> to vector<288x1xf32>
    %cst_28 = arith.constant 5.000000e-01 : f32
    %53 = vector.broadcast %cst_28 : f32 to vector<288x1xf32>
    %54 = arith.addf %52, %53 : vector<288x1xf32>
    %cst_29 = arith.constant 0.055555556 : f32
    %55 = vector.broadcast %cst_29 : f32 to vector<288x1xf32>
    %56 = arith.mulf %54, %55 : vector<288x1xf32>
    %57 = math.floor %56 : vector<288x1xf32>
    %cst_30 = arith.constant 1.800000e+01 : f32
    %58 = vector.broadcast %cst_30 : f32 to vector<288x1xf32>
    %59 = arith.mulf %57, %58 : vector<288x1xf32>
    %60 = arith.subf %52, %59 : vector<288x1xf32>
    %cst_31 = arith.constant 1.600000e+01 : f32
    %61 = vector.broadcast %cst_31 : f32 to vector<288x1xf32>
    %62 = arith.cmpf olt, %60, %61 : vector<288x1xf32>
    %c286_i32 = arith.constant 286 : i32
    %63 = vector.broadcast %c286_i32 : i32 to vector<288x1xi32>
    %64 = arith.cmpi slt, %51, %63 : vector<288x1xi32>
    %65 = arith.andi %62, %64 : vector<288x1xi1>
    %66 = arith.extui %65 : vector<288x1xi1> to vector<288x1xi32>
    %67 = arith.sitofp %66 : vector<288x1xi32> to vector<288x1xf32>
    %68 = vector.broadcast %67 : vector<288x1xf32> to vector<288x128xf32>
    %69 = arith.mulf %48, %68 : vector<288x128xf32>
    %cst_32 = arith.constant dense<0.000000e+00> : vector<128xf32>
    %70 = vector.multi_reduction <add>, %69, %cst_32 [0] : vector<288x128xf32> to vector<128xf32>
    %71 = vector.shape_cast %70 : vector<128xf32> to vector<1x128xf32>
    %c0_33 = arith.constant 0 : index
    %c0_34 = arith.constant 0 : index
    %c0_35 = arith.constant 0 : index
    %72 = vector.load %arg5[%c0_33, %c0_34, %c0_35] : memref<1x2x128xf32, #tpu.memory_space<vmem>>, vector<1x1x128xf32>
    %73 = vector.shape_cast %72 : vector<1x1x128xf32> to vector<1x128xf32>
    %74 = vector.shape_cast %71 : vector<1x128xf32> to vector<1x1x128xf32>
    tpu.vector_store %arg5[%c0_33, %c0_34, %c0_35], %74 {strides = array<i32>} : memref<1x2x128xf32, #tpu.memory_space<vmem>>, vector<1x1x128xf32>,
    %75 = arith.mulf %69, %48 : vector<288x128xf32>
    %cst_36 = arith.constant dense<0.000000e+00> : vector<128xf32>
    %76 = vector.multi_reduction <add>, %75, %cst_36 [0] : vector<288x128xf32> to vector<128xf32>
    %77 = vector.shape_cast %76 : vector<128xf32> to vector<1x128xf32>
    %c0_37 = arith.constant 0 : index
    %c1_38 = arith.constant 1 : index
    %c0_39 = arith.constant 0 : index
    %78 = vector.load %arg5[%c0_37, %c1_38, %c0_39] : memref<1x2x128xf32, #tpu.memory_space<vmem>>, vector<1x1x128xf32>
    %79 = vector.shape_cast %78 : vector<1x1x128xf32> to vector<1x128xf32>
    %80 = vector.shape_cast %77 : vector<1x128xf32> to vector<1x1x128xf32>
    tpu.vector_store %arg5[%c0_37, %c1_38, %c0_39], %80 {strides = array<i32>} : memref<1x2x128xf32, #tpu.memory_space<vmem>>, vector<1x1x128xf32>,
    %81 = arith.truncf %48 : vector<288x128xf32> to vector<288x128xbf16>
    %c0_40 = arith.constant 0 : index
    %c0_41 = arith.constant 0 : index
    %c0_42 = arith.constant 0 : index
    %82 = vector.load %arg4[%c0_40, %c0_41, %c0_42] : memref<1x288x128xbf16, #tpu.memory_space<vmem>>, vector<1x288x128xbf16>
    %83 = vector.shape_cast %82 : vector<1x288x128xbf16> to vector<288x128xbf16>
    %84 = vector.shape_cast %81 : vector<288x128xbf16> to vector<1x288x128xbf16>
    tpu.vector_store %arg4[%c0_40, %c0_41, %c0_42], %84 {strides = array<i32>} : memref<1x288x128xbf16, #tpu.memory_space<vmem>>, vector<1x288x128xbf16>,
    return
  }
  func.func @transform_0(%arg0: i32, %arg1: i32) -> (i32, i32, i32) {
    %c0_i32 = arith.constant 0 : i32
    %c0_i32_0 = arith.constant 0 : i32
    %c0_i32_1 = arith.constant 0 : i32
    return %arg0, %c0_i32, %c0_i32_0 : i32, i32, i32
  }
  func.func @transform_1(%arg0: i32, %arg1: i32) -> (i32, i32, i32) {
    %c0_i32 = arith.constant 0 : i32
    %c0_i32_0 = arith.constant 0 : i32
    %c0_i32_1 = arith.constant 0 : i32
    %c0_i32_2 = arith.constant 0 : i32
    return %c0_i32, %c0_i32_0, %c0_i32_1 : i32, i32, i32
  }
  func.func @transform_2(%arg0: i32, %arg1: i32) -> (i32, i32, i32) {
    %c0_i32 = arith.constant 0 : i32
    %c0_i32_0 = arith.constant 0 : i32
    return %arg0, %arg1, %c0_i32 : i32, i32, i32
  }
  func.func @transform_3(%arg0: i32, %arg1: i32) -> (i32, i32, i32) {
    %c1_i32 = arith.constant 1 : i32
    %0 = arith.muli %arg0, %c1_i32 : i32
    %1 = arith.addi %0, %arg1 : i32
    %c0_i32 = arith.constant 0 : i32
    %c0_i32_0 = arith.constant 0 : i32
    %c0_i32_1 = arith.constant 0 : i32
    return %1, %c0_i32, %c0_i32_0 : i32, i32, i32
  }
}

</mosaic_0001>

<llo_original>
// kernel: tpu_custom_call.1
$region0: #{tpu_custom_call.1}
  #allocation0 [shape = 'u32[]', space=smem, size = 0x4, offset = 0x4, fixed_abs, tag = 'smem constant byte address 0x4 - core index']
  #allocation1 [shape = 'u32[144,128]{1,0:T(1,128)}', space=vmem, size = 0x12000, scoped, tag = 'internal scratch']
  %s0 = inlined_call_operand.vmem [shape: bf16[2,326,4], index: 0, kind: input, shape index: {}]
  %s1 = inlined_call_operand.vmem [shape: bf16[9,4,128], index: 1, kind: input, shape index: {}]
  %s2 = inlined_call_operand.hbm [shape: bf16[2,288,128], index: 2, kind: output, shape index: {0}]
  %s3 = inlined_call_operand.hbm [shape: f32[2,2,128], index: 3, kind: output, shape index: {1}]
  %4 = xla_tuple %s2, %s3
  %s5 = sld [smem:[#allocation0]]
  $region49: #{tpu_custom_call.1} parent=0
    _
  %s7 = ssub.s32 1, %s5
  %s8 = scalar_select 0, %s7, %s5
  $region1: #{tpu_custom_call.1} parent=0
    #allocation2 [shape = 'u8[147456]{0}', space=vmem, size = 0x24000, scoped, tag = 'output window, operand 0']
    #allocation3 [shape = 's32[2]{0}', space=sflag, size = 0x8, scoped, tag = 'scoped memory for tpu_custom_call.1']
    #allocation4 [shape = 'u8[2048]{0}', space=vmem, size = 0x800, scoped, tag = 'output window, operand 1']
    #allocation5 [shape = 's32[2]{0}', space=sflag, size = 0x8, scoped, tag = 'scoped memory for tpu_custom_call.1']
    %9 = vsyncpa [#allocation3], 0
    %s10 = scalar_lea.sflag [#allocation3], 1
    %11 = vsyncpa %s10, 0
    %12 = vsyncpa [#allocation5], 0
    %s13 = scalar_lea.sflag [#allocation5], 1
    %14 = vsyncpa %s13, 0
    loop: start=0, step=1, limit=4
    $region2: #{tpu_custom_call.1} parent=1 // loop_pre_header
      _
    $region3: #{tpu_custom_call.1} parent=1 // loop_header
      %s16 = sphi 0, %s20
      %p17 = scmp.ge.s32.totalorder %s16, 4
      %s23 = sphi 0, %s35
      %s24 = sphi 0, %s31
      %s25 = sphi 0, %s23
      %s26 = sphi 0, %s24
      %s27 = sphi 0, %s25
      %s28 = sphi 0, %s26
      %s38 = sphi 0, %s40
      %s41 = sphi 0, %s38
      %s42 = sphi 0, %s41
      %s58 = sphi 0, %s42
      %s62 = sphi 0, %s62
      %s64 = sphi 0, %s62
      %s65 = sphi 0, %s64
      %s79 = sphi 0, %s65
      %s87 = sphi 0, %s89
      %s90 = sphi 0, %s87
      %s91 = sphi 0, %s90
      %s107 = sphi 0, %s91
      %s115 = sphi 0, %s117
      %s118 = sphi 0, %s115
      %s119 = sphi 0, %s118
      %s135 = sphi 0, %s119
    $region4: #{tpu_custom_call.1} parent=1 // loop_header_branch
      %19 = sbr.rel (%p17) target = $region8
    $region5: #{tpu_custom_call.1} parent=1 // loop_body
      %s21 = ssub.s32 %s16, 1
      %s22 = ssub.s32 %s16, 2
      %s29 = sadd.s32 1, %s24
      %p30 = scmp.ge.s32.totalorder %s29, 1
      %s31 = scalar_select %p30, 0, %s29
      %s32 = sadd.s32 1, %s23
      %s33 = scalar_select %p30, %s32, %s23
      %p34 = scmp.ge.s32.totalorder %s33, 2
      %s35 = scalar_select %p34, 0, %s33
      %s36 = ssub.s32 %s23, %s35
      %p37 = scmp.eq.s32.totalorder %s36, 0
      %s39 = sadd.s32 %s38, 1
      %s40 = scalar_select %p37, %s38, %s39
      %p43 = pneg %p37
      %p44 = scmp.eq.s32.totalorder %s16, 1
      %p45 = por %p43, %p44
      %p46 = scmp.ne.s32.totalorder %s38, %s41
      %p47 = scmp.eq.s32.totalorder %s16, 0
      %p48 = por %p46, %p47
      %p49 = scmp.ne.s32.totalorder %s38, %s41
      %p50 = scmp.eq.s32.totalorder %s21, 1
      %p51 = por %p49, %p50
      %p52 = scmp.ne.s32.totalorder %s41, %s42
      %p53 = scmp.eq.s32.totalorder %s21, 0
      %p54 = por %p52, %p53
      %p55 = scmp.ne.s32.totalorder %s41, %s42
      %p56 = scmp.eq.s32.totalorder %s22, 1
      %p57 = por %p55, %p56
      %p59 = scmp.ne.s32.totalorder %s42, %s58
      %p60 = scmp.eq.s32.totalorder %s22, 0
      %p61 = por %p59, %p60
      %s63 = sadd.s32 %s62, 1
      %p66 = scmp.eq.s32.totalorder %s16, 1
      %p67 = scmp.ne.s32.totalorder %s62, %s64
      %p68 = scmp.eq.s32.totalorder %s16, 0
      %p69 = por %p67, %p68
      %p70 = scmp.ne.s32.totalorder %s62, %s64
      %p71 = scmp.eq.s32.totalorder %s21, 1
      %p72 = por %p70, %p71
      %p73 = scmp.ne.s32.totalorder %s64, %s65
      %p74 = scmp.eq.s32.totalorder %s21, 0
      %p75 = por %p73, %p74
      %p76 = scmp.ne.s32.totalorder %s64, %s65
      %p77 = scmp.eq.s32.totalorder %s22, 1
      %p78 = por %p76, %p77
      %p80 = scmp.ne.s32.totalorder %s65, %s79
      %p81 = scmp.eq.s32.totalorder %s22, 0
      %p82 = por %p80, %p81
      %s83 = ssub.s32 %s23, %s35
      %s84 = ssub.s32 %s24, %s31
      %s85 = sor.u32 %s83, %s84
      %p86 = scmp.eq.s32.totalorder %s85, 0
      %s88 = sadd.s32 %s87, 1
      %s89 = scalar_select %p86, %s87, %s88
      %p92 = pneg %p86
      %p93 = scmp.eq.s32.totalorder %s16, 1
      %p94 = por %p92, %p93
      %p95 = scmp.ne.s32.totalorder %s87, %s90
      %p96 = scmp.eq.s32.totalorder %s16, 0
      %p97 = por %p95, %p96
      %p98 = scmp.ne.s32.totalorder %s87, %s90
      %p99 = scmp.eq.s32.totalorder %s21, 1
      %p100 = por %p98, %p99
      %p101 = scmp.ne.s32.totalorder %s90, %s91
      %p102 = scmp.eq.s32.totalorder %s21, 0
      %p103 = por %p101, %p102
      %p104 = scmp.ne.s32.totalorder %s90, %s91
      %p105 = scmp.eq.s32.totalorder %s22, 1
      %p106 = por %p104, %p105
      %p108 = scmp.ne.s32.totalorder %s91, %s107
      %p109 = scmp.eq.s32.totalorder %s22, 0
      %p110 = por %p108, %p109
      %s111 = sadd.s32 %s23, %s24
      %s112 = sadd.s32 %s35, %s31
      %s113 = ssub.s32 %s111, %s112
      %p114 = scmp.eq.s32.totalorder %s113, 0
      %s116 = sadd.s32 %s115, 1
      %s117 = scalar_select %p114, %s115, %s116
      %p120 = pneg %p114
      %p121 = scmp.eq.s32.totalorder %s16, 1
      %p122 = por %p120, %p121
      %p123 = scmp.ne.s32.totalorder %s115, %s118
      %p124 = scmp.eq.s32.totalorder %s16, 0
      %p125 = por %p123, %p124
      %p126 = scmp.ne.s32.totalorder %s115, %s118
      %p127 = scmp.eq.s32.totalorder %s21, 1
      %p128 = por %p126, %p127
      %p129 = scmp.ne.s32.totalorder %s118, %s119
      %p130 = scmp.eq.s32.totalorder %s21, 0
      %p131 = por %p129, %p130
      %p132 = scmp.ne.s32.totalorder %s118, %s119
      %p133 = scmp.eq.s32.totalorder %s22, 1
      %p134 = por %p132, %p133
      %p136 = scmp.ne.s32.totalorder %s119, %s135
      %p137 = scmp.eq.s32.totalorder %s22, 0
      %p138 = por %p136, %p137
      %p139 = scmp.le.s32.totalorder 1, %s16
      %p140 = scmp.lt.s32.totalorder %s16, 3
      %p141 = pnand %p139, %p140
      %p142 = pneg %p141
      // Predicated region
      $region9: #{tpu_custom_call.1} parent=5 // pred_check
        _
      $region10: #{tpu_custom_call.1} parent=5 // pred_check_branch
        %144 = sbr.rel (%p141) target = $region12
      $region11: #{tpu_custom_call.1} parent=5 // pred_region
        %s145 = ssub.s32 %s16, 1
        // Predicated region
        $region13: #{tpu_custom_call.1} parent=11 // pred_check
          %p146 = pneg %p75
        $region14: #{tpu_custom_call.1} parent=11 // pred_check_branch
          %148 = sbr.rel (%p146) target = $region16
        $region15: #{tpu_custom_call.1} parent=11 // pred_region
          _
        $region16: #{tpu_custom_call.1} parent=11 // pred_fallthru
          _
      $region12: #{tpu_custom_call.1} parent=5 // pred_fallthru
        _
      %p149 = scmp.lt.s32.totalorder %s16, 2
      // Predicated region
      $region17: #{tpu_custom_call.1} parent=5 // pred_check
        %p150 = pneg %p149
      $region18: #{tpu_custom_call.1} parent=5 // pred_check_branch
        %152 = sbr.rel (%p150) target = $region20
      $region19: #{tpu_custom_call.1} parent=5 // pred_region
        // Predicated region
        $region21: #{tpu_custom_call.1} parent=19 // pred_check
          %p153 = pneg %p48
        $region22: #{tpu_custom_call.1} parent=19 // pred_check_branch
          %155 = sbr.rel (%p153) target = $region24
        $region23: #{tpu_custom_call.1} parent=19 // pred_region
          %p156 = scmp.lt.s32.totalorder %s23, 1
          %s157 = scalar_select %p156, %s23, 1
          %s158 = smul.addr %s157, 41
          %s159 = smul.addr %s158, 4
          %s160 = scalar_lea.vmem %s0, %s159
        $region24: #{tpu_custom_call.1} parent=19 // pred_fallthru
          _
      $region20: #{tpu_custom_call.1} parent=5 // pred_fallthru
        _
      %p161 = scmp.le.s32.totalorder 1, %s16
      %p162 = scmp.lt.s32.totalorder %s16, 3
      %p163 = pnand %p161, %p162
      %p164 = pneg %p163
      // Predicated region
      $region25: #{tpu_custom_call.1} parent=5 // pred_check
        _
      $region26: #{tpu_custom_call.1} parent=5 // pred_check_branch
        %166 = sbr.rel (%p163) target = $region28
      $region27: #{tpu_custom_call.1} parent=5 // pred_region
        %s167 = ssub.s32 %s16, 1
        %p168 = scmp.lt.s32.totalorder %s25, 1
        %s169 = scalar_select %p168, %s25, 1
        %s170 = smul.addr %s169, 41
        %s171 = smul.addr %s170, 4
        %s172 = scalar_lea.vmem %s0, %s171
        %p173 = pneg %p54
        %p174 = pneg %p51
        %p175 = pneg %p75
        %p176 = pneg %p72
        %p177 = pneg %p103
        %p178 = pneg %p100
        %s179 = sand.u32 %s90, 1
        %s180 = scalar_lea.sflag [#allocation3], %s179
        %s181 = sand.u32 %s90, 1
        %s182 = smul.addr %s181, 144
        %s183 = scalar_lea.vmem [#allocation2], %s182
        %p184 = pneg %p131
        %p185 = pneg %p128
        %s186 = sand.u32 %s118, 1
        %s187 = scalar_lea.sflag [#allocation5], %s186
        %s188 = sand.u32 %s118, 1
        %s189 = smul.addr %s188, 2
        %s190 = scalar_lea.vmem [#allocation4], %s189
        %p191 = scmp.lt.s32.totalorder %s25, 1
        %s192 = scalar_select %p191, %s25, 1
        %s193 = smul.addr %s192, 41
        %s194 = smul.addr %s193, 4
        %s195 = scalar_lea.vmem %s0, %s194
        %s196 = smul.u32 36, %s26
        %s197 = sadd.s32 %s25, %s26
        %s199 = smul.u32 %s26, 288
        %s200 = sshra.s32 %s199, 3
        %s201 = sand.u32 %s199, 7
        %s202 = smul.addr %s200, 4
        %s203 = scalar_lea.vmem %s195, %s202
        %v204 = vld [vmem:[%s203] sm:$0xf]
        %v205 = vld [vmem:[%s203 + $0x4] sm:$0xf]
        %v206 = vld [vmem:[%s203 + $0x8] sm:$0xf]
        %v207 = vld [vmem:[%s203 + $0xc] sm:$0xf]
        %v208 = vld [vmem:[%s203 + $0x10] sm:$0xf]
        %v209 = vld [vmem:[%s203 + $0x14] sm:$0xf]
        %v210 = vld [vmem:[%s203 + $0x18] sm:$0xf]
        %v211 = vld [vmem:[%s203 + $0x1c] sm:$0xf]
        %v212 = vld [vmem:[%s203 + $0x20] sm:$0xf]
        %v213 = vld [vmem:[%s203 + $0x24] sm:$0xf]
        %v214 = vld [vmem:[%s203 + $0x28] sm:$0xf]
        %v215 = vld [vmem:[%s203 + $0x2c] sm:$0xf]
        %v216 = vld [vmem:[%s203 + $0x30] sm:$0xf]
        %v217 = vld [vmem:[%s203 + $0x34] sm:$0xf]
        %v218 = vld [vmem:[%s203 + $0x38] sm:$0xf]
        %v219 = vld [vmem:[%s203 + $0x3c] sm:$0xf]
        %v220 = vld [vmem:[%s203 + $0x40] sm:$0xf]
        %v221 = vld [vmem:[%s203 + $0x44] sm:$0xf]
        %v222 = vld [vmem:[%s203 + $0x48] sm:$0xf]
        %v223 = vld [vmem:[%s203 + $0x4c] sm:$0xf]
        %v224 = vld [vmem:[%s203 + $0x50] sm:$0xf]
        %v225 = vld [vmem:[%s203 + $0x54] sm:$0xf]
        %v226 = vld [vmem:[%s203 + $0x58] sm:$0xf]
        %v227 = vld [vmem:[%s203 + $0x5c] sm:$0xf]
        %v228 = vld [vmem:[%s203 + $0x60] sm:$0xf]
        %v229 = vld [vmem:[%s203 + $0x64] sm:$0xf]
        %v230 = vld [vmem:[%s203 + $0x68] sm:$0xf]
        %v231 = vld [vmem:[%s203 + $0x6c] sm:$0xf]
        %v232 = vld [vmem:[%s203 + $0x70] sm:$0xf]
        %v233 = vld [vmem:[%s203 + $0x74] sm:$0xf]
        %v234 = vld [vmem:[%s203 + $0x78] sm:$0xf]
        %v235 = vld [vmem:[%s203 + $0x7c] sm:$0xf]
        %v236 = vld [vmem:[%s203 + $0x80] sm:$0xf]
        %v237 = vld [vmem:[%s203 + $0x84] sm:$0xf]
        %v238 = vld [vmem:[%s203 + $0x88] sm:$0xf]
        %v239 = vld [vmem:[%s203 + $0x8c] sm:$0xf]
        %v240 = vld [vmem:[%s203 + $0x90] sm:$0xf]
        %v241 = vld [vmem:[%s203 + $0x94] sm:$0xf]
        %v242 = vld [vmem:[%s203 + $0x98] sm:$0xf]
        %v243 = vld [vmem:[%s203 + $0x9c] sm:$0xf]
        %v244 = vld [vmem:[%s203 + $0xa0] sm:$0x7]
        %v245 = vld [vmem:[%s1] sm:$0x3]
        %s246 = scalar_lea.vmem %s1, 2
        %v247 = vld [vmem:[%s246] sm:$0x3]
        %v285 = vunpack.c.l.b16 %v204
        %v286 = vunpack.c.l.b16 %v205
        %v287 = vunpack.c.l.b16 %v206
        %v288 = vunpack.c.l.b16 %v207
        %v289 = vunpack.c.l.b16 %v208
        %v290 = vunpack.c.l.b16 %v209
        %v291 = vunpack.c.l.b16 %v210
        %v292 = vunpack.c.l.b16 %v211
        %v293 = vunpack.c.l.b16 %v212
        %v294 = vunpack.c.l.b16 %v213
        %v295 = vunpack.c.l.b16 %v214
        %v296 = vunpack.c.l.b16 %v215
        %v297 = vunpack.c.l.b16 %v216
        %v298 = vunpack.c.l.b16 %v217
        %v299 = vunpack.c.l.b16 %v218
        %v300 = vunpack.c.l.b16 %v219
        %v301 = vunpack.c.l.b16 %v220
        %v302 = vunpack.c.l.b16 %v221
        %v303 = vunpack.c.l.b16 %v222
        %v304 = vunpack.c.l.b16 %v223
        %v305 = vunpack.c.l.b16 %v224
        %v306 = vunpack.c.l.b16 %v225
        %v307 = vunpack.c.l.b16 %v226
        %v308 = vunpack.c.l.b16 %v227
        %v309 = vunpack.c.l.b16 %v228
        %v310 = vunpack.c.l.b16 %v229
        %v311 = vunpack.c.l.b16 %v230
        %v312 = vunpack.c.l.b16 %v231
        %v313 = vunpack.c.l.b16 %v232
        %v314 = vunpack.c.l.b16 %v233
        %v315 = vunpack.c.l.b16 %v234
        %v316 = vunpack.c.l.b16 %v235
        %v317 = vunpack.c.l.b16 %v236
        %v318 = vunpack.c.l.b16 %v237
        %v319 = vunpack.c.l.b16 %v238
        %v320 = vunpack.c.l.b16 %v239
        %v321 = vunpack.c.l.b16 %v240
        %v322 = vpack.c.b16 %v286, %v285
        %v323 = vpack.c.b16 %v288, %v287
        %v324 = vpack.c.b16 %v290, %v289
        %v325 = vpack.c.b16 %v292, %v291
        %v326 = vpack.c.b16 %v294, %v293
        %v327 = vpack.c.b16 %v296, %v295
        %v328 = vpack.c.b16 %v298, %v297
        %v329 = vpack.c.b16 %v300, %v299
        %v330 = vpack.c.b16 %v302, %v301
        %v331 = vpack.c.b16 %v304, %v303
        %v332 = vpack.c.b16 %v306, %v305
        %v333 = vpack.c.b16 %v308, %v307
        %v334 = vpack.c.b16 %v310, %v309
        %v335 = vpack.c.b16 %v312, %v311
        %v336 = vpack.c.b16 %v314, %v313
        %v337 = vpack.c.b16 %v316, %v315
        %v338 = vpack.c.b16 %v318, %v317
        %v339 = vpack.c.b16 %v320, %v319
        %v340 = vpack.c.b16 %v321, %v321
        %vm341 = vsmask.f32 7424
        %v343 = vshrl.u32 %v322, 16
        %v345 = vshll.u32 %v322, 16
        %v347 = vrot.slane %v345, 1
        %v348 = vor.u32 %v343, %v347
        %v350 = vshll.u32 %v323, 16
        %v352 = vrot.slane %v350, 1
        %v353 = vsel %vm341, %v348, %v352
        %v354 = vshrl.u32 %v323, 16
        %v356 = vor.u32 %v354, %v352
        %v358 = vshll.u32 %v324, 16
        %v360 = vrot.slane %v358, 1
        %v361 = vsel %vm341, %v356, %v360
        %v362 = vshrl.u32 %v324, 16
        %v364 = vor.u32 %v362, %v360
        %v366 = vshll.u32 %v325, 16
        %v368 = vrot.slane %v366, 1
        %v369 = vsel %vm341, %v364, %v368
        %v370 = vshrl.u32 %v325, 16
        %v372 = vor.u32 %v370, %v368
        %v374 = vshll.u32 %v326, 16
        %v376 = vrot.slane %v374, 1
        %v377 = vsel %vm341, %v372, %v376
        %v378 = vshrl.u32 %v326, 16
        %v380 = vor.u32 %v378, %v376
        %v382 = vshll.u32 %v327, 16
        %v384 = vrot.slane %v382, 1
        %v385 = vsel %vm341, %v380, %v384
        %v386 = vshrl.u32 %v327, 16
        %v388 = vor.u32 %v386, %v384
        %v390 = vshll.u32 %v328, 16
        %v392 = vrot.slane %v390, 1
        %v393 = vsel %vm341, %v388, %v392
        %v394 = vshrl.u32 %v328, 16
        %v396 = vor.u32 %v394, %v392
        %v398 = vshll.u32 %v329, 16
        %v400 = vrot.slane %v398, 1
        %v401 = vsel %vm341, %v396, %v400
        %v402 = vshrl.u32 %v329, 16
        %v404 = vor.u32 %v402, %v400
        %v406 = vshll.u32 %v330, 16
        %v408 = vrot.slane %v406, 1
        %v409 = vsel %vm341, %v404, %v408
        %v410 = vshrl.u32 %v330, 16
        %v412 = vor.u32 %v410, %v408
        %v414 = vshll.u32 %v331, 16
        %v416 = vrot.slane %v414, 1
        %v417 = vsel %vm341, %v412, %v416
        %v418 = vshrl.u32 %v331, 16
        %v420 = vor.u32 %v418, %v416
        %v422 = vshll.u32 %v332, 16
        %v424 = vrot.slane %v422, 1
        %v425 = vsel %vm341, %v420, %v424
        %v426 = vshrl.u32 %v332, 16
        %v428 = vor.u32 %v426, %v424
        %v430 = vshll.u32 %v333, 16
        %v432 = vrot.slane %v430, 1
        %v433 = vsel %vm341, %v428, %v432
        %v434 = vshrl.u32 %v333, 16
        %v436 = vor.u32 %v434, %v432
        %v438 = vshll.u32 %v334, 16
        %v440 = vrot.slane %v438, 1
        %v441 = vsel %vm341, %v436, %v440
        %v442 = vshrl.u32 %v334, 16
        %v444 = vor.u32 %v442, %v440
        %v446 = vshll.u32 %v335, 16
        %v448 = vrot.slane %v446, 1
        %v449 = vsel %vm341, %v444, %v448
        %v450 = vshrl.u32 %v335, 16
        %v452 = vor.u32 %v450, %v448
        %v454 = vshll.u32 %v336, 16
        %v456 = vrot.slane %v454, 1
        %v457 = vsel %vm341, %v452, %v456
        %v458 = vshrl.u32 %v336, 16
        %v460 = vor.u32 %v458, %v456
        %v462 = vshll.u32 %v337, 16
        %v464 = vrot.slane %v462, 1
        %v465 = vsel %vm341, %v460, %v464
        %v466 = vshrl.u32 %v337, 16
        %v468 = vor.u32 %v466, %v464
        %v470 = vshll.u32 %v338, 16
        %v472 = vrot.slane %v470, 1
        %v473 = vsel %vm341, %v468, %v472
        %v474 = vshrl.u32 %v338, 16
        %v476 = vor.u32 %v474, %v472
        %v478 = vshll.u32 %v339, 16
        %v480 = vrot.slane %v478, 1
        %v481 = vsel %vm341, %v476, %v480
        %v482 = vshrl.u32 %v339, 16
        %v484 = vor.u32 %v482, %v480
        %v486 = vshll.u32 %v340, 16
        %v488 = vrot.slane %v486, 1
        %v489 = vsel %vm341, %v484, %v488
        %vm490 = vcmask 31744
        %v492 = vsel %vm490, %v353, 0
        %v495 = vsel %vm490, %v361, 0
        %v498 = vsel %vm490, %v369, 0
        %v501 = vsel %vm490, %v377, 0
        %v504 = vsel %vm490, %v385, 0
        %v507 = vsel %vm490, %v393, 0
        %v510 = vsel %vm490, %v401, 0
        %v513 = vsel %vm490, %v409, 0
        %v516 = vsel %vm490, %v417, 0
        %v519 = vsel %vm490, %v425, 0
        %v522 = vsel %vm490, %v433, 0
        %v525 = vsel %vm490, %v441, 0
        %v528 = vsel %vm490, %v449, 0
        %v531 = vsel %vm490, %v457, 0
        %v534 = vsel %vm490, %v465, 0
        %v537 = vsel %vm490, %v473, 0
        %v540 = vsel %vm490, %v481, 0
        %v543 = vsel %vm490, %v489, 0
        %vm545 = vcmask 1041408
        %v547 = vsel %vm545, %v247, 0
        %549 = vmatprep.subr.bf16.mxu0 0
        %550 = vmatpush1.bf16.msra.mxu0 %v547
        %551 = vmatprep.subr.bf16.mxu0 0
        %552 = vmatpush1.bf16.msra.mxu0 0
        %553 = vmatprep.subr.bf16.mxu0 0
        %554 = vmatpush1.bf16.msra.mxu0 0
        %555 = vmatprep.subr.bf16.mxu0 0
        %556 = vmatpush1.bf16.msra.mxu0 0
        %557 = vmatprep.subr.bf16.mxu0 0
        %558 = vmatpush1.bf16.msra.mxu0 0
        %559 = vmatprep.subr.bf16.mxu0 0
        %560 = vmatpush1.bf16.msra.mxu0 0
        %561 = vmatprep.subr.bf16.mxu0 0
        %562 = vmatpush1.bf16.msra.mxu0 0
        %563 = vmatprep.subr.bf16.mxu0 0
        %564 = vmatpush1.bf16.msra.mxu0 0
        %565 = vmatprep.subr.bf16.mxu0 0
        %566 = vmatpush1.bf16.msra.mxu0 0
        %567 = vmatprep.subr.bf16.mxu0 0
        %568 = vmatpush1.bf16.msra.mxu0 0
        %569 = vmatprep.subr.bf16.mxu0 0
        %570 = vmatpush1.bf16.msra.mxu0 0
        %571 = vmatprep.subr.bf16.mxu0 0
        %572 = vmatpush1.bf16.msra.mxu0 0
        %573 = vmatprep.subr.bf16.mxu0 0
        %574 = vmatpush1.bf16.msra.mxu0 0
        %575 = vmatprep.subr.bf16.mxu0 0
        %576 = vmatpush1.bf16.msra.mxu0 0
        %577 = vmatprep.subr.bf16.mxu0 0
        %578 = vmatpush1.bf16.msra.mxu0 0
        %579 = vmatprep.subr.bf16.mxu0 0
        %580 = vmatpush1.bf16.msra.mxu0 0
        %581 = vmatprep.mubr.bf16.mxu0 0
        %582 = vmatmul.mubr.bf16.gmra.mrb[0].mxu0 %v492
        %v583 = vpop.f32.mrb[0].mxu0
        %v584 = vadd.f32 0.0, %v583
        %v585 = vpop.f32.mrb[0].mxu0
        %v586 = vpop.f32.mrb[0].mxu0
        %v587 = vadd.f32 0.0, %v586
        %v588 = vpop.f32.mrb[0].mxu0
        %589 = vmatprep.mubr.bf16.mxu0 0
        %590 = vmatmul.mubr.bf16.gmra.mrb[0].mxu0 %v495
        %v591 = vpop.f32.mrb[0].mxu0
        %v592 = vadd.f32 0.0, %v591
        %v593 = vpop.f32.mrb[0].mxu0
        %v594 = vpop.f32.mrb[0].mxu0
        %v595 = vadd.f32 0.0, %v594
        %v596 = vpop.f32.mrb[0].mxu0
        %597 = vmatprep.mubr.bf16.mxu0 0
        %598 = vmatmul.mubr.bf16.gmra.mrb[0].mxu0 %v498
        %v599 = vpop.f32.mrb[0].mxu0
        %v600 = vadd.f32 0.0, %v599
        %v601 = vpop.f32.mrb[0].mxu0
        %v602 = vpop.f32.mrb[0].mxu0
        %v603 = vadd.f32 0.0, %v602
        %v604 = vpop.f32.mrb[0].mxu0
        %605 = vmatprep.mubr.bf16.mxu0 0
        %606 = vmatmul.mubr.bf16.gmra.mrb[0].mxu0 %v501
        %v607 = vpop.f32.mrb[0].mxu0
        %v608 = vadd.f32 0.0, %v607
        %v609 = vpop.f32.mrb[0].mxu0
        %v610 = vpop.f32.mrb[0].mxu0
        %v611 = vadd.f32 0.0, %v610
        %v612 = vpop.f32.mrb[0].mxu0
        %613 = vmatprep.mubr.bf16.mxu0 0
        %614 = vmatmul.mubr.bf16.gmra.mrb[0].mxu0 %v504
        %v615 = vpop.f32.mrb[0].mxu0
        %v616 = vadd.f32 0.0, %v615
        %v617 = vpop.f32.mrb[0].mxu0
        %v618 = vpop.f32.mrb[0].mxu0
        %v619 = vadd.f32 0.0, %v618
        %v620 = vpop.f32.mrb[0].mxu0
        %621 = vmatprep.mubr.bf16.mxu0 0
        %622 = vmatmul.mubr.bf16.gmra.mrb[0].mxu0 %v507
        %v623 = vpop.f32.mrb[0].mxu0
        %v624 = vadd.f32 0.0, %v623
        %v625 = vpop.f32.mrb[0].mxu0
        %v626 = vpop.f32.mrb[0].mxu0
        %v627 = vadd.f32 0.0, %v626
        %v628 = vpop.f32.mrb[0].mxu0
        %629 = vmatprep.mubr.bf16.mxu0 0
        %630 = vmatmul.mubr.bf16.gmra.mrb[0].mxu0 %v510
        %v631 = vpop.f32.mrb[0].mxu0
        %v632 = vadd.f32 0.0, %v631
        %v633 = vpop.f32.mrb[0].mxu0
        %v634 = vpop.f32.mrb[0].mxu0
        %v635 = vadd.f32 0.0, %v634
        %v636 = vpop.f32.mrb[0].mxu0
        %637 = vmatprep.mubr.bf16.mxu0 0
        %638 = vmatmul.mubr.bf16.gmra.mrb[0].mxu0 %v513
        %v639 = vpop.f32.mrb[0].mxu0
        %v640 = vadd.f32 0.0, %v639
        %v641 = vpop.f32.mrb[0].mxu0
        %v642 = vpop.f32.mrb[0].mxu0
        %v643 = vadd.f32 0.0, %v642
        %v644 = vpop.f32.mrb[0].mxu0
        %645 = vmatprep.mubr.bf16.mxu0 0
        %646 = vmatmul.mubr.bf16.gmra.mrb[0].mxu0 %v516
        %v647 = vpop.f32.mrb[0].mxu0
        %v648 = vadd.f32 0.0, %v647
        %v649 = vpop.f32.mrb[0].mxu0
        %v650 = vpop.f32.mrb[0].mxu0
        %v651 = vadd.f32 0.0, %v650
        %v652 = vpop.f32.mrb[0].mxu0
        %653 = vmatprep.mubr.bf16.mxu0 0
        %654 = vmatmul.mubr.bf16.gmra.mrb[0].mxu0 %v519
        %v655 = vpop.f32.mrb[0].mxu0
        %v656 = vadd.f32 0.0, %v655
        %v657 = vpop.f32.mrb[0].mxu0
        %v658 = vpop.f32.mrb[0].mxu0
        %v659 = vadd.f32 0.0, %v658
        %v660 = vpop.f32.mrb[0].mxu0
        %661 = vmatprep.mubr.bf16.mxu0 0
        %662 = vmatmul.mubr.bf16.gmra.mrb[0].mxu0 %v522
        %v663 = vpop.f32.mrb[0].mxu0
        %v664 = vadd.f32 0.0, %v663
        %v665 = vpop.f32.mrb[0].mxu0
        %v666 = vpop.f32.mrb[0].mxu0
        %v667 = vadd.f32 0.0, %v666
        %v668 = vpop.f32.mrb[0].mxu0
        %669 = vmatprep.mubr.bf16.mxu0 0
        %670 = vmatmul.mubr.bf16.gmra.mrb[0].mxu0 %v525
        %v671 = vpop.f32.mrb[0].mxu0
        %v672 = vadd.f32 0.0, %v671
        %v673 = vpop.f32.mrb[0].mxu0
        %v674 = vpop.f32.mrb[0].mxu0
        %v675 = vadd.f32 0.0, %v674
        %v676 = vpop.f32.mrb[0].mxu0
        %677 = vmatprep.mubr.bf16.mxu0 0
        %678 = vmatmul.mubr.bf16.gmra.mrb[0].mxu0 %v528
        %v679 = vpop.f32.mrb[0].mxu0
        %v680 = vadd.f32 0.0, %v679
        %v681 = vpop.f32.mrb[0].mxu0
        %v682 = vpop.f32.mrb[0].mxu0
        %v683 = vadd.f32 0.0, %v682
        %v684 = vpop.f32.mrb[0].mxu0
        %685 = vmatprep.mubr.bf16.mxu0 0
        %686 = vmatmul.mubr.bf16.gmra.mrb[0].mxu0 %v531
        %v687 = vpop.f32.mrb[0].mxu0
        %v688 = vadd.f32 0.0, %v687
        %v689 = vpop.f32.mrb[0].mxu0
        %v690 = vpop.f32.mrb[0].mxu0
        %v691 = vadd.f32 0.0, %v690
        %v692 = vpop.f32.mrb[0].mxu0
        %693 = vmatprep.mubr.bf16.mxu0 0
        %694 = vmatmul.mubr.bf16.gmra.mrb[0].mxu0 %v534
        %v695 = vpop.f32.mrb[0].mxu0
        %v696 = vadd.f32 0.0, %v695
        %v697 = vpop.f32.mrb[0].mxu0
        %v698 = vpop.f32.mrb[0].mxu0
        %v699 = vadd.f32 0.0, %v698
        %v700 = vpop.f32.mrb[0].mxu0
        %701 = vmatprep.mubr.bf16.mxu0 0
        %702 = vmatmul.mubr.bf16.gmra.mrb[0].mxu0 %v537
        %v703 = vpop.f32.mrb[0].mxu0
        %v704 = vadd.f32 0.0, %v703
        %v705 = vpop.f32.mrb[0].mxu0
        %v706 = vpop.f32.mrb[0].mxu0
        %v707 = vadd.f32 0.0, %v706
        %v708 = vpop.f32.mrb[0].mxu0
        %709 = vmatprep.mubr.bf16.mxu0 0
        %710 = vmatmul.mubr.bf16.gmra.mrb[0].mxu0 %v540
        %v711 = vpop.f32.mrb[0].mxu0
        %v712 = vadd.f32 0.0, %v711
        %v713 = vpop.f32.mrb[0].mxu0
        %v714 = vpop.f32.mrb[0].mxu0
        %v715 = vadd.f32 0.0, %v714
        %v716 = vpop.f32.mrb[0].mxu0
        %717 = vmatprep.mubr.bf16.mxu0 0
        %718 = vmatmul.mubr.bf16.gmra.mrb[0].mxu0 %v543
        %v719 = vpop.f32.mrb[0].mxu0
        %v720 = vadd.f32 0.0, %v719
        %v721 = vpop.f32.mrb[0].mxu0
        %v722 = vpop.f32.mrb[0].mxu0
        %v723 = vadd.f32 0.0, %v722
        %v724 = vpop.f32.mrb[0].mxu0
        %725 = vdwg.mxu0
        %v726 = vsel %vm490, %v322, 0
        %v728 = vsel %vm490, %v323, 0
        %v730 = vsel %vm490, %v324, 0
        %v732 = vsel %vm490, %v325, 0
        %v734 = vsel %vm490, %v326, 0
        %v736 = vsel %vm490, %v327, 0
        %v738 = vsel %vm490, %v328, 0
        %v740 = vsel %vm490, %v329, 0
        %v742 = vsel %vm490, %v330, 0
        %v744 = vsel %vm490, %v331, 0
        %v746 = vsel %vm490, %v332, 0
        %v748 = vsel %vm490, %v333, 0
        %v750 = vsel %vm490, %v334, 0
        %v752 = vsel %vm490, %v335, 0
        %v754 = vsel %vm490, %v336, 0
        %v756 = vsel %vm490, %v337, 0
        %v758 = vsel %vm490, %v338, 0
        %v760 = vsel %vm490, %v339, 0
        %v763 = vsel %vm545, %v245, 0
        %765 = vmatprep.subr.bf16.mxu0 0
        %766 = vmatpush1.bf16.msra.mxu0 %v763
        %767 = vmatprep.subr.bf16.mxu0 0
        %768 = vmatpush1.bf16.msra.mxu0 0
        %769 = vmatprep.subr.bf16.mxu0 0
        %770 = vmatpush1.bf16.msra.mxu0 0
        %771 = vmatprep.subr.bf16.mxu0 0
        %772 = vmatpush1.bf16.msra.mxu0 0
        %773 = vmatprep.subr.bf16.mxu0 0
        %774 = vmatpush1.bf16.msra.mxu0 0
        %775 = vmatprep.subr.bf16.mxu0 0
        %776 = vmatpush1.bf16.msra.mxu0 0
        %777 = vmatprep.subr.bf16.mxu0 0
        %778 = vmatpush1.bf16.msra.mxu0 0
        %779 = vmatprep.subr.bf16.mxu0 0
        %780 = vmatpush1.bf16.msra.mxu0 0
        %781 = vmatprep.subr.bf16.mxu0 0
        %782 = vmatpush1.bf16.msra.mxu0 0
        %783 = vmatprep.subr.bf16.mxu0 0
        %784 = vmatpush1.bf16.msra.mxu0 0
        %785 = vmatprep.subr.bf16.mxu0 0
        %786 = vmatpush1.bf16.msra.mxu0 0
        %787 = vmatprep.subr.bf16.mxu0 0
        %788 = vmatpush1.bf16.msra.mxu0 0
        %789 = vmatprep.subr.bf16.mxu0 0
        %790 = vmatpush1.bf16.msra.mxu0 0
        %791 = vmatprep.subr.bf16.mxu0 0
        %792 = vmatpush1.bf16.msra.mxu0 0
        %793 = vmatprep.subr.bf16.mxu0 0
        %794 = vmatpush1.bf16.msra.mxu0 0
        %795 = vmatprep.subr.bf16.mxu0 0
        %796 = vmatpush1.bf16.msra.mxu0 0
        %797 = vmatprep.mubr.bf16.mxu0 0
        %798 = vmatmul.mubr.bf16.gmra.mrb[0].mxu0 %v726
        %v799 = vpop.f32.mrb[0].mxu0
        %v800 = vadd.f32 %v584, %v799
        %v801 = vpop.f32.mrb[0].mxu0
        %v802 = vpop.f32.mrb[0].mxu0
        %v803 = vadd.f32 %v587, %v802
        %v804 = vpop.f32.mrb[0].mxu0
        %805 = vmatprep.mubr.bf16.mxu0 0
        %806 = vmatmul.mubr.bf16.gmra.mrb[0].mxu0 %v728
        %v807 = vpop.f32.mrb[0].mxu0
        %v808 = vadd.f32 %v592, %v807
        %v809 = vpop.f32.mrb[0].mxu0
        %v810 = vpop.f32.mrb[0].mxu0
        %v811 = vadd.f32 %v595, %v810
        %v812 = vpop.f32.mrb[0].mxu0
        %813 = vmatprep.mubr.bf16.mxu0 0
        %814 = vmatmul.mubr.bf16.gmra.mrb[0].mxu0 %v730
        %v815 = vpop.f32.mrb[0].mxu0
        %v816 = vadd.f32 %v600, %v815
        %v817 = vpop.f32.mrb[0].mxu0
        %v818 = vpop.f32.mrb[0].mxu0
        %v819 = vadd.f32 %v603, %v818
        %v820 = vpop.f32.mrb[0].mxu0
        %821 = vmatprep.mubr.bf16.mxu0 0
        %822 = vmatmul.mubr.bf16.gmra.mrb[0].mxu0 %v732
        %v823 = vpop.f32.mrb[0].mxu0
        %v824 = vadd.f32 %v608, %v823
        %v825 = vpop.f32.mrb[0].mxu0
        %v826 = vpop.f32.mrb[0].mxu0
        %v827 = vadd.f32 %v611, %v826
        %v828 = vpop.f32.mrb[0].mxu0
        %829 = vmatprep.mubr.bf16.mxu0 0
        %830 = vmatmul.mubr.bf16.gmra.mrb[0].mxu0 %v734
        %v831 = vpop.f32.mrb[0].mxu0
        %v832 = vadd.f32 %v616, %v831
        %v833 = vpop.f32.mrb[0].mxu0
        %v834 = vpop.f32.mrb[0].mxu0
        %v835 = vadd.f32 %v619, %v834
        %v836 = vpop.f32.mrb[0].mxu0
        %837 = vmatprep.mubr.bf16.mxu0 0
        %838 = vmatmul.mubr.bf16.gmra.mrb[0].mxu0 %v736
        %v839 = vpop.f32.mrb[0].mxu0
        %v840 = vadd.f32 %v624, %v839
        %v841 = vpop.f32.mrb[0].mxu0
        %v842 = vpop.f32.mrb[0].mxu0
        %v843 = vadd.f32 %v627, %v842
        %v844 = vpop.f32.mrb[0].mxu0
        %845 = vmatprep.mubr.bf16.mxu0 0
        %846 = vmatmul.mubr.bf16.gmra.mrb[0].mxu0 %v738
        %v847 = vpop.f32.mrb[0].mxu0
        %v848 = vadd.f32 %v632, %v847
        %v849 = vpop.f32.mrb[0].mxu0
        %v850 = vpop.f32.mrb[0].mxu0
        %v851 = vadd.f32 %v635, %v850
        %v852 = vpop.f32.mrb[0].mxu0
        %853 = vmatprep.mubr.bf16.mxu0 0
        %854 = vmatmul.mubr.bf16.gmra.mrb[0].mxu0 %v740
        %v855 = vpop.f32.mrb[0].mxu0
        %v856 = vadd.f32 %v640, %v855
        %v857 = vpop.f32.mrb[0].mxu0
        %v858 = vpop.f32.mrb[0].mxu0
        %v859 = vadd.f32 %v643, %v858
        %v860 = vpop.f32.mrb[0].mxu0
        %861 = vmatprep.mubr.bf16.mxu0 0
        %862 = vmatmul.mubr.bf16.gmra.mrb[0].mxu0 %v742
        %v863 = vpop.f32.mrb[0].mxu0
        %v864 = vadd.f32 %v648, %v863
        %v865 = vpop.f32.mrb[0].mxu0
        %v866 = vpop.f32.mrb[0].mxu0
        %v867 = vadd.f32 %v651, %v866
        %v868 = vpop.f32.mrb[0].mxu0
        %869 = vmatprep.mubr.bf16.mxu0 0
        %870 = vmatmul.mubr.bf16.gmra.mrb[0].mxu0 %v744
        %v871 = vpop.f32.mrb[0].mxu0
        %v872 = vadd.f32 %v656, %v871
        %v873 = vpop.f32.mrb[0].mxu0
        %v874 = vpop.f32.mrb[0].mxu0
        %v875 = vadd.f32 %v659, %v874
        %v876 = vpop.f32.mrb[0].mxu0
        %877 = vmatprep.mubr.bf16.mxu0 0
        %878 = vmatmul.mubr.bf16.gmra.mrb[0].mxu0 %v746
        %v879 = vpop.f32.mrb[0].mxu0
        %v880 = vadd.f32 %v664, %v879
        %v881 = vpop.f32.mrb[0].mxu0
        %v882 = vpop.f32.mrb[0].mxu0
        %v883 = vadd.f32 %v667, %v882
        %v884 = vpop.f32.mrb[0].mxu0
        %885 = vmatprep.mubr.bf16.mxu0 0
        %886 = vmatmul.mubr.bf16.gmra.mrb[0].mxu0 %v748
        %v887 = vpop.f32.mrb[0].mxu0
        %v888 = vadd.f32 %v672, %v887
        %v889 = vpop.f32.mrb[0].mxu0
        %v890 = vpop.f32.mrb[0].mxu0
        %v891 = vadd.f32 %v675, %v890
        %v892 = vpop.f32.mrb[0].mxu0
        %893 = vmatprep.mubr.bf16.mxu0 0
        %894 = vmatmul.mubr.bf16.gmra.mrb[0].mxu0 %v750
        %v895 = vpop.f32.mrb[0].mxu0
        %v896 = vadd.f32 %v680, %v895
        %v897 = vpop.f32.mrb[0].mxu0
        %v898 = vpop.f32.mrb[0].mxu0
        %v899 = vadd.f32 %v683, %v898
        %v900 = vpop.f32.mrb[0].mxu0
        %901 = vmatprep.mubr.bf16.mxu0 0
        %902 = vmatmul.mubr.bf16.gmra.mrb[0].mxu0 %v752
        %v903 = vpop.f32.mrb[0].mxu0
        %v904 = vadd.f32 %v688, %v903
        %v905 = vpop.f32.mrb[0].mxu0
        %v906 = vpop.f32.mrb[0].mxu0
        %v907 = vadd.f32 %v691, %v906
        %v908 = vpop.f32.mrb[0].mxu0
        %909 = vmatprep.mubr.bf16.mxu0 0
        %910 = vmatmul.mubr.bf16.gmra.mrb[0].mxu0 %v754
        %v911 = vpop.f32.mrb[0].mxu0
        %v912 = vadd.f32 %v696, %v911
        %v913 = vpop.f32.mrb[0].mxu0
        %v914 = vpop.f32.mrb[0].mxu0
        %v915 = vadd.f32 %v699, %v914
        %v916 = vpop.f32.mrb[0].mxu0
        %917 = vmatprep.mubr.bf16.mxu0 0
        %918 = vmatmul.mubr.bf16.gmra.mrb[0].mxu0 %v756
        %v919 = vpop.f32.mrb[0].mxu0
        %v920 = vadd.f32 %v704, %v919
        %v921 = vpop.f32.mrb[0].mxu0
        %v922 = vpop.f32.mrb[0].mxu0
        %v923 = vadd.f32 %v707, %v922
        %v924 = vpop.f32.mrb[0].mxu0
        %925 = vmatprep.mubr.bf16.mxu0 0
        %926 = vmatmul.mubr.bf16.gmra.mrb[0].mxu0 %v758
        %v927 = vpop.f32.mrb[0].mxu0
        %v928 = vadd.f32 %v712, %v927
        %v929 = vpop.f32.mrb[0].mxu0
        %v930 = vpop.f32.mrb[0].mxu0
        %v931 = vadd.f32 %v715, %v930
        %v932 = vpop.f32.mrb[0].mxu0
        %933 = vmatprep.mubr.bf16.mxu0 0
        %934 = vmatmul.mubr.bf16.gmra.mrb[0].mxu0 %v760
        %v935 = vpop.f32.mrb[0].mxu0
        %v936 = vadd.f32 %v720, %v935
        %v937 = vpop.f32.mrb[0].mxu0
        %v938 = vpop.f32.mrb[0].mxu0
        %v939 = vadd.f32 %v723, %v938
        %v940 = vpop.f32.mrb[0].mxu0
        %941 = vdwg.mxu0
        %s942 = scalar_lea.vmem %s1, 4
        %v943 = vld [vmem:[%s942] sm:$0x3]
        %vm944 = vcmask 1046528
        %v945 = vrot.slane %v322, 1
        %v946 = vrot.slane %v323, 1
        %v947 = vsel %vm944, %v945, %v946
        %v948 = vrot.slane %v324, 1
        %v949 = vsel %vm944, %v946, %v948
        %v950 = vrot.slane %v325, 1
        %v951 = vsel %vm944, %v948, %v950
        %v952 = vrot.slane %v326, 1
        %v953 = vsel %vm944, %v950, %v952
        %v954 = vrot.slane %v327, 1
        %v955 = vsel %vm944, %v952, %v954
        %v956 = vrot.slane %v328, 1
        %v957 = vsel %vm944, %v954, %v956
        %v958 = vrot.slane %v329, 1
        %v959 = vsel %vm944, %v956, %v958
        %v960 = vrot.slane %v330, 1
        %v961 = vsel %vm944, %v958, %v960
        %v962 = vrot.slane %v331, 1
        %v963 = vsel %vm944, %v960, %v962
        %v964 = vrot.slane %v332, 1
        %v965 = vsel %vm944, %v962, %v964
        %v966 = vrot.slane %v333, 1
        %v967 = vsel %vm944, %v964, %v966
        %v968 = vrot.slane %v334, 1
        %v969 = vsel %vm944, %v966, %v968
        %v970 = vrot.slane %v335, 1
        %v971 = vsel %vm944, %v968, %v970
        %v972 = vrot.slane %v336, 1
        %v973 = vsel %vm944, %v970, %v972
        %v974 = vrot.slane %v337, 1
        %v975 = vsel %vm944, %v972, %v974
        %v976 = vrot.slane %v338, 1
        %v977 = vsel %vm944, %v974, %v976
        %v978 = vrot.slane %v339, 1
        %v979 = vsel %vm944, %v976, %v978
        %v980 = vrot.slane %v340, 1
        %v981 = vsel %vm944, %v978, %v980
        %v983 = vsel %vm490, %v947, 0
        %v986 = vsel %vm490, %v949, 0
        %v989 = vsel %vm490, %v951, 0
        %v992 = vsel %vm490, %v953, 0
        %v995 = vsel %vm490, %v955, 0
        %v998 = vsel %vm490, %v957, 0
        %v1001 = vsel %vm490, %v959, 0
        %v1004 = vsel %vm490, %v961, 0
        %v1007 = vsel %vm490, %v963, 0
        %v1010 = vsel %vm490, %v965, 0
        %v1013 = vsel %vm490, %v967, 0
        %v1016 = vsel %vm490, %v969, 0
        %v1019 = vsel %vm490, %v971, 0
        %v1022 = vsel %vm490, %v973, 0
        %v1025 = vsel %vm490, %v975, 0
        %v1028 = vsel %vm490, %v977, 0
        %v1031 = vsel %vm490, %v979, 0
        %v1034 = vsel %vm490, %v981, 0
        %v1037 = vsel %vm545, %v943, 0
        %1039 = vmatprep.subr.bf16.mxu0 0
        %1040 = vmatpush1.bf16.msra.mxu0 %v1037
        %1041 = vmatprep.subr.bf16.mxu0 0
        %1042 = vmatpush1.bf16.msra.mxu0 0
        %1043 = vmatprep.subr.bf16.mxu0 0
        %1044 = vmatpush1.bf16.msra.mxu0 0
        %1045 = vmatprep.subr.bf16.mxu0 0
        %1046 = vmatpush1.bf16.msra.mxu0 0
        %1047 = vmatprep.subr.bf16.mxu0 0
        %1048 = vmatpush1.bf16.msra.mxu0 0
        %1049 = vmatprep.subr.bf16.mxu0 0
        %1050 = vmatpush1.bf16.msra.mxu0 0
        %1051 = vmatprep.subr.bf16.mxu0 0
        %1052 = vmatpush1.bf16.msra.mxu0 0
        %1053 = vmatprep.subr.bf16.mxu0 0
        %1054 = vmatpush1.bf16.msra.mxu0 0
        %1055 = vmatprep.subr.bf16.mxu0 0
        %1056 = vmatpush1.bf16.msra.mxu0 0
        %1057 = vmatprep.subr.bf16.mxu0 0
        %1058 = vmatpush1.bf16.msra.mxu0 0
        %1059 = vmatprep.subr.bf16.mxu0 0
        %1060 = vmatpush1.bf16.msra.mxu0 0
        %1061 = vmatprep.subr.bf16.mxu0 0
        %1062 = vmatpush1.bf16.msra.mxu0 0
        %1063 = vmatprep.subr.bf16.mxu0 0
        %1064 = vmatpush1.bf16.msra.mxu0 0
        %1065 = vmatprep.subr.bf16.mxu0 0
        %1066 = vmatpush1.bf16.msra.mxu0 0
        %1067 = vmatprep.subr.bf16.mxu0 0
        %1068 = vmatpush1.bf16.msra.mxu0 0
        %1069 = vmatprep.subr.bf16.mxu0 0
        %1070 = vmatpush1.bf16.msra.mxu0 0
        %1071 = vmatprep.mubr.bf16.mxu0 0
        %1072 = vmatmul.mubr.bf16.gmra.mrb[0].mxu0 %v983
        %v1073 = vpop.f32.mrb[0].mxu0
        %v1074 = vadd.f32 0.0, %v1073
        %v1075 = vpop.f32.mrb[0].mxu0
        %v1076 = vpop.f32.mrb[0].mxu0
        %v1077 = vadd.f32 0.0, %v1076
        %v1078 = vpop.f32.mrb[0].mxu0
        %1079 = vmatprep.mubr.bf16.mxu0 0
        %1080 = vmatmul.mubr.bf16.gmra.mrb[0].mxu0 %v986
        %v1081 = vpop.f32.mrb[0].mxu0
        %v1082 = vadd.f32 0.0, %v1081
        %v1083 = vpop.f32.mrb[0].mxu0
        %v1084 = vpop.f32.mrb[0].mxu0
        %v1085 = vadd.f32 0.0, %v1084
        %v1086 = vpop.f32.mrb[0].mxu0
        %1087 = vmatprep.mubr.bf16.mxu0 0
        %1088 = vmatmul.mubr.bf16.gmra.mrb[0].mxu0 %v989
        %v1089 = vpop.f32.mrb[0].mxu0
        %v1090 = vadd.f32 0.0, %v1089
        %v1091 = vpop.f32.mrb[0].mxu0
        %v1092 = vpop.f32.mrb[0].mxu0
        %v1093 = vadd.f32 0.0, %v1092
        %v1094 = vpop.f32.mrb[0].mxu0
        %1095 = vmatprep.mubr.bf16.mxu0 0
        %1096 = vmatmul.mubr.bf16.gmra.mrb[0].mxu0 %v992
        %v1097 = vpop.f32.mrb[0].mxu0
        %v1098 = vadd.f32 0.0, %v1097
        %v1099 = vpop.f32.mrb[0].mxu0
        %v1100 = vpop.f32.mrb[0].mxu0
        %v1101 = vadd.f32 0.0, %v1100
        %v1102 = vpop.f32.mrb[0].mxu0
        %1103 = vmatprep.mubr.bf16.mxu0 0
        %1104 = vmatmul.mubr.bf16.gmra.mrb[0].mxu0 %v995
        %v1105 = vpop.f32.mrb[0].mxu0
        %v1106 = vadd.f32 0.0, %v1105
        %v1107 = vpop.f32.mrb[0].mxu0
        %v1108 = vpop.f32.mrb[0].mxu0
        %v1109 = vadd.f32 0.0, %v1108
        %v1110 = vpop.f32.mrb[0].mxu0
        %1111 = vmatprep.mubr.bf16.mxu0 0
        %1112 = vmatmul.mubr.bf16.gmra.mrb[0].mxu0 %v998
        %v1113 = vpop.f32.mrb[0].mxu0
        %v1114 = vadd.f32 0.0, %v1113
        %v1115 = vpop.f32.mrb[0].mxu0
        %v1116 = vpop.f32.mrb[0].mxu0
        %v1117 = vadd.f32 0.0, %v1116
        %v1118 = vpop.f32.mrb[0].mxu0
        %1119 = vmatprep.mubr.bf16.mxu0 0
        %1120 = vmatmul.mubr.bf16.gmra.mrb[0].mxu0 %v1001
        %v1121 = vpop.f32.mrb[0].mxu0
        %v1122 = vadd.f32 0.0, %v1121
        %v1123 = vpop.f32.mrb[0].mxu0
        %v1124 = vpop.f32.mrb[0].mxu0
        %v1125 = vadd.f32 0.0, %v1124
        %v1126 = vpop.f32.mrb[0].mxu0
        %1127 = vmatprep.mubr.bf16.mxu0 0
        %1128 = vmatmul.mubr.bf16.gmra.mrb[0].mxu0 %v1004
        %v1129 = vpop.f32.mrb[0].mxu0
        %v1130 = vadd.f32 0.0, %v1129
        %v1131 = vpop.f32.mrb[0].mxu0
        %v1132 = vpop.f32.mrb[0].mxu0
        %v1133 = vadd.f32 0.0, %v1132
        %v1134 = vpop.f32.mrb[0].mxu0
        %1135 = vmatprep.mubr.bf16.mxu0 0
        %1136 = vmatmul.mubr.bf16.gmra.mrb[0].mxu0 %v1007
        %v1137 = vpop.f32.mrb[0].mxu0
        %v1138 = vadd.f32 0.0, %v1137
        %v1139 = vpop.f32.mrb[0].mxu0
        %v1140 = vpop.f32.mrb[0].mxu0
        %v1141 = vadd.f32 0.0, %v1140
        %v1142 = vpop.f32.mrb[0].mxu0
        %1143 = vmatprep.mubr.bf16.mxu0 0
        %1144 = vmatmul.mubr.bf16.gmra.mrb[0].mxu0 %v1010
        %v1145 = vpop.f32.mrb[0].mxu0
        %v1146 = vadd.f32 0.0, %v1145
        %v1147 = vpop.f32.mrb[0].mxu0
        %v1148 = vpop.f32.mrb[0].mxu0
        %v1149 = vadd.f32 0.0, %v1148
        %v1150 = vpop.f32.mrb[0].mxu0
        %1151 = vmatprep.mubr.bf16.mxu0 0
        %1152 = vmatmul.mubr.bf16.gmra.mrb[0].mxu0 %v1013
        %v1153 = vpop.f32.mrb[0].mxu0
        %v1154 = vadd.f32 0.0, %v1153
        %v1155 = vpop.f32.mrb[0].mxu0
        %v1156 = vpop.f32.mrb[0].mxu0
        %v1157 = vadd.f32 0.0, %v1156
        %v1158 = vpop.f32.mrb[0].mxu0
        %1159 = vmatprep.mubr.bf16.mxu0 0
        %1160 = vmatmul.mubr.bf16.gmra.mrb[0].mxu0 %v1016
        %v1161 = vpop.f32.mrb[0].mxu0
        %v1162 = vadd.f32 0.0, %v1161
        %v1163 = vpop.f32.mrb[0].mxu0
        %v1164 = vpop.f32.mrb[0].mxu0
        %v1165 = vadd.f32 0.0, %v1164
        %v1166 = vpop.f32.mrb[0].mxu0
        %1167 = vmatprep.mubr.bf16.mxu0 0
        %1168 = vmatmul.mubr.bf16.gmra.mrb[0].mxu0 %v1019
        %v1169 = vpop.f32.mrb[0].mxu0
        %v1170 = vadd.f32 0.0, %v1169
        %v1171 = vpop.f32.mrb[0].mxu0
        %v1172 = vpop.f32.mrb[0].mxu0
        %v1173 = vadd.f32 0.0, %v1172
        %v1174 = vpop.f32.mrb[0].mxu0
        %1175 = vmatprep.mubr.bf16.mxu0 0
        %1176 = vmatmul.mubr.bf16.gmra.mrb[0].mxu0 %v1022
        %v1177 = vpop.f32.mrb[0].mxu0
        %v1178 = vadd.f32 0.0, %v1177
        %v1179 = vpop.f32.mrb[0].mxu0
        %v1180 = vpop.f32.mrb[0].mxu0
        %v1181 = vadd.f32 0.0, %v1180
        %v1182 = vpop.f32.mrb[0].mxu0
        %1183 = vmatprep.mubr.bf16.mxu0 0
        %1184 = vmatmul.mubr.bf16.gmra.mrb[0].mxu0 %v1025
        %v1185 = vpop.f32.mrb[0].mxu0
        %v1186 = vadd.f32 0.0, %v1185
        %v1187 = vpop.f32.mrb[0].mxu0
        %v1188 = vpop.f32.mrb[0].mxu0
        %v1189 = vadd.f32 0.0, %v1188
        %v1190 = vpop.f32.mrb[0].mxu0
        %1191 = vmatprep.mubr.bf16.mxu0 0
        %1192 = vmatmul.mubr.bf16.gmra.mrb[0].mxu0 %v1028
        %v1193 = vpop.f32.mrb[0].mxu0
        %v1194 = vadd.f32 0.0, %v1193
        %v1195 = vpop.f32.mrb[0].mxu0
        %v1196 = vpop.f32.mrb[0].mxu0
        %v1197 = vadd.f32 0.0, %v1196
        %v1198 = vpop.f32.mrb[0].mxu0
        %1199 = vmatprep.mubr.bf16.mxu0 0
        %1200 = vmatmul.mubr.bf16.gmra.mrb[0].mxu0 %v1031
        %v1201 = vpop.f32.mrb[0].mxu0
        %v1202 = vadd.f32 0.0, %v1201
        %v1203 = vpop.f32.mrb[0].mxu0
        %v1204 = vpop.f32.mrb[0].mxu0
        %v1205 = vadd.f32 0.0, %v1204
        %v1206 = vpop.f32.mrb[0].mxu0
        %1207 = vmatprep.mubr.bf16.mxu0 0
        %1208 = vmatmul.mubr.bf16.gmra.mrb[0].mxu0 %v1034
        %v1209 = vpop.f32.mrb[0].mxu0
        %v1210 = vadd.f32 0.0, %v1209
        %v1211 = vpop.f32.mrb[0].mxu0
        %v1212 = vpop.f32.mrb[0].mxu0
        %v1213 = vadd.f32 0.0, %v1212
        %v1214 = vpop.f32.mrb[0].mxu0
        %1215 = vdwg.mxu0
        %v1216 = vadd.f32 %v800, %v1074
        %v1217 = vadd.f32 %v803, %v1077
        %v1218 = vadd.f32 %v808, %v1082
        %v1219 = vadd.f32 %v811, %v1085
        %v1220 = vadd.f32 %v816, %v1090
        %v1221 = vadd.f32 %v819, %v1093
        %v1222 = vadd.f32 %v824, %v1098
        %v1223 = vadd.f32 %v827, %v1101
        %v1224 = vadd.f32 %v832, %v1106
        %v1225 = vadd.f32 %v835, %v1109
        %v1226 = vadd.f32 %v840, %v1114
        %v1227 = vadd.f32 %v843, %v1117
        %v1228 = vadd.f32 %v848, %v1122
        %v1229 = vadd.f32 %v851, %v1125
        %v1230 = vadd.f32 %v856, %v1130
        %v1231 = vadd.f32 %v859, %v1133
        %v1232 = vadd.f32 %v864, %v1138
        %v1233 = vadd.f32 %v867, %v1141
        %v1234 = vadd.f32 %v872, %v1146
        %v1235 = vadd.f32 %v875, %v1149
        %v1236 = vadd.f32 %v880, %v1154
        %v1237 = vadd.f32 %v883, %v1157
        %v1238 = vadd.f32 %v888, %v1162
        %v1239 = vadd.f32 %v891, %v1165
        %v1240 = vadd.f32 %v896, %v1170
        %v1241 = vadd.f32 %v899, %v1173
        %v1242 = vadd.f32 %v904, %v1178
        %v1243 = vadd.f32 %v907, %v1181
        %v1244 = vadd.f32 %v912, %v1186
        %v1245 = vadd.f32 %v915, %v1189
        %v1246 = vadd.f32 %v920, %v1194
        %v1247 = vadd.f32 %v923, %v1197
        %v1248 = vadd.f32 %v928, %v1202
        %v1249 = vadd.f32 %v931, %v1205
        %v1250 = vadd.f32 %v936, %v1210
        %v1251 = vadd.f32 %v939, %v1213
        %s1252 = scalar_lea.vmem %s1, 6
        %v1253 = vld [vmem:[%s1252] sm:$0x3]
        %v1256 = vunpack.c.l.b16 %v241
        %v1257 = vunpack.c.l.b16 %v242
        %v1258 = vpack.c.b16 %v1256, %v321
        %v1259 = vpack.c.b16 %v1257, %v1257
        %v1260 = vrot.slane %v1258, 1
        %v1261 = vsel %vm944, %v978, %v1260
        %v1262 = vrot.slane %v1259, 1
        %v1263 = vsel %vm944, %v1260, %v1262
        %v1265 = vsel %vm490, %v1261, 0
        %v1268 = vsel %vm490, %v1263, 0
        %v1271 = vsel %vm545, %v1253, 0
        %1273 = vmatprep.subr.bf16.mxu0 0
        %1274 = vmatpush1.bf16.msra.mxu0 %v1271
        %1275 = vmatprep.subr.bf16.mxu0 0
        %1276 = vmatpush1.bf16.msra.mxu0 0
        %1277 = vmatprep.subr.bf16.mxu0 0
        %1278 = vmatpush1.bf16.msra.mxu0 0
        %1279 = vmatprep.subr.bf16.mxu0 0
        %1280 = vmatpush1.bf16.msra.mxu0 0
        %1281 = vmatprep.subr.bf16.mxu0 0
        %1282 = vmatpush1.bf16.msra.mxu0 0
        %1283 = vmatprep.subr.bf16.mxu0 0
        %1284 = vmatpush1.bf16.msra.mxu0 0
        %1285 = vmatprep.subr.bf16.mxu0 0
        %1286 = vmatpush1.bf16.msra.mxu0 0
        %1287 = vmatprep.subr.bf16.mxu0 0
        %1288 = vmatpush1.bf16.msra.mxu0 0
        %1289 = vmatprep.subr.bf16.mxu0 0
        %1290 = vmatpush1.bf16.msra.mxu0 0
        %1291 = vmatprep.subr.bf16.mxu0 0
        %1292 = vmatpush1.bf16.msra.mxu0 0
        %1293 = vmatprep.subr.bf16.mxu0 0
        %1294 = vmatpush1.bf16.msra.mxu0 0
        %1295 = vmatprep.subr.bf16.mxu0 0
        %1296 = vmatpush1.bf16.msra.mxu0 0
        %1297 = vmatprep.subr.bf16.mxu0 0
        %1298 = vmatpush1.bf16.msra.mxu0 0
        %1299 = vmatprep.subr.bf16.mxu0 0
        %1300 = vmatpush1.bf16.msra.mxu0 0
        %1301 = vmatprep.subr.bf16.mxu0 0
        %1302 = vmatpush1.bf16.msra.mxu0 0
        %1303 = vmatprep.subr.bf16.mxu0 0
        %1304 = vmatpush1.bf16.msra.mxu0 0
        %1305 = vmatprep.mubr.bf16.mxu0 0
        %1306 = vmatmul.mubr.bf16.gmra.mrb[0].mxu0 %v986
        %v1307 = vpop.f32.mrb[0].mxu0
        %v1308 = vadd.f32 0.0, %v1307
        %v1309 = vpop.f32.mrb[0].mxu0
        %v1310 = vpop.f32.mrb[0].mxu0
        %v1311 = vadd.f32 0.0, %v1310
        %v1312 = vpop.f32.mrb[0].mxu0
        %1313 = vmatprep.mubr.bf16.mxu0 0
        %1314 = vmatmul.mubr.bf16.gmra.mrb[0].mxu0 %v989
        %v1315 = vpop.f32.mrb[0].mxu0
        %v1316 = vadd.f32 0.0, %v1315
        %v1317 = vpop.f32.mrb[0].mxu0
        %v1318 = vpop.f32.mrb[0].mxu0
        %v1319 = vadd.f32 0.0, %v1318
        %v1320 = vpop.f32.mrb[0].mxu0
        %1321 = vmatprep.mubr.bf16.mxu0 0
        %1322 = vmatmul.mubr.bf16.gmra.mrb[0].mxu0 %v992
        %v1323 = vpop.f32.mrb[0].mxu0
        %v1324 = vadd.f32 0.0, %v1323
        %v1325 = vpop.f32.mrb[0].mxu0
        %v1326 = vpop.f32.mrb[0].mxu0
        %v1327 = vadd.f32 0.0, %v1326
        %v1328 = vpop.f32.mrb[0].mxu0
        %1329 = vmatprep.mubr.bf16.mxu0 0
        %1330 = vmatmul.mubr.bf16.gmra.mrb[0].mxu0 %v995
        %v1331 = vpop.f32.mrb[0].mxu0
        %v1332 = vadd.f32 0.0, %v1331
        %v1333 = vpop.f32.mrb[0].mxu0
        %v1334 = vpop.f32.mrb[0].mxu0
        %v1335 = vadd.f32 0.0, %v1334
        %v1336 = vpop.f32.mrb[0].mxu0
        %1337 = vmatprep.mubr.bf16.mxu0 0
        %1338 = vmatmul.mubr.bf16.gmra.mrb[0].mxu0 %v998
        %v1339 = vpop.f32.mrb[0].mxu0
        %v1340 = vadd.f32 0.0, %v1339
        %v1341 = vpop.f32.mrb[0].mxu0
        %v1342 = vpop.f32.mrb[0].mxu0
        %v1343 = vadd.f32 0.0, %v1342
        %v1344 = vpop.f32.mrb[0].mxu0
        %1345 = vmatprep.mubr.bf16.mxu0 0
        %1346 = vmatmul.mubr.bf16.gmra.mrb[0].mxu0 %v1001
        %v1347 = vpop.f32.mrb[0].mxu0
        %v1348 = vadd.f32 0.0, %v1347
        %v1349 = vpop.f32.mrb[0].mxu0
        %v1350 = vpop.f32.mrb[0].mxu0
        %v1351 = vadd.f32 0.0, %v1350
        %v1352 = vpop.f32.mrb[0].mxu0
        %1353 = vmatprep.mubr.bf16.mxu0 0
        %1354 = vmatmul.mubr.bf16.gmra.mrb[0].mxu0 %v1004
        %v1355 = vpop.f32.mrb[0].mxu0
        %v1356 = vadd.f32 0.0, %v1355
        %v1357 = vpop.f32.mrb[0].mxu0
        %v1358 = vpop.f32.mrb[0].mxu0
        %v1359 = vadd.f32 0.0, %v1358
        %v1360 = vpop.f32.mrb[0].mxu0
        %1361 = vmatprep.mubr.bf16.mxu0 0
        %1362 = vmatmul.mubr.bf16.gmra.mrb[0].mxu0 %v1007
        %v1363 = vpop.f32.mrb[0].mxu0
        %v1364 = vadd.f32 0.0, %v1363
        %v1365 = vpop.f32.mrb[0].mxu0
        %v1366 = vpop.f32.mrb[0].mxu0
        %v1367 = vadd.f32 0.0, %v1366
        %v1368 = vpop.f32.mrb[0].mxu0
        %1369 = vmatprep.mubr.bf16.mxu0 0
        %1370 = vmatmul.mubr.bf16.gmra.mrb[0].mxu0 %v1010
        %v1371 = vpop.f32.mrb[0].mxu0
        %v1372 = vadd.f32 0.0, %v1371
        %v1373 = vpop.f32.mrb[0].mxu0
        %v1374 = vpop.f32.mrb[0].mxu0
        %v1375 = vadd.f32 0.0, %v1374
        %v1376 = vpop.f32.mrb[0].mxu0
        %1377 = vmatprep.mubr.bf16.mxu0 0
        %1378 = vmatmul.mubr.bf16.gmra.mrb[0].mxu0 %v1013
        %v1379 = vpop.f32.mrb[0].mxu0
        %v1380 = vadd.f32 0.0, %v1379
        %v1381 = vpop.f32.mrb[0].mxu0
        %v1382 = vpop.f32.mrb[0].mxu0
        %v1383 = vadd.f32 0.0, %v1382
        %v1384 = vpop.f32.mrb[0].mxu0
        %1385 = vmatprep.mubr.bf16.mxu0 0
        %1386 = vmatmul.mubr.bf16.gmra.mrb[0].mxu0 %v1016
        %v1387 = vpop.f32.mrb[0].mxu0
        %v1388 = vadd.f32 0.0, %v1387
        %v1389 = vpop.f32.mrb[0].mxu0
        %v1390 = vpop.f32.mrb[0].mxu0
        %v1391 = vadd.f32 0.0, %v1390
        %v1392 = vpop.f32.mrb[0].mxu0
        %1393 = vmatprep.mubr.bf16.mxu0 0
        %1394 = vmatmul.mubr.bf16.gmra.mrb[0].mxu0 %v1019
        %v1395 = vpop.f32.mrb[0].mxu0
        %v1396 = vadd.f32 0.0, %v1395
        %v1397 = vpop.f32.mrb[0].mxu0
        %v1398 = vpop.f32.mrb[0].mxu0
        %v1399 = vadd.f32 0.0, %v1398
        %v1400 = vpop.f32.mrb[0].mxu0
        %1401 = vmatprep.mubr.bf16.mxu0 0
        %1402 = vmatmul.mubr.bf16.gmra.mrb[0].mxu0 %v1022
        %v1403 = vpop.f32.mrb[0].mxu0
        %v1404 = vadd.f32 0.0, %v1403
        %v1405 = vpop.f32.mrb[0].mxu0
        %v1406 = vpop.f32.mrb[0].mxu0
        %v1407 = vadd.f32 0.0, %v1406
        %v1408 = vpop.f32.mrb[0].mxu0
        %1409 = vmatprep.mubr.bf16.mxu0 0
        %1410 = vmatmul.mubr.bf16.gmra.mrb[0].mxu0 %v1025
        %v1411 = vpop.f32.mrb[0].mxu0
        %v1412 = vadd.f32 0.0, %v1411
        %v1413 = vpop.f32.mrb[0].mxu0
        %v1414 = vpop.f32.mrb[0].mxu0
        %v1415 = vadd.f32 0.0, %v1414
        %v1416 = vpop.f32.mrb[0].mxu0
        %1417 = vmatprep.mubr.bf16.mxu0 0
        %1418 = vmatmul.mubr.bf16.gmra.mrb[0].mxu0 %v1028
        %v1419 = vpop.f32.mrb[0].mxu0
        %v1420 = vadd.f32 0.0, %v1419
        %v1421 = vpop.f32.mrb[0].mxu0
        %v1422 = vpop.f32.mrb[0].mxu0
        %v1423 = vadd.f32 0.0, %v1422
        %v1424 = vpop.f32.mrb[0].mxu0
        %1425 = vmatprep.mubr.bf16.mxu0 0
        %1426 = vmatmul.mubr.bf16.gmra.mrb[0].mxu0 %v1031
        %v1427 = vpop.f32.mrb[0].mxu0
        %v1428 = vadd.f32 0.0, %v1427
        %v1429 = vpop.f32.mrb[0].mxu0
        %v1430 = vpop.f32.mrb[0].mxu0
        %v1431 = vadd.f32 0.0, %v1430
        %v1432 = vpop.f32.mrb[0].mxu0
        %1433 = vmatprep.mubr.bf16.mxu0 0
        %1434 = vmatmul.mubr.bf16.gmra.mrb[0].mxu0 %v1265
        %v1435 = vpop.f32.mrb[0].mxu0
        %v1436 = vadd.f32 0.0, %v1435
        %v1437 = vpop.f32.mrb[0].mxu0
        %v1438 = vpop.f32.mrb[0].mxu0
        %v1439 = vadd.f32 0.0, %v1438
        %v1440 = vpop.f32.mrb[0].mxu0
        %1441 = vmatprep.mubr.bf16.mxu0 0
        %1442 = vmatmul.mubr.bf16.gmra.mrb[0].mxu0 %v1268
        %v1443 = vpop.f32.mrb[0].mxu0
        %v1444 = vadd.f32 0.0, %v1443
        %v1445 = vpop.f32.mrb[0].mxu0
        %v1446 = vpop.f32.mrb[0].mxu0
        %v1447 = vadd.f32 0.0, %v1446
        %v1448 = vpop.f32.mrb[0].mxu0
        %1449 = vdwg.mxu0
        %v1450 = vadd.f32 %v1216, %v1308
        %v1451 = vadd.f32 %v1217, %v1311
        %v1452 = vadd.f32 %v1218, %v1316
        %v1453 = vadd.f32 %v1219, %v1319
        %v1454 = vadd.f32 %v1220, %v1324
        %v1455 = vadd.f32 %v1221, %v1327
        %v1456 = vadd.f32 %v1222, %v1332
        %v1457 = vadd.f32 %v1223, %v1335
        %v1458 = vadd.f32 %v1224, %v1340
        %v1459 = vadd.f32 %v1225, %v1343
        %v1460 = vadd.f32 %v1226, %v1348
        %v1461 = vadd.f32 %v1227, %v1351
        %v1462 = vadd.f32 %v1228, %v1356
        %v1463 = vadd.f32 %v1229, %v1359
        %v1464 = vadd.f32 %v1230, %v1364
        %v1465 = vadd.f32 %v1231, %v1367
        %v1466 = vadd.f32 %v1232, %v1372
        %v1467 = vadd.f32 %v1233, %v1375
        %v1468 = vadd.f32 %v1234, %v1380
        %v1469 = vadd.f32 %v1235, %v1383
        %v1470 = vadd.f32 %v1236, %v1388
        %v1471 = vadd.f32 %v1237, %v1391
        %v1472 = vadd.f32 %v1238, %v1396
        %v1473 = vadd.f32 %v1239, %v1399
        %v1474 = vadd.f32 %v1240, %v1404
        %v1475 = vadd.f32 %v1241, %v1407
        %v1476 = vadd.f32 %v1242, %v1412
        %v1477 = vadd.f32 %v1243, %v1415
        %v1478 = vadd.f32 %v1244, %v1420
        %v1479 = vadd.f32 %v1245, %v1423
        %v1480 = vadd.f32 %v1246, %v1428
        %v1481 = vadd.f32 %v1247, %v1431
        %v1482 = vadd.f32 %v1248, %v1436
        %v1483 = vadd.f32 %v1249, %v1439
        %v1484 = vadd.f32 %v1250, %v1444
        %v1485 = vadd.f32 %v1251, %v1447
        %s1486 = scalar_lea.vmem %s1, 8
        %v1487 = vld [vmem:[%s1486] sm:$0x3]
        %vm1488 = vsmask.f32 6400
        %v1489 = vrot.slane %v354, 1
        %v1490 = vrot.slane %v350, 2
        %v1491 = vor.u32 %v1489, %v1490
        %v1492 = vrot.slane %v362, 1
        %v1493 = vrot.slane %v358, 2
        %v1494 = vor.u32 %v1492, %v1493
        %v1495 = vsel %vm1488, %v1491, %v1494
        %v1496 = vrot.slane %v370, 1
        %v1497 = vrot.slane %v366, 2
        %v1498 = vor.u32 %v1496, %v1497
        %v1499 = vsel %vm1488, %v1494, %v1498
        %v1500 = vrot.slane %v378, 1
        %v1501 = vrot.slane %v374, 2
        %v1502 = vor.u32 %v1500, %v1501
        %v1503 = vsel %vm1488, %v1498, %v1502
        %v1504 = vrot.slane %v386, 1
        %v1505 = vrot.slane %v382, 2
        %v1506 = vor.u32 %v1504, %v1505
        %v1507 = vsel %vm1488, %v1502, %v1506
        %v1508 = vrot.slane %v394, 1
        %v1509 = vrot.slane %v390, 2
        %v1510 = vor.u32 %v1508, %v1509
        %v1511 = vsel %vm1488, %v1506, %v1510
        %v1512 = vrot.slane %v402, 1
        %v1513 = vrot.slane %v398, 2
        %v1514 = vor.u32 %v1512, %v1513
        %v1515 = vsel %vm1488, %v1510, %v1514
        %v1516 = vrot.slane %v410, 1
        %v1517 = vrot.slane %v406, 2
        %v1518 = vor.u32 %v1516, %v1517
        %v1519 = vsel %vm1488, %v1514, %v1518
        %v1520 = vrot.slane %v418, 1
        %v1521 = vrot.slane %v414, 2
        %v1522 = vor.u32 %v1520, %v1521
        %v1523 = vsel %vm1488, %v1518, %v1522
        %v1524 = vrot.slane %v426, 1
        %v1525 = vrot.slane %v422, 2
        %v1526 = vor.u32 %v1524, %v1525
        %v1527 = vsel %vm1488, %v1522, %v1526
        %v1528 = vrot.slane %v434, 1
        %v1529 = vrot.slane %v430, 2
        %v1530 = vor.u32 %v1528, %v1529
        %v1531 = vsel %vm1488, %v1526, %v1530
        %v1532 = vrot.slane %v442, 1
        %v1533 = vrot.slane %v438, 2
        %v1534 = vor.u32 %v1532, %v1533
        %v1535 = vsel %vm1488, %v1530, %v1534
        %v1536 = vrot.slane %v450, 1
        %v1537 = vrot.slane %v446, 2
        %v1538 = vor.u32 %v1536, %v1537
        %v1539 = vsel %vm1488, %v1534, %v1538
        %v1540 = vrot.slane %v458, 1
        %v1541 = vrot.slane %v454, 2
        %v1542 = vor.u32 %v1540, %v1541
        %v1543 = vsel %vm1488, %v1538, %v1542
        %v1544 = vrot.slane %v466, 1
        %v1545 = vrot.slane %v462, 2
        %v1546 = vor.u32 %v1544, %v1545
        %v1547 = vsel %vm1488, %v1542, %v1546
        %v1548 = vrot.slane %v474, 1
        %v1549 = vrot.slane %v470, 2
        %v1550 = vor.u32 %v1548, %v1549
        %v1551 = vsel %vm1488, %v1546, %v1550
        %v1552 = vrot.slane %v482, 1
        %v1553 = vrot.slane %v478, 2
        %v1554 = vor.u32 %v1552, %v1553
        %v1555 = vsel %vm1488, %v1550, %v1554
        %v1557 = vshrl.u32 %v1258, 16
        %v1559 = vrot.slane %v1557, 1
        %v1560 = vshll.u32 %v1258, 16
        %v1562 = vrot.slane %v1560, 2
        %v1563 = vor.u32 %v1559, %v1562
        %v1564 = vsel %vm1488, %v1554, %v1563
        %v1566 = vshrl.u32 %v1259, 16
        %v1568 = vrot.slane %v1566, 1
        %v1569 = vshll.u32 %v1259, 16
        %v1571 = vrot.slane %v1569, 2
        %v1572 = vor.u32 %v1568, %v1571
        %v1573 = vsel %vm1488, %v1563, %v1572
        %v1575 = vsel %vm490, %v1495, 0
        %v1578 = vsel %vm490, %v1499, 0
        %v1581 = vsel %vm490, %v1503, 0
        %v1584 = vsel %vm490, %v1507, 0
        %v1587 = vsel %vm490, %v1511, 0
        %v1590 = vsel %vm490, %v1515, 0
        %v1593 = vsel %vm490, %v1519, 0
        %v1596 = vsel %vm490, %v1523, 0
        %v1599 = vsel %vm490, %v1527, 0
        %v1602 = vsel %vm490, %v1531, 0
        %v1605 = vsel %vm490, %v1535, 0
        %v1608 = vsel %vm490, %v1539, 0
        %v1611 = vsel %vm490, %v1543, 0
        %v1614 = vsel %vm490, %v1547, 0
        %v1617 = vsel %vm490, %v1551, 0
        %v1620 = vsel %vm490, %v1555, 0
        %v1623 = vsel %vm490, %v1564, 0
        %v1626 = vsel %vm490, %v1573, 0
        %v1629 = vsel %vm545, %v1487, 0
        %1631 = vmatprep.subr.bf16.mxu0 0
        %1632 = vmatpush1.bf16.msra.mxu0 %v1629
        %1633 = vmatprep.subr.bf16.mxu0 0
        %1634 = vmatpush1.bf16.msra.mxu0 0
        %1635 = vmatprep.subr.bf16.mxu0 0
        %1636 = vmatpush1.bf16.msra.mxu0 0
        %1637 = vmatprep.subr.bf16.mxu0 0
        %1638 = vmatpush1.bf16.msra.mxu0 0
        %1639 = vmatprep.subr.bf16.mxu0 0
        %1640 = vmatpush1.bf16.msra.mxu0 0
        %1641 = vmatprep.subr.bf16.mxu0 0
        %1642 = vmatpush1.bf16.msra.mxu0 0
        %1643 = vmatprep.subr.bf16.mxu0 0
        %1644 = vmatpush1.bf16.msra.mxu0 0
        %1645 = vmatprep.subr.bf16.mxu0 0
        %1646 = vmatpush1.bf16.msra.mxu0 0
        %1647 = vmatprep.subr.bf16.mxu0 0
        %1648 = vmatpush1.bf16.msra.mxu0 0
        %1649 = vmatprep.subr.bf16.mxu0 0
        %1650 = vmatpush1.bf16.msra.mxu0 0
        %1651 = vmatprep.subr.bf16.mxu0 0
        %1652 = vmatpush1.bf16.msra.mxu0 0
        %1653 = vmatprep.subr.bf16.mxu0 0
        %1654 = vmatpush1.bf16.msra.mxu0 0
        %1655 = vmatprep.subr.bf16.mxu0 0
        %1656 = vmatpush1.bf16.msra.mxu0 0
        %1657 = vmatprep.subr.bf16.mxu0 0
        %1658 = vmatpush1.bf16.msra.mxu0 0
        %1659 = vmatprep.subr.bf16.mxu0 0
        %1660 = vmatpush1.bf16.msra.mxu0 0
        %1661 = vmatprep.subr.bf16.mxu0 0
        %1662 = vmatpush1.bf16.msra.mxu0 0
        %1663 = vmatprep.mubr.bf16.mxu0 0
        %1664 = vmatmul.mubr.bf16.gmra.mrb[0].mxu0 %v1575
        %v1665 = vpop.f32.mrb[0].mxu0
        %v1666 = vadd.f32 0.0, %v1665
        %v1667 = vpop.f32.mrb[0].mxu0
        %v1668 = vpop.f32.mrb[0].mxu0
        %v1669 = vadd.f32 0.0, %v1668
        %v1670 = vpop.f32.mrb[0].mxu0
        %1671 = vmatprep.mubr.bf16.mxu0 0
        %1672 = vmatmul.mubr.bf16.gmra.mrb[0].mxu0 %v1578
        %v1673 = vpop.f32.mrb[0].mxu0
        %v1674 = vadd.f32 0.0, %v1673
        %v1675 = vpop.f32.mrb[0].mxu0
        %v1676 = vpop.f32.mrb[0].mxu0
        %v1677 = vadd.f32 0.0, %v1676
        %v1678 = vpop.f32.mrb[0].mxu0
        %1679 = vmatprep.mubr.bf16.mxu0 0
        %1680 = vmatmul.mubr.bf16.gmra.mrb[0].mxu0 %v1581
        %v1681 = vpop.f32.mrb[0].mxu0
        %v1682 = vadd.f32 0.0, %v1681
        %v1683 = vpop.f32.mrb[0].mxu0
        %v1684 = vpop.f32.mrb[0].mxu0
        %v1685 = vadd.f32 0.0, %v1684
        %v1686 = vpop.f32.mrb[0].mxu0
        %1687 = vmatprep.mubr.bf16.mxu0 0
        %1688 = vmatmul.mubr.bf16.gmra.mrb[0].mxu0 %v1584
        %v1689 = vpop.f32.mrb[0].mxu0
        %v1690 = vadd.f32 0.0, %v1689
        %v1691 = vpop.f32.mrb[0].mxu0
        %v1692 = vpop.f32.mrb[0].mxu0
        %v1693 = vadd.f32 0.0, %v1692
        %v1694 = vpop.f32.mrb[0].mxu0
        %1695 = vmatprep.mubr.bf16.mxu0 0
        %1696 = vmatmul.mubr.bf16.gmra.mrb[0].mxu0 %v1587
        %v1697 = vpop.f32.mrb[0].mxu0
        %v1698 = vadd.f32 0.0, %v1697
        %v1699 = vpop.f32.mrb[0].mxu0
        %v1700 = vpop.f32.mrb[0].mxu0
        %v1701 = vadd.f32 0.0, %v1700
        %v1702 = vpop.f32.mrb[0].mxu0
        %1703 = vmatprep.mubr.bf16.mxu0 0
        %1704 = vmatmul.mubr.bf16.gmra.mrb[0].mxu0 %v1590
        %v1705 = vpop.f32.mrb[0].mxu0
        %v1706 = vadd.f32 0.0, %v1705
        %v1707 = vpop.f32.mrb[0].mxu0
        %v1708 = vpop.f32.mrb[0].mxu0
        %v1709 = vadd.f32 0.0, %v1708
        %v1710 = vpop.f32.mrb[0].mxu0
        %1711 = vmatprep.mubr.bf16.mxu0 0
        %1712 = vmatmul.mubr.bf16.gmra.mrb[0].mxu0 %v1593
        %v1713 = vpop.f32.mrb[0].mxu0
        %v1714 = vadd.f32 0.0, %v1713
        %v1715 = vpop.f32.mrb[0].mxu0
        %v1716 = vpop.f32.mrb[0].mxu0
        %v1717 = vadd.f32 0.0, %v1716
        %v1718 = vpop.f32.mrb[0].mxu0
        %1719 = vmatprep.mubr.bf16.mxu0 0
        %1720 = vmatmul.mubr.bf16.gmra.mrb[0].mxu0 %v1596
        %v1721 = vpop.f32.mrb[0].mxu0
        %v1722 = vadd.f32 0.0, %v1721
        %v1723 = vpop.f32.mrb[0].mxu0
        %v1724 = vpop.f32.mrb[0].mxu0
        %v1725 = vadd.f32 0.0, %v1724
        %v1726 = vpop.f32.mrb[0].mxu0
        %1727 = vmatprep.mubr.bf16.mxu0 0
        %1728 = vmatmul.mubr.bf16.gmra.mrb[0].mxu0 %v1599
        %v1729 = vpop.f32.mrb[0].mxu0
        %v1730 = vadd.f32 0.0, %v1729
        %v1731 = vpop.f32.mrb[0].mxu0
        %v1732 = vpop.f32.mrb[0].mxu0
        %v1733 = vadd.f32 0.0, %v1732
        %v1734 = vpop.f32.mrb[0].mxu0
        %1735 = vmatprep.mubr.bf16.mxu0 0
        %1736 = vmatmul.mubr.bf16.gmra.mrb[0].mxu0 %v1602
        %v1737 = vpop.f32.mrb[0].mxu0
        %v1738 = vadd.f32 0.0, %v1737
        %v1739 = vpop.f32.mrb[0].mxu0
        %v1740 = vpop.f32.mrb[0].mxu0
        %v1741 = vadd.f32 0.0, %v1740
        %v1742 = vpop.f32.mrb[0].mxu0
        %1743 = vmatprep.mubr.bf16.mxu0 0
        %1744 = vmatmul.mubr.bf16.gmra.mrb[0].mxu0 %v1605
        %v1745 = vpop.f32.mrb[0].mxu0
        %v1746 = vadd.f32 0.0, %v1745
        %v1747 = vpop.f32.mrb[0].mxu0
        %v1748 = vpop.f32.mrb[0].mxu0
        %v1749 = vadd.f32 0.0, %v1748
        %v1750 = vpop.f32.mrb[0].mxu0
        %1751 = vmatprep.mubr.bf16.mxu0 0
        %1752 = vmatmul.mubr.bf16.gmra.mrb[0].mxu0 %v1608
        %v1753 = vpop.f32.mrb[0].mxu0
        %v1754 = vadd.f32 0.0, %v1753
        %v1755 = vpop.f32.mrb[0].mxu0
        %v1756 = vpop.f32.mrb[0].mxu0
        %v1757 = vadd.f32 0.0, %v1756
        %v1758 = vpop.f32.mrb[0].mxu0
        %1759 = vmatprep.mubr.bf16.mxu0 0
        %1760 = vmatmul.mubr.bf16.gmra.mrb[0].mxu0 %v1611
        %v1761 = vpop.f32.mrb[0].mxu0
        %v1762 = vadd.f32 0.0, %v1761
        %v1763 = vpop.f32.mrb[0].mxu0
        %v1764 = vpop.f32.mrb[0].mxu0
        %v1765 = vadd.f32 0.0, %v1764
        %v1766 = vpop.f32.mrb[0].mxu0
        %1767 = vmatprep.mubr.bf16.mxu0 0
        %1768 = vmatmul.mubr.bf16.gmra.mrb[0].mxu0 %v1614
        %v1769 = vpop.f32.mrb[0].mxu0
        %v1770 = vadd.f32 0.0, %v1769
        %v1771 = vpop.f32.mrb[0].mxu0
        %v1772 = vpop.f32.mrb[0].mxu0
        %v1773 = vadd.f32 0.0, %v1772
        %v1774 = vpop.f32.mrb[0].mxu0
        %1775 = vmatprep.mubr.bf16.mxu0 0
        %1776 = vmatmul.mubr.bf16.gmra.mrb[0].mxu0 %v1617
        %v1777 = vpop.f32.mrb[0].mxu0
        %v1778 = vadd.f32 0.0, %v1777
        %v1779 = vpop.f32.mrb[0].mxu0
        %v1780 = vpop.f32.mrb[0].mxu0
        %v1781 = vadd.f32 0.0, %v1780
        %v1782 = vpop.f32.mrb[0].mxu0
        %1783 = vmatprep.mubr.bf16.mxu0 0
        %1784 = vmatmul.mubr.bf16.gmra.mrb[0].mxu0 %v1620
        %v1785 = vpop.f32.mrb[0].mxu0
        %v1786 = vadd.f32 0.0, %v1785
        %v1787 = vpop.f32.mrb[0].mxu0
        %v1788 = vpop.f32.mrb[0].mxu0
        %v1789 = vadd.f32 0.0, %v1788
        %v1790 = vpop.f32.mrb[0].mxu0
        %1791 = vmatprep.mubr.bf16.mxu0 0
        %1792 = vmatmul.mubr.bf16.gmra.mrb[0].mxu0 %v1623
        %v1793 = vpop.f32.mrb[0].mxu0
        %v1794 = vadd.f32 0.0, %v1793
        %v1795 = vpop.f32.mrb[0].mxu0
        %v1796 = vpop.f32.mrb[0].mxu0
        %v1797 = vadd.f32 0.0, %v1796
        %v1798 = vpop.f32.mrb[0].mxu0
        %1799 = vmatprep.mubr.bf16.mxu0 0
        %1800 = vmatmul.mubr.bf16.gmra.mrb[0].mxu0 %v1626
        %v1801 = vpop.f32.mrb[0].mxu0
        %v1802 = vadd.f32 0.0, %v1801
        %v1803 = vpop.f32.mrb[0].mxu0
        %v1804 = vpop.f32.mrb[0].mxu0
        %v1805 = vadd.f32 0.0, %v1804
        %v1806 = vpop.f32.mrb[0].mxu0
        %1807 = vdwg.mxu0
        %v1808 = vadd.f32 %v1450, %v1666
        %v1809 = vadd.f32 %v1451, %v1669
        %v1810 = vadd.f32 %v1452, %v1674
        %v1811 = vadd.f32 %v1453, %v1677
        %v1812 = vadd.f32 %v1454, %v1682
        %v1813 = vadd.f32 %v1455, %v1685
        %v1814 = vadd.f32 %v1456, %v1690
        %v1815 = vadd.f32 %v1457, %v1693
        %v1816 = vadd.f32 %v1458, %v1698
        %v1817 = vadd.f32 %v1459, %v1701
        %v1818 = vadd.f32 %v1460, %v1706
        %v1819 = vadd.f32 %v1461, %v1709
        %v1820 = vadd.f32 %v1462, %v1714
        %v1821 = vadd.f32 %v1463, %v1717
        %v1822 = vadd.f32 %v1464, %v1722
        %v1823 = vadd.f32 %v1465, %v1725
        %v1824 = vadd.f32 %v1466, %v1730
        %v1825 = vadd.f32 %v1467, %v1733
        %v1826 = vadd.f32 %v1468, %v1738
        %v1827 = vadd.f32 %v1469, %v1741
        %v1828 = vadd.f32 %v1470, %v1746
        %v1829 = vadd.f32 %v1471, %v1749
        %v1830 = vadd.f32 %v1472, %v1754
        %v1831 = vadd.f32 %v1473, %v1757
        %v1832 = vadd.f32 %v1474, %v1762
        %v1833 = vadd.f32 %v1475, %v1765
        %v1834 = vadd.f32 %v1476, %v1770
        %v1835 = vadd.f32 %v1477, %v1773
        %v1836 = vadd.f32 %v1478, %v1778
        %v1837 = vadd.f32 %v1479, %v1781
        %v1838 = vadd.f32 %v1480, %v1786
        %v1839 = vadd.f32 %v1481, %v1789
        %v1840 = vadd.f32 %v1482, %v1794
        %v1841 = vadd.f32 %v1483, %v1797
        %v1842 = vadd.f32 %v1484, %v1802
        %v1843 = vadd.f32 %v1485, %v1805
        %s1844 = scalar_lea.vmem %s1, 10
        %v1845 = vld [vmem:[%s1844] sm:$0x3]
        %vm1846 = vcmask 1045504
        %v1847 = vrot.slane %v323, 2
        %v1848 = vrot.slane %v324, 2
        %v1849 = vsel %vm1846, %v1847, %v1848
        %v1850 = vrot.slane %v325, 2
        %v1851 = vsel %vm1846, %v1848, %v1850
        %v1852 = vrot.slane %v326, 2
        %v1853 = vsel %vm1846, %v1850, %v1852
        %v1854 = vrot.slane %v327, 2
        %v1855 = vsel %vm1846, %v1852, %v1854
        %v1856 = vrot.slane %v328, 2
        %v1857 = vsel %vm1846, %v1854, %v1856
        %v1858 = vrot.slane %v329, 2
        %v1859 = vsel %vm1846, %v1856, %v1858
        %v1860 = vrot.slane %v330, 2
        %v1861 = vsel %vm1846, %v1858, %v1860
        %v1862 = vrot.slane %v331, 2
        %v1863 = vsel %vm1846, %v1860, %v1862
        %v1864 = vrot.slane %v332, 2
        %v1865 = vsel %vm1846, %v1862, %v1864
        %v1866 = vrot.slane %v333, 2
        %v1867 = vsel %vm1846, %v1864, %v1866
        %v1868 = vrot.slane %v334, 2
        %v1869 = vsel %vm1846, %v1866, %v1868
        %v1870 = vrot.slane %v335, 2
        %v1871 = vsel %vm1846, %v1868, %v1870
        %v1872 = vrot.slane %v336, 2
        %v1873 = vsel %vm1846, %v1870, %v1872
        %v1874 = vrot.slane %v337, 2
        %v1875 = vsel %vm1846, %v1872, %v1874
        %v1876 = vrot.slane %v338, 2
        %v1877 = vsel %vm1846, %v1874, %v1876
        %v1878 = vrot.slane %v339, 2
        %v1879 = vsel %vm1846, %v1876, %v1878
        %v1880 = vrot.slane %v1258, 2
        %v1881 = vsel %vm1846, %v1878, %v1880
        %v1882 = vrot.slane %v1259, 2
        %v1883 = vsel %vm1846, %v1880, %v1882
        %v1885 = vsel %vm490, %v1849, 0
        %v1888 = vsel %vm490, %v1851, 0
        %v1891 = vsel %vm490, %v1853, 0
        %v1894 = vsel %vm490, %v1855, 0
        %v1897 = vsel %vm490, %v1857, 0
        %v1900 = vsel %vm490, %v1859, 0
        %v1903 = vsel %vm490, %v1861, 0
        %v1906 = vsel %vm490, %v1863, 0
        %v1909 = vsel %vm490, %v1865, 0
        %v1912 = vsel %vm490, %v1867, 0
        %v1915 = vsel %vm490, %v1869, 0
        %v1918 = vsel %vm490, %v1871, 0
        %v1921 = vsel %vm490, %v1873, 0
        %v1924 = vsel %vm490, %v1875, 0
        %v1927 = vsel %vm490, %v1877, 0
        %v1930 = vsel %vm490, %v1879, 0
        %v1933 = vsel %vm490, %v1881, 0
        %v1936 = vsel %vm490, %v1883, 0
        %v1939 = vsel %vm545, %v1845, 0
        %1941 = vmatprep.subr.bf16.mxu0 0
        %1942 = vmatpush1.bf16.msra.mxu0 %v1939
        %1943 = vmatprep.subr.bf16.mxu0 0
        %1944 = vmatpush1.bf16.msra.mxu0 0
        %1945 = vmatprep.subr.bf16.mxu0 0
        %1946 = vmatpush1.bf16.msra.mxu0 0
        %1947 = vmatprep.subr.bf16.mxu0 0
        %1948 = vmatpush1.bf16.msra.mxu0 0
        %1949 = vmatprep.subr.bf16.mxu0 0
        %1950 = vmatpush1.bf16.msra.mxu0 0
        %1951 = vmatprep.subr.bf16.mxu0 0
        %1952 = vmatpush1.bf16.msra.mxu0 0
        %1953 = vmatprep.subr.bf16.mxu0 0
        %1954 = vmatpush1.bf16.msra.mxu0 0
        %1955 = vmatprep.subr.bf16.mxu0 0
        %1956 = vmatpush1.bf16.msra.mxu0 0
        %1957 = vmatprep.subr.bf16.mxu0 0
        %1958 = vmatpush1.bf16.msra.mxu0 0
        %1959 = vmatprep.subr.bf16.mxu0 0
        %1960 = vmatpush1.bf16.msra.mxu0 0
        %1961 = vmatprep.subr.bf16.mxu0 0
        %1962 = vmatpush1.bf16.msra.mxu0 0
        %1963 = vmatprep.subr.bf16.mxu0 0
        %1964 = vmatpush1.bf16.msra.mxu0 0
        %1965 = vmatprep.subr.bf16.mxu0 0
        %1966 = vmatpush1.bf16.msra.mxu0 0
        %1967 = vmatprep.subr.bf16.mxu0 0
        %1968 = vmatpush1.bf16.msra.mxu0 0
        %1969 = vmatprep.subr.bf16.mxu0 0
        %1970 = vmatpush1.bf16.msra.mxu0 0
        %1971 = vmatprep.subr.bf16.mxu0 0
        %1972 = vmatpush1.bf16.msra.mxu0 0
        %1973 = vmatprep.mubr.bf16.mxu0 0
        %1974 = vmatmul.mubr.bf16.gmra.mrb[0].mxu0 %v1885
        %v1975 = vpop.f32.mrb[0].mxu0
        %v1976 = vadd.f32 0.0, %v1975
        %v1977 = vpop.f32.mrb[0].mxu0
        %v1978 = vpop.f32.mrb[0].mxu0
        %v1979 = vadd.f32 0.0, %v1978
        %v1980 = vpop.f32.mrb[0].mxu0
        %1981 = vmatprep.mubr.bf16.mxu0 0
        %1982 = vmatmul.mubr.bf16.gmra.mrb[0].mxu0 %v1888
        %v1983 = vpop.f32.mrb[0].mxu0
        %v1984 = vadd.f32 0.0, %v1983
        %v1985 = vpop.f32.mrb[0].mxu0
        %v1986 = vpop.f32.mrb[0].mxu0
        %v1987 = vadd.f32 0.0, %v1986
        %v1988 = vpop.f32.mrb[0].mxu0
        %1989 = vmatprep.mubr.bf16.mxu0 0
        %1990 = vmatmul.mubr.bf16.gmra.mrb[0].mxu0 %v1891
        %v1991 = vpop.f32.mrb[0].mxu0
        %v1992 = vadd.f32 0.0, %v1991
        %v1993 = vpop.f32.mrb[0].mxu0
        %v1994 = vpop.f32.mrb[0].mxu0
        %v1995 = vadd.f32 0.0, %v1994
        %v1996 = vpop.f32.mrb[0].mxu0
        %1997 = vmatprep.mubr.bf16.mxu0 0
        %1998 = vmatmul.mubr.bf16.gmra.mrb[0].mxu0 %v1894
        %v1999 = vpop.f32.mrb[0].mxu0
        %v2000 = vadd.f32 0.0, %v1999
        %v2001 = vpop.f32.mrb[0].mxu0
        %v2002 = vpop.f32.mrb[0].mxu0
        %v2003 = vadd.f32 0.0, %v2002
        %v2004 = vpop.f32.mrb[0].mxu0
        %2005 = vmatprep.mubr.bf16.mxu0 0
        %2006 = vmatmul.mubr.bf16.gmra.mrb[0].mxu0 %v1897
        %v2007 = vpop.f32.mrb[0].mxu0
        %v2008 = vadd.f32 0.0, %v2007
        %v2009 = vpop.f32.mrb[0].mxu0
        %v2010 = vpop.f32.mrb[0].mxu0
        %v2011 = vadd.f32 0.0, %v2010
        %v2012 = vpop.f32.mrb[0].mxu0
        %2013 = vmatprep.mubr.bf16.mxu0 0
        %2014 = vmatmul.mubr.bf16.gmra.mrb[0].mxu0 %v1900
        %v2015 = vpop.f32.mrb[0].mxu0
        %v2016 = vadd.f32 0.0, %v2015
        %v2017 = vpop.f32.mrb[0].mxu0
        %v2018 = vpop.f32.mrb[0].mxu0
        %v2019 = vadd.f32 0.0, %v2018
        %v2020 = vpop.f32.mrb[0].mxu0
        %2021 = vmatprep.mubr.bf16.mxu0 0
        %2022 = vmatmul.mubr.bf16.gmra.mrb[0].mxu0 %v1903
        %v2023 = vpop.f32.mrb[0].mxu0
        %v2024 = vadd.f32 0.0, %v2023
        %v2025 = vpop.f32.mrb[0].mxu0
        %v2026 = vpop.f32.mrb[0].mxu0
        %v2027 = vadd.f32 0.0, %v2026
        %v2028 = vpop.f32.mrb[0].mxu0
        %2029 = vmatprep.mubr.bf16.mxu0 0
        %2030 = vmatmul.mubr.bf16.gmra.mrb[0].mxu0 %v1906
        %v2031 = vpop.f32.mrb[0].mxu0
        %v2032 = vadd.f32 0.0, %v2031
        %v2033 = vpop.f32.mrb[0].mxu0
        %v2034 = vpop.f32.mrb[0].mxu0
        %v2035 = vadd.f32 0.0, %v2034
        %v2036 = vpop.f32.mrb[0].mxu0
        %2037 = vmatprep.mubr.bf16.mxu0 0
        %2038 = vmatmul.mubr.bf16.gmra.mrb[0].mxu0 %v1909
        %v2039 = vpop.f32.mrb[0].mxu0
        %v2040 = vadd.f32 0.0, %v2039
        %v2041 = vpop.f32.mrb[0].mxu0
        %v2042 = vpop.f32.mrb[0].mxu0
        %v2043 = vadd.f32 0.0, %v2042
        %v2044 = vpop.f32.mrb[0].mxu0
        %2045 = vmatprep.mubr.bf16.mxu0 0
        %2046 = vmatmul.mubr.bf16.gmra.mrb[0].mxu0 %v1912
        %v2047 = vpop.f32.mrb[0].mxu0
        %v2048 = vadd.f32 0.0, %v2047
        %v2049 = vpop.f32.mrb[0].mxu0
        %v2050 = vpop.f32.mrb[0].mxu0
        %v2051 = vadd.f32 0.0, %v2050
        %v2052 = vpop.f32.mrb[0].mxu0
        %2053 = vmatprep.mubr.bf16.mxu0 0
        %2054 = vmatmul.mubr.bf16.gmra.mrb[0].mxu0 %v1915
        %v2055 = vpop.f32.mrb[0].mxu0
        %v2056 = vadd.f32 0.0, %v2055
        %v2057 = vpop.f32.mrb[0].mxu0
        %v2058 = vpop.f32.mrb[0].mxu0
        %v2059 = vadd.f32 0.0, %v2058
        %v2060 = vpop.f32.mrb[0].mxu0
        %2061 = vmatprep.mubr.bf16.mxu0 0
        %2062 = vmatmul.mubr.bf16.gmra.mrb[0].mxu0 %v1918
        %v2063 = vpop.f32.mrb[0].mxu0
        %v2064 = vadd.f32 0.0, %v2063
        %v2065 = vpop.f32.mrb[0].mxu0
        %v2066 = vpop.f32.mrb[0].mxu0
        %v2067 = vadd.f32 0.0, %v2066
        %v2068 = vpop.f32.mrb[0].mxu0
        %2069 = vmatprep.mubr.bf16.mxu0 0
        %2070 = vmatmul.mubr.bf16.gmra.mrb[0].mxu0 %v1921
        %v2071 = vpop.f32.mrb[0].mxu0
        %v2072 = vadd.f32 0.0, %v2071
        %v2073 = vpop.f32.mrb[0].mxu0
        %v2074 = vpop.f32.mrb[0].mxu0
        %v2075 = vadd.f32 0.0, %v2074
        %v2076 = vpop.f32.mrb[0].mxu0
        %2077 = vmatprep.mubr.bf16.mxu0 0
        %2078 = vmatmul.mubr.bf16.gmra.mrb[0].mxu0 %v1924
        %v2079 = vpop.f32.mrb[0].mxu0
        %v2080 = vadd.f32 0.0, %v2079
        %v2081 = vpop.f32.mrb[0].mxu0
        %v2082 = vpop.f32.mrb[0].mxu0
        %v2083 = vadd.f32 0.0, %v2082
        %v2084 = vpop.f32.mrb[0].mxu0
        %2085 = vmatprep.mubr.bf16.mxu0 0
        %2086 = vmatmul.mubr.bf16.gmra.mrb[0].mxu0 %v1927
        %v2087 = vpop.f32.mrb[0].mxu0
        %v2088 = vadd.f32 0.0, %v2087
        %v2089 = vpop.f32.mrb[0].mxu0
        %v2090 = vpop.f32.mrb[0].mxu0
        %v2091 = vadd.f32 0.0, %v2090
        %v2092 = vpop.f32.mrb[0].mxu0
        %2093 = vmatprep.mubr.bf16.mxu0 0
        %2094 = vmatmul.mubr.bf16.gmra.mrb[0].mxu0 %v1930
        %v2095 = vpop.f32.mrb[0].mxu0
        %v2096 = vadd.f32 0.0, %v2095
        %v2097 = vpop.f32.mrb[0].mxu0
        %v2098 = vpop.f32.mrb[0].mxu0
        %v2099 = vadd.f32 0.0, %v2098
        %v2100 = vpop.f32.mrb[0].mxu0
        %2101 = vmatprep.mubr.bf16.mxu0 0
        %2102 = vmatmul.mubr.bf16.gmra.mrb[0].mxu0 %v1933
        %v2103 = vpop.f32.mrb[0].mxu0
        %v2104 = vadd.f32 0.0, %v2103
        %v2105 = vpop.f32.mrb[0].mxu0
        %v2106 = vpop.f32.mrb[0].mxu0
        %v2107 = vadd.f32 0.0, %v2106
        %v2108 = vpop.f32.mrb[0].mxu0
        %2109 = vmatprep.mubr.bf16.mxu0 0
        %2110 = vmatmul.mubr.bf16.gmra.mrb[0].mxu0 %v1936
        %v2111 = vpop.f32.mrb[0].mxu0
        %v2112 = vadd.f32 0.0, %v2111
        %v2113 = vpop.f32.mrb[0].mxu0
        %v2114 = vpop.f32.mrb[0].mxu0
        %v2115 = vadd.f32 0.0, %v2114
        %v2116 = vpop.f32.mrb[0].mxu0
        %2117 = vdwg.mxu0
        %v2118 = vadd.f32 %v1808, %v1976
        %v2119 = vadd.f32 %v1809, %v1979
        %v2120 = vadd.f32 %v1810, %v1984
        %v2121 = vadd.f32 %v1811, %v1987
        %v2122 = vadd.f32 %v1812, %v1992
        %v2123 = vadd.f32 %v1813, %v1995
        %v2124 = vadd.f32 %v1814, %v2000
        %v2125 = vadd.f32 %v1815, %v2003
        %v2126 = vadd.f32 %v1816, %v2008
        %v2127 = vadd.f32 %v1817, %v2011
        %v2128 = vadd.f32 %v1818, %v2016
        %v2129 = vadd.f32 %v1819, %v2019
        %v2130 = vadd.f32 %v1820, %v2024
        %v2131 = vadd.f32 %v1821, %v2027
        %v2132 = vadd.f32 %v1822, %v2032
        %v2133 = vadd.f32 %v1823, %v2035
        %v2134 = vadd.f32 %v1824, %v2040
        %v2135 = vadd.f32 %v1825, %v2043
        %v2136 = vadd.f32 %v1826, %v2048
        %v2137 = vadd.f32 %v1827, %v2051
        %v2138 = vadd.f32 %v1828, %v2056
        %v2139 = vadd.f32 %v1829, %v2059
        %v2140 = vadd.f32 %v1830, %v2064
        %v2141 = vadd.f32 %v1831, %v2067
        %v2142 = vadd.f32 %v1832, %v2072
        %v2143 = vadd.f32 %v1833, %v2075
        %v2144 = vadd.f32 %v1834, %v2080
        %v2145 = vadd.f32 %v1835, %v2083
        %v2146 = vadd.f32 %v1836, %v2088
        %v2147 = vadd.f32 %v1837, %v2091
        %v2148 = vadd.f32 %v1838, %v2096
        %v2149 = vadd.f32 %v1839, %v2099
        %v2150 = vadd.f32 %v1840, %v2104
        %v2151 = vadd.f32 %v1841, %v2107
        %v2152 = vadd.f32 %v1842, %v2112
        %v2153 = vadd.f32 %v1843, %v2115
        %s2154 = scalar_lea.vmem %s1, 12
        %v2155 = vld [vmem:[%s2154] sm:$0x3]
        %v2158 = vunpack.c.l.b16 %v243
        %v2159 = vunpack.c.l.b16 %v244
        %v2160 = vpack.c.b16 %v2158, %v1257
        %v2161 = vpack.c.b16 %v2159, %v2159
        %v2162 = vrot.slane %v2160, 2
        %v2163 = vsel %vm1846, %v1880, %v2162
        %v2164 = vrot.slane %v2161, 2
        %v2165 = vsel %vm1846, %v2162, %v2164
        %v2167 = vsel %vm490, %v2163, 0
        %v2170 = vsel %vm490, %v2165, 0
        %v2173 = vsel %vm545, %v2155, 0
        %2175 = vmatprep.subr.bf16.mxu0 0
        %2176 = vmatpush1.bf16.msra.mxu0 %v2173
        %2177 = vmatprep.subr.bf16.mxu0 0
        %2178 = vmatpush1.bf16.msra.mxu0 0
        %2179 = vmatprep.subr.bf16.mxu0 0
        %2180 = vmatpush1.bf16.msra.mxu0 0
        %2181 = vmatprep.subr.bf16.mxu0 0
        %2182 = vmatpush1.bf16.msra.mxu0 0
        %2183 = vmatprep.subr.bf16.mxu0 0
        %2184 = vmatpush1.bf16.msra.mxu0 0
        %2185 = vmatprep.subr.bf16.mxu0 0
        %2186 = vmatpush1.bf16.msra.mxu0 0
        %2187 = vmatprep.subr.bf16.mxu0 0
        %2188 = vmatpush1.bf16.msra.mxu0 0
        %2189 = vmatprep.subr.bf16.mxu0 0
        %2190 = vmatpush1.bf16.msra.mxu0 0
        %2191 = vmatprep.subr.bf16.mxu0 0
        %2192 = vmatpush1.bf16.msra.mxu0 0
        %2193 = vmatprep.subr.bf16.mxu0 0
        %2194 = vmatpush1.bf16.msra.mxu0 0
        %2195 = vmatprep.subr.bf16.mxu0 0
        %2196 = vmatpush1.bf16.msra.mxu0 0
        %2197 = vmatprep.subr.bf16.mxu0 0
        %2198 = vmatpush1.bf16.msra.mxu0 0
        %2199 = vmatprep.subr.bf16.mxu0 0
        %2200 = vmatpush1.bf16.msra.mxu0 0
        %2201 = vmatprep.subr.bf16.mxu0 0
        %2202 = vmatpush1.bf16.msra.mxu0 0
        %2203 = vmatprep.subr.bf16.mxu0 0
        %2204 = vmatpush1.bf16.msra.mxu0 0
        %2205 = vmatprep.subr.bf16.mxu0 0
        %2206 = vmatpush1.bf16.msra.mxu0 0
        %2207 = vmatprep.mubr.bf16.mxu0 0
        %2208 = vmatmul.mubr.bf16.gmra.mrb[0].mxu0 %v1888
        %v2209 = vpop.f32.mrb[0].mxu0
        %v2210 = vadd.f32 0.0, %v2209
        %v2211 = vpop.f32.mrb[0].mxu0
        %v2212 = vpop.f32.mrb[0].mxu0
        %v2213 = vadd.f32 0.0, %v2212
        %v2214 = vpop.f32.mrb[0].mxu0
        %2215 = vmatprep.mubr.bf16.mxu0 0
        %2216 = vmatmul.mubr.bf16.gmra.mrb[0].mxu0 %v1891
        %v2217 = vpop.f32.mrb[0].mxu0
        %v2218 = vadd.f32 0.0, %v2217
        %v2219 = vpop.f32.mrb[0].mxu0
        %v2220 = vpop.f32.mrb[0].mxu0
        %v2221 = vadd.f32 0.0, %v2220
        %v2222 = vpop.f32.mrb[0].mxu0
        %2223 = vmatprep.mubr.bf16.mxu0 0
        %2224 = vmatmul.mubr.bf16.gmra.mrb[0].mxu0 %v1894
        %v2225 = vpop.f32.mrb[0].mxu0
        %v2226 = vadd.f32 0.0, %v2225
        %v2227 = vpop.f32.mrb[0].mxu0
        %v2228 = vpop.f32.mrb[0].mxu0
        %v2229 = vadd.f32 0.0, %v2228
        %v2230 = vpop.f32.mrb[0].mxu0
        %2231 = vmatprep.mubr.bf16.mxu0 0
        %2232 = vmatmul.mubr.bf16.gmra.mrb[0].mxu0 %v1897
        %v2233 = vpop.f32.mrb[0].mxu0
        %v2234 = vadd.f32 0.0, %v2233
        %v2235 = vpop.f32.mrb[0].mxu0
        %v2236 = vpop.f32.mrb[0].mxu0
        %v2237 = vadd.f32 0.0, %v2236
        %v2238 = vpop.f32.mrb[0].mxu0
        %2239 = vmatprep.mubr.bf16.mxu0 0
        %2240 = vmatmul.mubr.bf16.gmra.mrb[0].mxu0 %v1900
        %v2241 = vpop.f32.mrb[0].mxu0
        %v2242 = vadd.f32 0.0, %v2241
        %v2243 = vpop.f32.mrb[0].mxu0
        %v2244 = vpop.f32.mrb[0].mxu0
        %v2245 = vadd.f32 0.0, %v2244
        %v2246 = vpop.f32.mrb[0].mxu0
        %2247 = vmatprep.mubr.bf16.mxu0 0
        %2248 = vmatmul.mubr.bf16.gmra.mrb[0].mxu0 %v1903
        %v2249 = vpop.f32.mrb[0].mxu0
        %v2250 = vadd.f32 0.0, %v2249
        %v2251 = vpop.f32.mrb[0].mxu0
        %v2252 = vpop.f32.mrb[0].mxu0
        %v2253 = vadd.f32 0.0, %v2252
        %v2254 = vpop.f32.mrb[0].mxu0
        %2255 = vmatprep.mubr.bf16.mxu0 0
        %2256 = vmatmul.mubr.bf16.gmra.mrb[0].mxu0 %v1906
        %v2257 = vpop.f32.mrb[0].mxu0
        %v2258 = vadd.f32 0.0, %v2257
        %v2259 = vpop.f32.mrb[0].mxu0
        %v2260 = vpop.f32.mrb[0].mxu0
        %v2261 = vadd.f32 0.0, %v2260
        %v2262 = vpop.f32.mrb[0].mxu0
        %2263 = vmatprep.mubr.bf16.mxu0 0
        %2264 = vmatmul.mubr.bf16.gmra.mrb[0].mxu0 %v1909
        %v2265 = vpop.f32.mrb[0].mxu0
        %v2266 = vadd.f32 0.0, %v2265
        %v2267 = vpop.f32.mrb[0].mxu0
        %v2268 = vpop.f32.mrb[0].mxu0
        %v2269 = vadd.f32 0.0, %v2268
        %v2270 = vpop.f32.mrb[0].mxu0
        %2271 = vmatprep.mubr.bf16.mxu0 0
        %2272 = vmatmul.mubr.bf16.gmra.mrb[0].mxu0 %v1912
        %v2273 = vpop.f32.mrb[0].mxu0
        %v2274 = vadd.f32 0.0, %v2273
        %v2275 = vpop.f32.mrb[0].mxu0
        %v2276 = vpop.f32.mrb[0].mxu0
        %v2277 = vadd.f32 0.0, %v2276
        %v2278 = vpop.f32.mrb[0].mxu0
        %2279 = vmatprep.mubr.bf16.mxu0 0
        %2280 = vmatmul.mubr.bf16.gmra.mrb[0].mxu0 %v1915
        %v2281 = vpop.f32.mrb[0].mxu0
        %v2282 = vadd.f32 0.0, %v2281
        %v2283 = vpop.f32.mrb[0].mxu0
        %v2284 = vpop.f32.mrb[0].mxu0
        %v2285 = vadd.f32 0.0, %v2284
        %v2286 = vpop.f32.mrb[0].mxu0
        %2287 = vmatprep.mubr.bf16.mxu0 0
        %2288 = vmatmul.mubr.bf16.gmra.mrb[0].mxu0 %v1918
        %v2289 = vpop.f32.mrb[0].mxu0
        %v2290 = vadd.f32 0.0, %v2289
        %v2291 = vpop.f32.mrb[0].mxu0
        %v2292 = vpop.f32.mrb[0].mxu0
        %v2293 = vadd.f32 0.0, %v2292
        %v2294 = vpop.f32.mrb[0].mxu0
        %2295 = vmatprep.mubr.bf16.mxu0 0
        %2296 = vmatmul.mubr.bf16.gmra.mrb[0].mxu0 %v1921
        %v2297 = vpop.f32.mrb[0].mxu0
        %v2298 = vadd.f32 0.0, %v2297
        %v2299 = vpop.f32.mrb[0].mxu0
        %v2300 = vpop.f32.mrb[0].mxu0
        %v2301 = vadd.f32 0.0, %v2300
        %v2302 = vpop.f32.mrb[0].mxu0
        %2303 = vmatprep.mubr.bf16.mxu0 0
        %2304 = vmatmul.mubr.bf16.gmra.mrb[0].mxu0 %v1924
        %v2305 = vpop.f32.mrb[0].mxu0
        %v2306 = vadd.f32 0.0, %v2305
        %v2307 = vpop.f32.mrb[0].mxu0
        %v2308 = vpop.f32.mrb[0].mxu0
        %v2309 = vadd.f32 0.0, %v2308
        %v2310 = vpop.f32.mrb[0].mxu0
        %2311 = vmatprep.mubr.bf16.mxu0 0
        %2312 = vmatmul.mubr.bf16.gmra.mrb[0].mxu0 %v1927
        %v2313 = vpop.f32.mrb[0].mxu0
        %v2314 = vadd.f32 0.0, %v2313
        %v2315 = vpop.f32.mrb[0].mxu0
        %v2316 = vpop.f32.mrb[0].mxu0
        %v2317 = vadd.f32 0.0, %v2316
        %v2318 = vpop.f32.mrb[0].mxu0
        %2319 = vmatprep.mubr.bf16.mxu0 0
        %2320 = vmatmul.mubr.bf16.gmra.mrb[0].mxu0 %v1930
        %v2321 = vpop.f32.mrb[0].mxu0
        %v2322 = vadd.f32 0.0, %v2321
        %v2323 = vpop.f32.mrb[0].mxu0
        %v2324 = vpop.f32.mrb[0].mxu0
        %v2325 = vadd.f32 0.0, %v2324
        %v2326 = vpop.f32.mrb[0].mxu0
        %2327 = vmatprep.mubr.bf16.mxu0 0
        %2328 = vmatmul.mubr.bf16.gmra.mrb[0].mxu0 %v1933
        %v2329 = vpop.f32.mrb[0].mxu0
        %v2330 = vadd.f32 0.0, %v2329
        %v2331 = vpop.f32.mrb[0].mxu0
        %v2332 = vpop.f32.mrb[0].mxu0
        %v2333 = vadd.f32 0.0, %v2332
        %v2334 = vpop.f32.mrb[0].mxu0
        %2335 = vmatprep.mubr.bf16.mxu0 0
        %2336 = vmatmul.mubr.bf16.gmra.mrb[0].mxu0 %v2167
        %v2337 = vpop.f32.mrb[0].mxu0
        %v2338 = vadd.f32 0.0, %v2337
        %v2339 = vpop.f32.mrb[0].mxu0
        %v2340 = vpop.f32.mrb[0].mxu0
        %v2341 = vadd.f32 0.0, %v2340
        %v2342 = vpop.f32.mrb[0].mxu0
        %2343 = vmatprep.mubr.bf16.mxu0 0
        %2344 = vmatmul.mubr.bf16.gmra.mrb[0].mxu0 %v2170
        %v2345 = vpop.f32.mrb[0].mxu0
        %v2346 = vadd.f32 0.0, %v2345
        %v2347 = vpop.f32.mrb[0].mxu0
        %v2348 = vpop.f32.mrb[0].mxu0
        %v2349 = vadd.f32 0.0, %v2348
        %v2350 = vpop.f32.mrb[0].mxu0
        %2351 = vdwg.mxu0
        %v2352 = vadd.f32 %v2118, %v2210
        %v2353 = vadd.f32 %v2119, %v2213
        %v2354 = vadd.f32 %v2120, %v2218
        %v2355 = vadd.f32 %v2121, %v2221
        %v2356 = vadd.f32 %v2122, %v2226
        %v2357 = vadd.f32 %v2123, %v2229
        %v2358 = vadd.f32 %v2124, %v2234
        %v2359 = vadd.f32 %v2125, %v2237
        %v2360 = vadd.f32 %v2126, %v2242
        %v2361 = vadd.f32 %v2127, %v2245
        %v2362 = vadd.f32 %v2128, %v2250
        %v2363 = vadd.f32 %v2129, %v2253
        %v2364 = vadd.f32 %v2130, %v2258
        %v2365 = vadd.f32 %v2131, %v2261
        %v2366 = vadd.f32 %v2132, %v2266
        %v2367 = vadd.f32 %v2133, %v2269
        %v2368 = vadd.f32 %v2134, %v2274
        %v2369 = vadd.f32 %v2135, %v2277
        %v2370 = vadd.f32 %v2136, %v2282
        %v2371 = vadd.f32 %v2137, %v2285
        %v2372 = vadd.f32 %v2138, %v2290
        %v2373 = vadd.f32 %v2139, %v2293
        %v2374 = vadd.f32 %v2140, %v2298
        %v2375 = vadd.f32 %v2141, %v2301
        %v2376 = vadd.f32 %v2142, %v2306
        %v2377 = vadd.f32 %v2143, %v2309
        %v2378 = vadd.f32 %v2144, %v2314
        %v2379 = vadd.f32 %v2145, %v2317
        %v2380 = vadd.f32 %v2146, %v2322
        %v2381 = vadd.f32 %v2147, %v2325
        %v2382 = vadd.f32 %v2148, %v2330
        %v2383 = vadd.f32 %v2149, %v2333
        %v2384 = vadd.f32 %v2150, %v2338
        %v2385 = vadd.f32 %v2151, %v2341
        %v2386 = vadd.f32 %v2152, %v2346
        %v2387 = vadd.f32 %v2153, %v2349
        %s2388 = scalar_lea.vmem %s1, 14
        %v2389 = vld [vmem:[%s2388] sm:$0x3]
        %vm2390 = vsmask.f32 5376
        %v2391 = vrot.slane %v362, 2
        %v2392 = vrot.slane %v358, 3
        %v2393 = vor.u32 %v2391, %v2392
        %v2394 = vrot.slane %v370, 2
        %v2395 = vrot.slane %v366, 3
        %v2396 = vor.u32 %v2394, %v2395
        %v2397 = vsel %vm2390, %v2393, %v2396
        %v2398 = vrot.slane %v378, 2
        %v2399 = vrot.slane %v374, 3
        %v2400 = vor.u32 %v2398, %v2399
        %v2401 = vsel %vm2390, %v2396, %v2400
        %v2402 = vrot.slane %v386, 2
        %v2403 = vrot.slane %v382, 3
        %v2404 = vor.u32 %v2402, %v2403
        %v2405 = vsel %vm2390, %v2400, %v2404
        %v2406 = vrot.slane %v394, 2
        %v2407 = vrot.slane %v390, 3
        %v2408 = vor.u32 %v2406, %v2407
        %v2409 = vsel %vm2390, %v2404, %v2408
        %v2410 = vrot.slane %v402, 2
        %v2411 = vrot.slane %v398, 3
        %v2412 = vor.u32 %v2410, %v2411
        %v2413 = vsel %vm2390, %v2408, %v2412
        %v2414 = vrot.slane %v410, 2
        %v2415 = vrot.slane %v406, 3
        %v2416 = vor.u32 %v2414, %v2415
        %v2417 = vsel %vm2390, %v2412, %v2416
        %v2418 = vrot.slane %v418, 2
        %v2419 = vrot.slane %v414, 3
        %v2420 = vor.u32 %v2418, %v2419
        %v2421 = vsel %vm2390, %v2416, %v2420
        %v2422 = vrot.slane %v426, 2
        %v2423 = vrot.slane %v422, 3
        %v2424 = vor.u32 %v2422, %v2423
        %v2425 = vsel %vm2390, %v2420, %v2424
        %v2426 = vrot.slane %v434, 2
        %v2427 = vrot.slane %v430, 3
        %v2428 = vor.u32 %v2426, %v2427
        %v2429 = vsel %vm2390, %v2424, %v2428
        %v2430 = vrot.slane %v442, 2
        %v2431 = vrot.slane %v438, 3
        %v2432 = vor.u32 %v2430, %v2431
        %v2433 = vsel %vm2390, %v2428, %v2432
        %v2434 = vrot.slane %v450, 2
        %v2435 = vrot.slane %v446, 3
        %v2436 = vor.u32 %v2434, %v2435
        %v2437 = vsel %vm2390, %v2432, %v2436
        %v2438 = vrot.slane %v458, 2
        %v2439 = vrot.slane %v454, 3
        %v2440 = vor.u32 %v2438, %v2439
        %v2441 = vsel %vm2390, %v2436, %v2440
        %v2442 = vrot.slane %v466, 2
        %v2443 = vrot.slane %v462, 3
        %v2444 = vor.u32 %v2442, %v2443
        %v2445 = vsel %vm2390, %v2440, %v2444
        %v2446 = vrot.slane %v474, 2
        %v2447 = vrot.slane %v470, 3
        %v2448 = vor.u32 %v2446, %v2447
        %v2449 = vsel %vm2390, %v2444, %v2448
        %v2450 = vrot.slane %v482, 2
        %v2451 = vrot.slane %v478, 3
        %v2452 = vor.u32 %v2450, %v2451
        %v2453 = vsel %vm2390, %v2448, %v2452
        %v2454 = vrot.slane %v1557, 2
        %v2455 = vrot.slane %v1560, 3
        %v2456 = vor.u32 %v2454, %v2455
        %v2457 = vsel %vm2390, %v2452, %v2456
        %v2459 = vshrl.u32 %v2160, 16
        %v2461 = vrot.slane %v2459, 2
        %v2462 = vshll.u32 %v2160, 16
        %v2464 = vrot.slane %v2462, 3
        %v2465 = vor.u32 %v2461, %v2464
        %v2466 = vsel %vm2390, %v2456, %v2465
        %v2468 = vshrl.u32 %v2161, 16
        %v2470 = vrot.slane %v2468, 2
        %v2471 = vshll.u32 %v2161, 16
        %v2473 = vrot.slane %v2471, 3
        %v2474 = vor.u32 %v2470, %v2473
        %v2475 = vsel %vm2390, %v2465, %v2474
        %v2477 = vsel %vm490, %v2397, 0
        %v2480 = vsel %vm490, %v2401, 0
        %v2483 = vsel %vm490, %v2405, 0
        %v2486 = vsel %vm490, %v2409, 0
        %v2489 = vsel %vm490, %v2413, 0
        %v2492 = vsel %vm490, %v2417, 0
        %v2495 = vsel %vm490, %v2421, 0
        %v2498 = vsel %vm490, %v2425, 0
        %v2501 = vsel %vm490, %v2429, 0
        %v2504 = vsel %vm490, %v2433, 0
        %v2507 = vsel %vm490, %v2437, 0
        %v2510 = vsel %vm490, %v2441, 0
        %v2513 = vsel %vm490, %v2445, 0
        %v2516 = vsel %vm490, %v2449, 0
        %v2519 = vsel %vm490, %v2453, 0
        %v2522 = vsel %vm490, %v2457, 0
        %v2525 = vsel %vm490, %v2466, 0
        %v2528 = vsel %vm490, %v2475, 0
        %v2531 = vsel %vm545, %v2389, 0
        %2533 = vmatprep.subr.bf16.mxu0 0
        %2534 = vmatpush1.bf16.msra.mxu0 %v2531
        %2535 = vmatprep.subr.bf16.mxu0 0
        %2536 = vmatpush1.bf16.msra.mxu0 0
        %2537 = vmatprep.subr.bf16.mxu0 0
        %2538 = vmatpush1.bf16.msra.mxu0 0
        %2539 = vmatprep.subr.bf16.mxu0 0
        %2540 = vmatpush1.bf16.msra.mxu0 0
        %2541 = vmatprep.subr.bf16.mxu0 0
        %2542 = vmatpush1.bf16.msra.mxu0 0
        %2543 = vmatprep.subr.bf16.mxu0 0
        %2544 = vmatpush1.bf16.msra.mxu0 0
        %2545 = vmatprep.subr.bf16.mxu0 0
        %2546 = vmatpush1.bf16.msra.mxu0 0
        %2547 = vmatprep.subr.bf16.mxu0 0
        %2548 = vmatpush1.bf16.msra.mxu0 0
        %2549 = vmatprep.subr.bf16.mxu0 0
        %2550 = vmatpush1.bf16.msra.mxu0 0
        %2551 = vmatprep.subr.bf16.mxu0 0
        %2552 = vmatpush1.bf16.msra.mxu0 0
        %2553 = vmatprep.subr.bf16.mxu0 0
        %2554 = vmatpush1.bf16.msra.mxu0 0
        %2555 = vmatprep.subr.bf16.mxu0 0
        %2556 = vmatpush1.bf16.msra.mxu0 0
        %2557 = vmatprep.subr.bf16.mxu0 0
        %2558 = vmatpush1.bf16.msra.mxu0 0
        %2559 = vmatprep.subr.bf16.mxu0 0
        %2560 = vmatpush1.bf16.msra.mxu0 0
        %2561 = vmatprep.subr.bf16.mxu0 0
        %2562 = vmatpush1.bf16.msra.mxu0 0
        %2563 = vmatprep.subr.bf16.mxu0 0
        %2564 = vmatpush1.bf16.msra.mxu0 0
        %2565 = vmatprep.mubr.bf16.mxu0 0
        %2566 = vmatmul.mubr.bf16.gmra.mrb[0].mxu0 %v2477
        %v2567 = vpop.f32.mrb[0].mxu0
        %v2568 = vadd.f32 0.0, %v2567
        %v2569 = vpop.f32.mrb[0].mxu0
        %v2570 = vpop.f32.mrb[0].mxu0
        %v2571 = vadd.f32 0.0, %v2570
        %v2572 = vpop.f32.mrb[0].mxu0
        %2573 = vmatprep.mubr.bf16.mxu0 0
        %2574 = vmatmul.mubr.bf16.gmra.mrb[0].mxu0 %v2480
        %v2575 = vpop.f32.mrb[0].mxu0
        %v2576 = vadd.f32 0.0, %v2575
        %v2577 = vpop.f32.mrb[0].mxu0
        %v2578 = vpop.f32.mrb[0].mxu0
        %v2579 = vadd.f32 0.0, %v2578
        %v2580 = vpop.f32.mrb[0].mxu0
        %2581 = vmatprep.mubr.bf16.mxu0 0
        %2582 = vmatmul.mubr.bf16.gmra.mrb[0].mxu0 %v2483
        %v2583 = vpop.f32.mrb[0].mxu0
        %v2584 = vadd.f32 0.0, %v2583
        %v2585 = vpop.f32.mrb[0].mxu0
        %v2586 = vpop.f32.mrb[0].mxu0
        %v2587 = vadd.f32 0.0, %v2586
        %v2588 = vpop.f32.mrb[0].mxu0
        %2589 = vmatprep.mubr.bf16.mxu0 0
        %2590 = vmatmul.mubr.bf16.gmra.mrb[0].mxu0 %v2486
        %v2591 = vpop.f32.mrb[0].mxu0
        %v2592 = vadd.f32 0.0, %v2591
        %v2593 = vpop.f32.mrb[0].mxu0
        %v2594 = vpop.f32.mrb[0].mxu0
        %v2595 = vadd.f32 0.0, %v2594
        %v2596 = vpop.f32.mrb[0].mxu0
        %2597 = vmatprep.mubr.bf16.mxu0 0
        %2598 = vmatmul.mubr.bf16.gmra.mrb[0].mxu0 %v2489
        %v2599 = vpop.f32.mrb[0].mxu0
        %v2600 = vadd.f32 0.0, %v2599
        %v2601 = vpop.f32.mrb[0].mxu0
        %v2602 = vpop.f32.mrb[0].mxu0
        %v2603 = vadd.f32 0.0, %v2602
        %v2604 = vpop.f32.mrb[0].mxu0
        %2605 = vmatprep.mubr.bf16.mxu0 0
        %2606 = vmatmul.mubr.bf16.gmra.mrb[0].mxu0 %v2492
        %v2607 = vpop.f32.mrb[0].mxu0
        %v2608 = vadd.f32 0.0, %v2607
        %v2609 = vpop.f32.mrb[0].mxu0
        %v2610 = vpop.f32.mrb[0].mxu0
        %v2611 = vadd.f32 0.0, %v2610
        %v2612 = vpop.f32.mrb[0].mxu0
        %2613 = vmatprep.mubr.bf16.mxu0 0
        %2614 = vmatmul.mubr.bf16.gmra.mrb[0].mxu0 %v2495
        %v2615 = vpop.f32.mrb[0].mxu0
        %v2616 = vadd.f32 0.0, %v2615
        %v2617 = vpop.f32.mrb[0].mxu0
        %v2618 = vpop.f32.mrb[0].mxu0
        %v2619 = vadd.f32 0.0, %v2618
        %v2620 = vpop.f32.mrb[0].mxu0
        %2621 = vmatprep.mubr.bf16.mxu0 0
        %2622 = vmatmul.mubr.bf16.gmra.mrb[0].mxu0 %v2498
        %v2623 = vpop.f32.mrb[0].mxu0
        %v2624 = vadd.f32 0.0, %v2623
        %v2625 = vpop.f32.mrb[0].mxu0
        %v2626 = vpop.f32.mrb[0].mxu0
        %v2627 = vadd.f32 0.0, %v2626
        %v2628 = vpop.f32.mrb[0].mxu0
        %2629 = vmatprep.mubr.bf16.mxu0 0
        %2630 = vmatmul.mubr.bf16.gmra.mrb[0].mxu0 %v2501
        %v2631 = vpop.f32.mrb[0].mxu0
        %v2632 = vadd.f32 0.0, %v2631
        %v2633 = vpop.f32.mrb[0].mxu0
        %v2634 = vpop.f32.mrb[0].mxu0
        %v2635 = vadd.f32 0.0, %v2634
        %v2636 = vpop.f32.mrb[0].mxu0
        %2637 = vmatprep.mubr.bf16.mxu0 0
        %2638 = vmatmul.mubr.bf16.gmra.mrb[0].mxu0 %v2504
        %v2639 = vpop.f32.mrb[0].mxu0
        %v2640 = vadd.f32 0.0, %v2639
        %v2641 = vpop.f32.mrb[0].mxu0
        %v2642 = vpop.f32.mrb[0].mxu0
        %v2643 = vadd.f32 0.0, %v2642
        %v2644 = vpop.f32.mrb[0].mxu0
        %2645 = vmatprep.mubr.bf16.mxu0 0
        %2646 = vmatmul.mubr.bf16.gmra.mrb[0].mxu0 %v2507
        %v2647 = vpop.f32.mrb[0].mxu0
        %v2648 = vadd.f32 0.0, %v2647
        %v2649 = vpop.f32.mrb[0].mxu0
        %v2650 = vpop.f32.mrb[0].mxu0
        %v2651 = vadd.f32 0.0, %v2650
        %v2652 = vpop.f32.mrb[0].mxu0
        %2653 = vmatprep.mubr.bf16.mxu0 0
        %2654 = vmatmul.mubr.bf16.gmra.mrb[0].mxu0 %v2510
        %v2655 = vpop.f32.mrb[0].mxu0
        %v2656 = vadd.f32 0.0, %v2655
        %v2657 = vpop.f32.mrb[0].mxu0
        %v2658 = vpop.f32.mrb[0].mxu0
        %v2659 = vadd.f32 0.0, %v2658
        %v2660 = vpop.f32.mrb[0].mxu0
        %2661 = vmatprep.mubr.bf16.mxu0 0
        %2662 = vmatmul.mubr.bf16.gmra.mrb[0].mxu0 %v2513
        %v2663 = vpop.f32.mrb[0].mxu0
        %v2664 = vadd.f32 0.0, %v2663
        %v2665 = vpop.f32.mrb[0].mxu0
        %v2666 = vpop.f32.mrb[0].mxu0
        %v2667 = vadd.f32 0.0, %v2666
        %v2668 = vpop.f32.mrb[0].mxu0
        %2669 = vmatprep.mubr.bf16.mxu0 0
        %2670 = vmatmul.mubr.bf16.gmra.mrb[0].mxu0 %v2516
        %v2671 = vpop.f32.mrb[0].mxu0
        %v2672 = vadd.f32 0.0, %v2671
        %v2673 = vpop.f32.mrb[0].mxu0
        %v2674 = vpop.f32.mrb[0].mxu0
        %v2675 = vadd.f32 0.0, %v2674
        %v2676 = vpop.f32.mrb[0].mxu0
        %2677 = vmatprep.mubr.bf16.mxu0 0
        %2678 = vmatmul.mubr.bf16.gmra.mrb[0].mxu0 %v2519
        %v2679 = vpop.f32.mrb[0].mxu0
        %v2680 = vadd.f32 0.0, %v2679
        %v2681 = vpop.f32.mrb[0].mxu0
        %v2682 = vpop.f32.mrb[0].mxu0
        %v2683 = vadd.f32 0.0, %v2682
        %v2684 = vpop.f32.mrb[0].mxu0
        %2685 = vmatprep.mubr.bf16.mxu0 0
        %2686 = vmatmul.mubr.bf16.gmra.mrb[0].mxu0 %v2522
        %v2687 = vpop.f32.mrb[0].mxu0
        %v2688 = vadd.f32 0.0, %v2687
        %v2689 = vpop.f32.mrb[0].mxu0
        %v2690 = vpop.f32.mrb[0].mxu0
        %v2691 = vadd.f32 0.0, %v2690
        %v2692 = vpop.f32.mrb[0].mxu0
        %2693 = vmatprep.mubr.bf16.mxu0 0
        %2694 = vmatmul.mubr.bf16.gmra.mrb[0].mxu0 %v2525
        %v2695 = vpop.f32.mrb[0].mxu0
        %v2696 = vadd.f32 0.0, %v2695
        %v2697 = vpop.f32.mrb[0].mxu0
        %v2698 = vpop.f32.mrb[0].mxu0
        %v2699 = vadd.f32 0.0, %v2698
        %v2700 = vpop.f32.mrb[0].mxu0
        %2701 = vmatprep.mubr.bf16.mxu0 0
        %2702 = vmatmul.mubr.bf16.gmra.mrb[0].mxu0 %v2528
        %v2703 = vpop.f32.mrb[0].mxu0
        %v2704 = vadd.f32 0.0, %v2703
        %v2705 = vpop.f32.mrb[0].mxu0
        %v2706 = vpop.f32.mrb[0].mxu0
        %v2707 = vadd.f32 0.0, %v2706
        %v2708 = vpop.f32.mrb[0].mxu0
        %2709 = vdwg.mxu0
        %v2710 = vadd.f32 %v2352, %v2568
        %v2711 = vadd.f32 %v2353, %v2571
        %v2712 = vadd.f32 %v2354, %v2576
        %v2713 = vadd.f32 %v2355, %v2579
        %v2714 = vadd.f32 %v2356, %v2584
        %v2715 = vadd.f32 %v2357, %v2587
        %v2716 = vadd.f32 %v2358, %v2592
        %v2717 = vadd.f32 %v2359, %v2595
        %v2718 = vadd.f32 %v2360, %v2600
        %v2719 = vadd.f32 %v2361, %v2603
        %v2720 = vadd.f32 %v2362, %v2608
        %v2721 = vadd.f32 %v2363, %v2611
        %v2722 = vadd.f32 %v2364, %v2616
        %v2723 = vadd.f32 %v2365, %v2619
        %v2724 = vadd.f32 %v2366, %v2624
        %v2725 = vadd.f32 %v2367, %v2627
        %v2726 = vadd.f32 %v2368, %v2632
        %v2727 = vadd.f32 %v2369, %v2635
        %v2728 = vadd.f32 %v2370, %v2640
        %v2729 = vadd.f32 %v2371, %v2643
        %v2730 = vadd.f32 %v2372, %v2648
        %v2731 = vadd.f32 %v2373, %v2651
        %v2732 = vadd.f32 %v2374, %v2656
        %v2733 = vadd.f32 %v2375, %v2659
        %v2734 = vadd.f32 %v2376, %v2664
        %v2735 = vadd.f32 %v2377, %v2667
        %v2736 = vadd.f32 %v2378, %v2672
        %v2737 = vadd.f32 %v2379, %v2675
        %v2738 = vadd.f32 %v2380, %v2680
        %v2739 = vadd.f32 %v2381, %v2683
        %v2740 = vadd.f32 %v2382, %v2688
        %v2741 = vadd.f32 %v2383, %v2691
        %v2742 = vadd.f32 %v2384, %v2696
        %v2743 = vadd.f32 %v2385, %v2699
        %v2744 = vadd.f32 %v2386, %v2704
        %v2745 = vadd.f32 %v2387, %v2707
        %s2746 = scalar_lea.vmem %s1, 16
        %v2747 = vld [vmem:[%s2746] sm:$0x3]
        %vm2748 = vcmask 1044480
        %v2749 = vrot.slane %v324, 3
        %v2750 = vrot.slane %v325, 3
        %v2751 = vsel %vm2748, %v2749, %v2750
        %v2752 = vrot.slane %v326, 3
        %v2753 = vsel %vm2748, %v2750, %v2752
        %v2754 = vrot.slane %v327, 3
        %v2755 = vsel %vm2748, %v2752, %v2754
        %v2756 = vrot.slane %v328, 3
        %v2757 = vsel %vm2748, %v2754, %v2756
        %v2758 = vrot.slane %v329, 3
        %v2759 = vsel %vm2748, %v2756, %v2758
        %v2760 = vrot.slane %v330, 3
        %v2761 = vsel %vm2748, %v2758, %v2760
        %v2762 = vrot.slane %v331, 3
        %v2763 = vsel %vm2748, %v2760, %v2762
        %v2764 = vrot.slane %v332, 3
        %v2765 = vsel %vm2748, %v2762, %v2764
        %v2766 = vrot.slane %v333, 3
        %v2767 = vsel %vm2748, %v2764, %v2766
        %v2768 = vrot.slane %v334, 3
        %v2769 = vsel %vm2748, %v2766, %v2768
        %v2770 = vrot.slane %v335, 3
        %v2771 = vsel %vm2748, %v2768, %v2770
        %v2772 = vrot.slane %v336, 3
        %v2773 = vsel %vm2748, %v2770, %v2772
        %v2774 = vrot.slane %v337, 3
        %v2775 = vsel %vm2748, %v2772, %v2774
        %v2776 = vrot.slane %v338, 3
        %v2777 = vsel %vm2748, %v2774, %v2776
        %v2778 = vrot.slane %v339, 3
        %v2779 = vsel %vm2748, %v2776, %v2778
        %v2780 = vrot.slane %v1258, 3
        %v2781 = vsel %vm2748, %v2778, %v2780
        %v2782 = vrot.slane %v2160, 3
        %v2783 = vsel %vm2748, %v2780, %v2782
        %v2784 = vrot.slane %v2161, 3
        %v2785 = vsel %vm2748, %v2782, %v2784
        %v2787 = vsel %vm490, %v2751, 0
        %v2790 = vsel %vm490, %v2753, 0
        %v2793 = vsel %vm490, %v2755, 0
        %v2796 = vsel %vm490, %v2757, 0
        %v2799 = vsel %vm490, %v2759, 0
        %v2802 = vsel %vm490, %v2761, 0
        %v2805 = vsel %vm490, %v2763, 0
        %v2808 = vsel %vm490, %v2765, 0
        %v2811 = vsel %vm490, %v2767, 0
        %v2814 = vsel %vm490, %v2769, 0
        %v2817 = vsel %vm490, %v2771, 0
        %v2820 = vsel %vm490, %v2773, 0
        %v2823 = vsel %vm490, %v2775, 0
        %v2826 = vsel %vm490, %v2777, 0
        %v2829 = vsel %vm490, %v2779, 0
        %v2832 = vsel %vm490, %v2781, 0
        %v2835 = vsel %vm490, %v2783, 0
        %v2838 = vsel %vm490, %v2785, 0
        %v2841 = vsel %vm545, %v2747, 0
        %2843 = vmatprep.subr.bf16.mxu0 0
        %2844 = vmatpush1.bf16.msra.mxu0 %v2841
        %2845 = vmatprep.subr.bf16.mxu0 0
        %2846 = vmatpush1.bf16.msra.mxu0 0
        %2847 = vmatprep.subr.bf16.mxu0 0
        %2848 = vmatpush1.bf16.msra.mxu0 0
        %2849 = vmatprep.subr.bf16.mxu0 0
        %2850 = vmatpush1.bf16.msra.mxu0 0
        %2851 = vmatprep.subr.bf16.mxu0 0
        %2852 = vmatpush1.bf16.msra.mxu0 0
        %2853 = vmatprep.subr.bf16.mxu0 0
        %2854 = vmatpush1.bf16.msra.mxu0 0
        %2855 = vmatprep.subr.bf16.mxu0 0
        %2856 = vmatpush1.bf16.msra.mxu0 0
        %2857 = vmatprep.subr.bf16.mxu0 0
        %2858 = vmatpush1.bf16.msra.mxu0 0
        %2859 = vmatprep.subr.bf16.mxu0 0
        %2860 = vmatpush1.bf16.msra.mxu0 0
        %2861 = vmatprep.subr.bf16.mxu0 0
        %2862 = vmatpush1.bf16.msra.mxu0 0
        %2863 = vmatprep.subr.bf16.mxu0 0
        %2864 = vmatpush1.bf16.msra.mxu0 0
        %2865 = vmatprep.subr.bf16.mxu0 0
        %2866 = vmatpush1.bf16.msra.mxu0 0
        %2867 = vmatprep.subr.bf16.mxu0 0
        %2868 = vmatpush1.bf16.msra.mxu0 0
        %2869 = vmatprep.subr.bf16.mxu0 0
        %2870 = vmatpush1.bf16.msra.mxu0 0
        %2871 = vmatprep.subr.bf16.mxu0 0
        %2872 = vmatpush1.bf16.msra.mxu0 0
        %2873 = vmatprep.subr.bf16.mxu0 0
        %2874 = vmatpush1.bf16.msra.mxu0 0
        %2875 = vmatprep.mubr.bf16.mxu0 0
        %2876 = vmatmul.mubr.bf16.gmra.mrb[0].mxu0 %v2787
        %v2877 = vpop.f32.mrb[0].mxu0
        %v2878 = vadd.f32 0.0, %v2877
        %v2879 = vpop.f32.mrb[0].mxu0
        %v2880 = vpop.f32.mrb[0].mxu0
        %v2881 = vadd.f32 0.0, %v2880
        %v2882 = vpop.f32.mrb[0].mxu0
        %2883 = vmatprep.mubr.bf16.mxu0 0
        %2884 = vmatmul.mubr.bf16.gmra.mrb[0].mxu0 %v2790
        %v2885 = vpop.f32.mrb[0].mxu0
        %v2886 = vadd.f32 0.0, %v2885
        %v2887 = vpop.f32.mrb[0].mxu0
        %v2888 = vpop.f32.mrb[0].mxu0
        %v2889 = vadd.f32 0.0, %v2888
        %v2890 = vpop.f32.mrb[0].mxu0
        %2891 = vmatprep.mubr.bf16.mxu0 0
        %2892 = vmatmul.mubr.bf16.gmra.mrb[0].mxu0 %v2793
        %v2893 = vpop.f32.mrb[0].mxu0
        %v2894 = vadd.f32 0.0, %v2893
        %v2895 = vpop.f32.mrb[0].mxu0
        %v2896 = vpop.f32.mrb[0].mxu0
        %v2897 = vadd.f32 0.0, %v2896
        %v2898 = vpop.f32.mrb[0].mxu0
        %2899 = vmatprep.mubr.bf16.mxu0 0
        %2900 = vmatmul.mubr.bf16.gmra.mrb[0].mxu0 %v2796
        %v2901 = vpop.f32.mrb[0].mxu0
        %v2902 = vadd.f32 0.0, %v2901
        %v2903 = vpop.f32.mrb[0].mxu0
        %v2904 = vpop.f32.mrb[0].mxu0
        %v2905 = vadd.f32 0.0, %v2904
        %v2906 = vpop.f32.mrb[0].mxu0
        %2907 = vmatprep.mubr.bf16.mxu0 0
        %2908 = vmatmul.mubr.bf16.gmra.mrb[0].mxu0 %v2799
        %v2909 = vpop.f32.mrb[0].mxu0
        %v2910 = vadd.f32 0.0, %v2909
        %v2911 = vpop.f32.mrb[0].mxu0
        %v2912 = vpop.f32.mrb[0].mxu0
        %v2913 = vadd.f32 0.0, %v2912
        %v2914 = vpop.f32.mrb[0].mxu0
        %2915 = vmatprep.mubr.bf16.mxu0 0
        %2916 = vmatmul.mubr.bf16.gmra.mrb[0].mxu0 %v2802
        %v2917 = vpop.f32.mrb[0].mxu0
        %v2918 = vadd.f32 0.0, %v2917
        %v2919 = vpop.f32.mrb[0].mxu0
        %v2920 = vpop.f32.mrb[0].mxu0
        %v2921 = vadd.f32 0.0, %v2920
        %v2922 = vpop.f32.mrb[0].mxu0
        %2923 = vmatprep.mubr.bf16.mxu0 0
        %2924 = vmatmul.mubr.bf16.gmra.mrb[0].mxu0 %v2805
        %v2925 = vpop.f32.mrb[0].mxu0
        %v2926 = vadd.f32 0.0, %v2925
        %v2927 = vpop.f32.mrb[0].mxu0
        %v2928 = vpop.f32.mrb[0].mxu0
        %v2929 = vadd.f32 0.0, %v2928
        %v2930 = vpop.f32.mrb[0].mxu0
        %2931 = vmatprep.mubr.bf16.mxu0 0
        %2932 = vmatmul.mubr.bf16.gmra.mrb[0].mxu0 %v2808
        %v2933 = vpop.f32.mrb[0].mxu0
        %v2934 = vadd.f32 0.0, %v2933
        %v2935 = vpop.f32.mrb[0].mxu0
        %v2936 = vpop.f32.mrb[0].mxu0
        %v2937 = vadd.f32 0.0, %v2936
        %v2938 = vpop.f32.mrb[0].mxu0
        %2939 = vmatprep.mubr.bf16.mxu0 0
        %2940 = vmatmul.mubr.bf16.gmra.mrb[0].mxu0 %v2811
        %v2941 = vpop.f32.mrb[0].mxu0
        %v2942 = vadd.f32 0.0, %v2941
        %v2943 = vpop.f32.mrb[0].mxu0
        %v2944 = vpop.f32.mrb[0].mxu0
        %v2945 = vadd.f32 0.0, %v2944
        %v2946 = vpop.f32.mrb[0].mxu0
        %2947 = vmatprep.mubr.bf16.mxu0 0
        %2948 = vmatmul.mubr.bf16.gmra.mrb[0].mxu0 %v2814
        %v2949 = vpop.f32.mrb[0].mxu0
        %v2950 = vadd.f32 0.0, %v2949
        %v2951 = vpop.f32.mrb[0].mxu0
        %v2952 = vpop.f32.mrb[0].mxu0
        %v2953 = vadd.f32 0.0, %v2952
        %v2954 = vpop.f32.mrb[0].mxu0
        %2955 = vmatprep.mubr.bf16.mxu0 0
        %2956 = vmatmul.mubr.bf16.gmra.mrb[0].mxu0 %v2817
        %v2957 = vpop.f32.mrb[0].mxu0
        %v2958 = vadd.f32 0.0, %v2957
        %v2959 = vpop.f32.mrb[0].mxu0
        %v2960 = vpop.f32.mrb[0].mxu0
        %v2961 = vadd.f32 0.0, %v2960
        %v2962 = vpop.f32.mrb[0].mxu0
        %2963 = vmatprep.mubr.bf16.mxu0 0
        %2964 = vmatmul.mubr.bf16.gmra.mrb[0].mxu0 %v2820
        %v2965 = vpop.f32.mrb[0].mxu0
        %v2966 = vadd.f32 0.0, %v2965
        %v2967 = vpop.f32.mrb[0].mxu0
        %v2968 = vpop.f32.mrb[0].mxu0
        %v2969 = vadd.f32 0.0, %v2968
        %v2970 = vpop.f32.mrb[0].mxu0
        %2971 = vmatprep.mubr.bf16.mxu0 0
        %2972 = vmatmul.mubr.bf16.gmra.mrb[0].mxu0 %v2823
        %v2973 = vpop.f32.mrb[0].mxu0
        %v2974 = vadd.f32 0.0, %v2973
        %v2975 = vpop.f32.mrb[0].mxu0
        %v2976 = vpop.f32.mrb[0].mxu0
        %v2977 = vadd.f32 0.0, %v2976
        %v2978 = vpop.f32.mrb[0].mxu0
        %2979 = vmatprep.mubr.bf16.mxu0 0
        %2980 = vmatmul.mubr.bf16.gmra.mrb[0].mxu0 %v2826
        %v2981 = vpop.f32.mrb[0].mxu0
        %v2982 = vadd.f32 0.0, %v2981
        %v2983 = vpop.f32.mrb[0].mxu0
        %v2984 = vpop.f32.mrb[0].mxu0
        %v2985 = vadd.f32 0.0, %v2984
        %v2986 = vpop.f32.mrb[0].mxu0
        %2987 = vmatprep.mubr.bf16.mxu0 0
        %2988 = vmatmul.mubr.bf16.gmra.mrb[0].mxu0 %v2829
        %v2989 = vpop.f32.mrb[0].mxu0
        %v2990 = vadd.f32 0.0, %v2989
        %v2991 = vpop.f32.mrb[0].mxu0
        %v2992 = vpop.f32.mrb[0].mxu0
        %v2993 = vadd.f32 0.0, %v2992
        %v2994 = vpop.f32.mrb[0].mxu0
        %2995 = vmatprep.mubr.bf16.mxu0 0
        %2996 = vmatmul.mubr.bf16.gmra.mrb[0].mxu0 %v2832
        %v2997 = vpop.f32.mrb[0].mxu0
        %v2998 = vadd.f32 0.0, %v2997
        %v2999 = vpop.f32.mrb[0].mxu0
        %v3000 = vpop.f32.mrb[0].mxu0
        %v3001 = vadd.f32 0.0, %v3000
        %v3002 = vpop.f32.mrb[0].mxu0
        %3003 = vmatprep.mubr.bf16.mxu0 0
        %3004 = vmatmul.mubr.bf16.gmra.mrb[0].mxu0 %v2835
        %v3005 = vpop.f32.mrb[0].mxu0
        %v3006 = vadd.f32 0.0, %v3005
        %v3007 = vpop.f32.mrb[0].mxu0
        %v3008 = vpop.f32.mrb[0].mxu0
        %v3009 = vadd.f32 0.0, %v3008
        %v3010 = vpop.f32.mrb[0].mxu0
        %3011 = vmatprep.mubr.bf16.mxu0 0
        %3012 = vmatmul.mubr.bf16.gmra.mrb[0].mxu0 %v2838
        %v3013 = vpop.f32.mrb[0].mxu0
        %v3014 = vadd.f32 0.0, %v3013
        %v3015 = vpop.f32.mrb[0].mxu0
        %v3016 = vpop.f32.mrb[0].mxu0
        %v3017 = vadd.f32 0.0, %v3016
        %v3018 = vpop.f32.mrb[0].mxu0
        %3019 = vdwg.mxu0
        %v3020 = vadd.f32 %v2710, %v2878
        %v3021 = vadd.f32 %v2711, %v2881
        %v3022 = vadd.f32 %v2712, %v2886
        %v3023 = vadd.f32 %v2713, %v2889
        %v3024 = vadd.f32 %v2714, %v2894
        %v3025 = vadd.f32 %v2715, %v2897
        %v3026 = vadd.f32 %v2716, %v2902
        %v3027 = vadd.f32 %v2717, %v2905
        %v3028 = vadd.f32 %v2718, %v2910
        %v3029 = vadd.f32 %v2719, %v2913
        %v3030 = vadd.f32 %v2720, %v2918
        %v3031 = vadd.f32 %v2721, %v2921
        %v3032 = vadd.f32 %v2722, %v2926
        %v3033 = vadd.f32 %v2723, %v2929
        %v3034 = vadd.f32 %v2724, %v2934
        %v3035 = vadd.f32 %v2725, %v2937
        %v3036 = vadd.f32 %v2726, %v2942
        %v3037 = vadd.f32 %v2727, %v2945
        %v3038 = vadd.f32 %v2728, %v2950
        %v3039 = vadd.f32 %v2729, %v2953
        %v3040 = vadd.f32 %v2730, %v2958
        %v3041 = vadd.f32 %v2731, %v2961
        %v3042 = vadd.f32 %v2732, %v2966
        %v3043 = vadd.f32 %v2733, %v2969
        %v3044 = vadd.f32 %v2734, %v2974
        %v3045 = vadd.f32 %v2735, %v2977
        %v3046 = vadd.f32 %v2736, %v2982
        %v3047 = vadd.f32 %v2737, %v2985
        %v3048 = vadd.f32 %v2738, %v2990
        %v3049 = vadd.f32 %v2739, %v2993
        %v3050 = vadd.f32 %v2740, %v2998
        %v3051 = vadd.f32 %v2741, %v3001
        %v3052 = vadd.f32 %v2742, %v3006
        %v3053 = vadd.f32 %v2743, %v3009
        %v3054 = vadd.f32 %v2744, %v3014
        %v3055 = vadd.f32 %v2745, %v3017
        %v3056 = vlaneseq
        %v3057 = vshrl.u32 %v3056, 7
        %v3058 = vadd.s32 %v3057, 8
        %v3059 = vadd.s32 %v3057, 16
        %v3060 = vadd.s32 %v3057, 24
        %v3061 = vadd.s32 %v3057, 32
        %v3062 = vadd.s32 %v3057, 40
        %v3063 = vadd.s32 %v3057, 48
        %v3064 = vadd.s32 %v3057, 56
        %v3065 = vadd.s32 %v3057, 64
        %v3066 = vadd.s32 %v3057, 72
        %v3067 = vadd.s32 %v3057, 80
        %v3068 = vadd.s32 %v3057, 88
        %v3069 = vadd.s32 %v3057, 96
        %v3070 = vadd.s32 %v3057, 104
        %v3071 = vadd.s32 %v3057, 112
        %v3072 = vadd.s32 %v3057, 120
        %v3073 = vadd.s32 %v3057, 128
        %v3074 = vadd.s32 %v3057, 136
        %v3075 = vadd.s32 %v3057, 144
        %v3076 = vadd.s32 %v3057, 152
        %v3077 = vadd.s32 %v3057, 160
        %v3078 = vadd.s32 %v3057, 168
        %v3079 = vadd.s32 %v3057, 176
        %v3080 = vadd.s32 %v3057, 184
        %v3081 = vadd.s32 %v3057, 192
        %v3082 = vadd.s32 %v3057, 200
        %v3083 = vadd.s32 %v3057, 208
        %v3084 = vadd.s32 %v3057, 216
        %v3085 = vadd.s32 %v3057, 224
        %v3086 = vadd.s32 %v3057, 232
        %v3087 = vadd.s32 %v3057, 240
        %v3088 = vadd.s32 %v3057, 248
        %v3089 = vadd.s32 %v3057, 256
        %v3090 = vadd.s32 %v3057, 264
        %v3091 = vadd.s32 %v3057, 272
        %v3092 = vadd.s32 %v3057, 280
        %v3093 = vstv %s199
        %v3094 = vadd.s32 %v3093, %v3057
        %v3095 = vadd.s32 %v3093, %v3058
        %v3096 = vadd.s32 %v3093, %v3059
        %v3097 = vadd.s32 %v3093, %v3060
        %v3098 = vadd.s32 %v3093, %v3061
        %v3099 = vadd.s32 %v3093, %v3062
        %v3100 = vadd.s32 %v3093, %v3063
        %v3101 = vadd.s32 %v3093, %v3064
        %v3102 = vadd.s32 %v3093, %v3065
        %v3103 = vadd.s32 %v3093, %v3066
        %v3104 = vadd.s32 %v3093, %v3067
        %v3105 = vadd.s32 %v3093, %v3068
        %v3106 = vadd.s32 %v3093, %v3069
        %v3107 = vadd.s32 %v3093, %v3070
        %v3108 = vadd.s32 %v3093, %v3071
        %v3109 = vadd.s32 %v3093, %v3072
        %v3110 = vadd.s32 %v3093, %v3073
        %v3111 = vadd.s32 %v3093, %v3074
        %v3112 = vadd.s32 %v3093, %v3075
        %v3113 = vadd.s32 %v3093, %v3076
        %v3114 = vadd.s32 %v3093, %v3077
        %v3115 = vadd.s32 %v3093, %v3078
        %v3116 = vadd.s32 %v3093, %v3079
        %v3117 = vadd.s32 %v3093, %v3080
        %v3118 = vadd.s32 %v3093, %v3081
        %v3119 = vadd.s32 %v3093, %v3082
        %v3120 = vadd.s32 %v3093, %v3083
        %v3121 = vadd.s32 %v3093, %v3084
        %v3122 = vadd.s32 %v3093, %v3085
        %v3123 = vadd.s32 %v3093, %v3086
        %v3124 = vadd.s32 %v3093, %v3087
        %v3125 = vadd.s32 %v3093, %v3088
        %v3126 = vadd.s32 %v3093, %v3089
        %v3127 = vadd.s32 %v3093, %v3090
        %v3128 = vadd.s32 %v3093, %v3091
        %v3129 = vadd.s32 %v3093, %v3092
        %v3130 = vcvt.s32.f32 %v3094
        %v3131 = vcvt.s32.f32 %v3095
        %v3132 = vcvt.s32.f32 %v3096
        %v3133 = vcvt.s32.f32 %v3097
        %v3134 = vcvt.s32.f32 %v3098
        %v3135 = vcvt.s32.f32 %v3099
        %v3136 = vcvt.s32.f32 %v3100
        %v3137 = vcvt.s32.f32 %v3101
        %v3138 = vcvt.s32.f32 %v3102
        %v3139 = vcvt.s32.f32 %v3103
        %v3140 = vcvt.s32.f32 %v3104
        %v3141 = vcvt.s32.f32 %v3105
        %v3142 = vcvt.s32.f32 %v3106
        %v3143 = vcvt.s32.f32 %v3107
        %v3144 = vcvt.s32.f32 %v3108
        %v3145 = vcvt.s32.f32 %v3109
        %v3146 = vcvt.s32.f32 %v3110
        %v3147 = vcvt.s32.f32 %v3111
        %v3148 = vcvt.s32.f32 %v3112
        %v3149 = vcvt.s32.f32 %v3113
        %v3150 = vcvt.s32.f32 %v3114
        %v3151 = vcvt.s32.f32 %v3115
        %v3152 = vcvt.s32.f32 %v3116
        %v3153 = vcvt.s32.f32 %v3117
        %v3154 = vcvt.s32.f32 %v3118
        %v3155 = vcvt.s32.f32 %v3119
        %v3156 = vcvt.s32.f32 %v3120
        %v3157 = vcvt.s32.f32 %v3121
        %v3158 = vcvt.s32.f32 %v3122
        %v3159 = vcvt.s32.f32 %v3123
        %v3160 = vcvt.s32.f32 %v3124
        %v3161 = vcvt.s32.f32 %v3125
        %v3162 = vcvt.s32.f32 %v3126
        %v3163 = vcvt.s32.f32 %v3127
        %v3164 = vcvt.s32.f32 %v3128
        %v3165 = vcvt.s32.f32 %v3129
        %v3166 = vadd.f32 %v3130, 0.5
        %v3167 = vadd.f32 %v3131, 0.5
        %v3168 = vadd.f32 %v3132, 0.5
        %v3169 = vadd.f32 %v3133, 0.5
        %v3170 = vadd.f32 %v3134, 0.5
        %v3171 = vadd.f32 %v3135, 0.5
        %v3172 = vadd.f32 %v3136, 0.5
        %v3173 = vadd.f32 %v3137, 0.5
        %v3174 = vadd.f32 %v3138, 0.5
        %v3175 = vadd.f32 %v3139, 0.5
        %v3176 = vadd.f32 %v3140, 0.5
        %v3177 = vadd.f32 %v3141, 0.5
        %v3178 = vadd.f32 %v3142, 0.5
        %v3179 = vadd.f32 %v3143, 0.5
        %v3180 = vadd.f32 %v3144, 0.5
        %v3181 = vadd.f32 %v3145, 0.5
        %v3182 = vadd.f32 %v3146, 0.5
        %v3183 = vadd.f32 %v3147, 0.5
        %v3184 = vadd.f32 %v3148, 0.5
        %v3185 = vadd.f32 %v3149, 0.5
        %v3186 = vadd.f32 %v3150, 0.5
        %v3187 = vadd.f32 %v3151, 0.5
        %v3188 = vadd.f32 %v3152, 0.5
        %v3189 = vadd.f32 %v3153, 0.5
        %v3190 = vadd.f32 %v3154, 0.5
        %v3191 = vadd.f32 %v3155, 0.5
        %v3192 = vadd.f32 %v3156, 0.5
        %v3193 = vadd.f32 %v3157, 0.5
        %v3194 = vadd.f32 %v3158, 0.5
        %v3195 = vadd.f32 %v3159, 0.5
        %v3196 = vadd.f32 %v3160, 0.5
        %v3197 = vadd.f32 %v3161, 0.5
        %v3198 = vadd.f32 %v3162, 0.5
        %v3199 = vadd.f32 %v3163, 0.5
        %v3200 = vadd.f32 %v3164, 0.5
        %v3201 = vadd.f32 %v3165, 0.5
        %v3202 = vmul.f32 %v3166, 0.055555556
        %v3203 = vmul.f32 %v3167, 0.055555556
        %v3204 = vmul.f32 %v3168, 0.055555556
        %v3205 = vmul.f32 %v3169, 0.055555556
        %v3206 = vmul.f32 %v3170, 0.055555556
        %v3207 = vmul.f32 %v3171, 0.055555556
        %v3208 = vmul.f32 %v3172, 0.055555556
        %v3209 = vmul.f32 %v3173, 0.055555556
        %v3210 = vmul.f32 %v3174, 0.055555556
        %v3211 = vmul.f32 %v3175, 0.055555556
        %v3212 = vmul.f32 %v3176, 0.055555556
        %v3213 = vmul.f32 %v3177, 0.055555556
        %v3214 = vmul.f32 %v3178, 0.055555556
        %v3215 = vmul.f32 %v3179, 0.055555556
        %v3216 = vmul.f32 %v3180, 0.055555556
        %v3217 = vmul.f32 %v3181, 0.055555556
        %v3218 = vmul.f32 %v3182, 0.055555556
        %v3219 = vmul.f32 %v3183, 0.055555556
        %v3220 = vmul.f32 %v3184, 0.055555556
        %v3221 = vmul.f32 %v3185, 0.055555556
        %v3222 = vmul.f32 %v3186, 0.055555556
        %v3223 = vmul.f32 %v3187, 0.055555556
        %v3224 = vmul.f32 %v3188, 0.055555556
        %v3225 = vmul.f32 %v3189, 0.055555556
        %v3226 = vmul.f32 %v3190, 0.055555556
        %v3227 = vmul.f32 %v3191, 0.055555556
        %v3228 = vmul.f32 %v3192, 0.055555556
        %v3229 = vmul.f32 %v3193, 0.055555556
        %v3230 = vmul.f32 %v3194, 0.055555556
        %v3231 = vmul.f32 %v3195, 0.055555556
        %v3232 = vmul.f32 %v3196, 0.055555556
        %v3233 = vmul.f32 %v3197, 0.055555556
        %v3234 = vmul.f32 %v3198, 0.055555556
        %v3235 = vmul.f32 %v3199, 0.055555556
        %v3236 = vmul.f32 %v3200, 0.055555556
        %v3237 = vmul.f32 %v3201, 0.055555556
        %v3238 = vfloor.f32 %v3202
        %v3239 = vfloor.f32 %v3203
        %v3240 = vfloor.f32 %v3204
        %v3241 = vfloor.f32 %v3205
        %v3242 = vfloor.f32 %v3206
        %v3243 = vfloor.f32 %v3207
        %v3244 = vfloor.f32 %v3208
        %v3245 = vfloor.f32 %v3209
        %v3246 = vfloor.f32 %v3210
        %v3247 = vfloor.f32 %v3211
        %v3248 = vfloor.f32 %v3212
        %v3249 = vfloor.f32 %v3213
        %v3250 = vfloor.f32 %v3214
        %v3251 = vfloor.f32 %v3215
        %v3252 = vfloor.f32 %v3216
        %v3253 = vfloor.f32 %v3217
        %v3254 = vfloor.f32 %v3218
        %v3255 = vfloor.f32 %v3219
        %v3256 = vfloor.f32 %v3220
        %v3257 = vfloor.f32 %v3221
        %v3258 = vfloor.f32 %v3222
        %v3259 = vfloor.f32 %v3223
        %v3260 = vfloor.f32 %v3224
        %v3261 = vfloor.f32 %v3225
        %v3262 = vfloor.f32 %v3226
        %v3263 = vfloor.f32 %v3227
        %v3264 = vfloor.f32 %v3228
        %v3265 = vfloor.f32 %v3229
        %v3266 = vfloor.f32 %v3230
        %v3267 = vfloor.f32 %v3231
        %v3268 = vfloor.f32 %v3232
        %v3269 = vfloor.f32 %v3233
        %v3270 = vfloor.f32 %v3234
        %v3271 = vfloor.f32 %v3235
        %v3272 = vfloor.f32 %v3236
        %v3273 = vfloor.f32 %v3237
        %v3274 = vmul.f32 %v3238, 18.0
        %v3275 = vmul.f32 %v3239, 18.0
        %v3276 = vmul.f32 %v3240, 18.0
        %v3277 = vmul.f32 %v3241, 18.0
        %v3278 = vmul.f32 %v3242, 18.0
        %v3279 = vmul.f32 %v3243, 18.0
        %v3280 = vmul.f32 %v3244, 18.0
        %v3281 = vmul.f32 %v3245, 18.0
        %v3282 = vmul.f32 %v3246, 18.0
        %v3283 = vmul.f32 %v3247, 18.0
        %v3284 = vmul.f32 %v3248, 18.0
        %v3285 = vmul.f32 %v3249, 18.0
        %v3286 = vmul.f32 %v3250, 18.0
        %v3287 = vmul.f32 %v3251, 18.0
        %v3288 = vmul.f32 %v3252, 18.0
        %v3289 = vmul.f32 %v3253, 18.0
        %v3290 = vmul.f32 %v3254, 18.0
        %v3291 = vmul.f32 %v3255, 18.0
        %v3292 = vmul.f32 %v3256, 18.0
        %v3293 = vmul.f32 %v3257, 18.0
        %v3294 = vmul.f32 %v3258, 18.0
        %v3295 = vmul.f32 %v3259, 18.0
        %v3296 = vmul.f32 %v3260, 18.0
        %v3297 = vmul.f32 %v3261, 18.0
        %v3298 = vmul.f32 %v3262, 18.0
        %v3299 = vmul.f32 %v3263, 18.0
        %v3300 = vmul.f32 %v3264, 18.0
        %v3301 = vmul.f32 %v3265, 18.0
        %v3302 = vmul.f32 %v3266, 18.0
        %v3303 = vmul.f32 %v3267, 18.0
        %v3304 = vmul.f32 %v3268, 18.0
        %v3305 = vmul.f32 %v3269, 18.0
        %v3306 = vmul.f32 %v3270, 18.0
        %v3307 = vmul.f32 %v3271, 18.0
        %v3308 = vmul.f32 %v3272, 18.0
        %v3309 = vmul.f32 %v3273, 18.0
        %v3310 = vsub.f32 %v3130, %v3274
        %v3311 = vsub.f32 %v3131, %v3275
        %v3312 = vsub.f32 %v3132, %v3276
        %v3313 = vsub.f32 %v3133, %v3277
        %v3314 = vsub.f32 %v3134, %v3278
        %v3315 = vsub.f32 %v3135, %v3279
        %v3316 = vsub.f32 %v3136, %v3280
        %v3317 = vsub.f32 %v3137, %v3281
        %v3318 = vsub.f32 %v3138, %v3282
        %v3319 = vsub.f32 %v3139, %v3283
        %v3320 = vsub.f32 %v3140, %v3284
        %v3321 = vsub.f32 %v3141, %v3285
        %v3322 = vsub.f32 %v3142, %v3286
        %v3323 = vsub.f32 %v3143, %v3287
        %v3324 = vsub.f32 %v3144, %v3288
        %v3325 = vsub.f32 %v3145, %v3289
        %v3326 = vsub.f32 %v3146, %v3290
        %v3327 = vsub.f32 %v3147, %v3291
        %v3328 = vsub.f32 %v3148, %v3292
        %v3329 = vsub.f32 %v3149, %v3293
        %v3330 = vsub.f32 %v3150, %v3294
        %v3331 = vsub.f32 %v3151, %v3295
        %v3332 = vsub.f32 %v3152, %v3296
        %v3333 = vsub.f32 %v3153, %v3297
        %v3334 = vsub.f32 %v3154, %v3298
        %v3335 = vsub.f32 %v3155, %v3299
        %v3336 = vsub.f32 %v3156, %v3300
        %v3337 = vsub.f32 %v3157, %v3301
        %v3338 = vsub.f32 %v3158, %v3302
        %v3339 = vsub.f32 %v3159, %v3303
        %v3340 = vsub.f32 %v3160, %v3304
        %v3341 = vsub.f32 %v3161, %v3305
        %v3342 = vsub.f32 %v3162, %v3306
        %v3343 = vsub.f32 %v3163, %v3307
        %v3344 = vsub.f32 %v3164, %v3308
        %v3345 = vsub.f32 %v3165, %v3309
        %vm3346 = vcmp.lt.f32.partialorder %v3310, 16.0
        %vm3347 = vcmp.lt.f32.partialorder %v3311, 16.0
        %vm3348 = vcmp.lt.f32.partialorder %v3312, 16.0
        %vm3349 = vcmp.lt.f32.partialorder %v3313, 16.0
        %vm3350 = vcmp.lt.f32.partialorder %v3314, 16.0
        %vm3351 = vcmp.lt.f32.partialorder %v3315, 16.0
        %vm3352 = vcmp.lt.f32.partialorder %v3316, 16.0
        %vm3353 = vcmp.lt.f32.partialorder %v3317, 16.0
        %vm3354 = vcmp.lt.f32.partialorder %v3318, 16.0
        %vm3355 = vcmp.lt.f32.partialorder %v3319, 16.0
        %vm3356 = vcmp.lt.f32.partialorder %v3320, 16.0
        %vm3357 = vcmp.lt.f32.partialorder %v3321, 16.0
        %vm3358 = vcmp.lt.f32.partialorder %v3322, 16.0
        %vm3359 = vcmp.lt.f32.partialorder %v3323, 16.0
        %vm3360 = vcmp.lt.f32.partialorder %v3324, 16.0
        %vm3361 = vcmp.lt.f32.partialorder %v3325, 16.0
        %vm3362 = vcmp.lt.f32.partialorder %v3326, 16.0
        %vm3363 = vcmp.lt.f32.partialorder %v3327, 16.0
        %vm3364 = vcmp.lt.f32.partialorder %v3328, 16.0
        %vm3365 = vcmp.lt.f32.partialorder %v3329, 16.0
        %vm3366 = vcmp.lt.f32.partialorder %v3330, 16.0
        %vm3367 = vcmp.lt.f32.partialorder %v3331, 16.0
        %vm3368 = vcmp.lt.f32.partialorder %v3332, 16.0
        %vm3369 = vcmp.lt.f32.partialorder %v3333, 16.0
        %vm3370 = vcmp.lt.f32.partialorder %v3334, 16.0
        %vm3371 = vcmp.lt.f32.partialorder %v3335, 16.0
        %vm3372 = vcmp.lt.f32.partialorder %v3336, 16.0
        %vm3373 = vcmp.lt.f32.partialorder %v3337, 16.0
        %vm3374 = vcmp.lt.f32.partialorder %v3338, 16.0
        %vm3375 = vcmp.lt.f32.partialorder %v3339, 16.0
        %vm3376 = vcmp.lt.f32.partialorder %v3340, 16.0
        %vm3377 = vcmp.lt.f32.partialorder %v3341, 16.0
        %vm3378 = vcmp.lt.f32.partialorder %v3342, 16.0
        %vm3379 = vcmp.lt.f32.partialorder %v3343, 16.0
        %vm3380 = vcmp.lt.f32.partialorder %v3344, 16.0
        %vm3381 = vcmp.lt.f32.partialorder %v3345, 16.0
        %vm3382 = vcmp.lt.s32.totalorder %v3094, 286
        %vm3383 = vcmp.lt.s32.totalorder %v3095, 286
        %vm3384 = vcmp.lt.s32.totalorder %v3096, 286
        %vm3385 = vcmp.lt.s32.totalorder %v3097, 286
        %vm3386 = vcmp.lt.s32.totalorder %v3098, 286
        %vm3387 = vcmp.lt.s32.totalorder %v3099, 286
        %vm3388 = vcmp.lt.s32.totalorder %v3100, 286
        %vm3389 = vcmp.lt.s32.totalorder %v3101, 286
        %vm3390 = vcmp.lt.s32.totalorder %v3102, 286
        %vm3391 = vcmp.lt.s32.totalorder %v3103, 286
        %vm3392 = vcmp.lt.s32.totalorder %v3104, 286
        %vm3393 = vcmp.lt.s32.totalorder %v3105, 286
        %vm3394 = vcmp.lt.s32.totalorder %v3106, 286
        %vm3395 = vcmp.lt.s32.totalorder %v3107, 286
        %vm3396 = vcmp.lt.s32.totalorder %v3108, 286
        %vm3397 = vcmp.lt.s32.totalorder %v3109, 286
        %vm3398 = vcmp.lt.s32.totalorder %v3110, 286
        %vm3399 = vcmp.lt.s32.totalorder %v3111, 286
        %vm3400 = vcmp.lt.s32.totalorder %v3112, 286
        %vm3401 = vcmp.lt.s32.totalorder %v3113, 286
        %vm3402 = vcmp.lt.s32.totalorder %v3114, 286
        %vm3403 = vcmp.lt.s32.totalorder %v3115, 286
        %vm3404 = vcmp.lt.s32.totalorder %v3116, 286
        %vm3405 = vcmp.lt.s32.totalorder %v3117, 286
        %vm3406 = vcmp.lt.s32.totalorder %v3118, 286
        %vm3407 = vcmp.lt.s32.totalorder %v3119, 286
        %vm3408 = vcmp.lt.s32.totalorder %v3120, 286
        %vm3409 = vcmp.lt.s32.totalorder %v3121, 286
        %vm3410 = vcmp.lt.s32.totalorder %v3122, 286
        %vm3411 = vcmp.lt.s32.totalorder %v3123, 286
        %vm3412 = vcmp.lt.s32.totalorder %v3124, 286
        %vm3413 = vcmp.lt.s32.totalorder %v3125, 286
        %vm3414 = vcmp.lt.s32.totalorder %v3126, 286
        %vm3415 = vcmp.lt.s32.totalorder %v3127, 286
        %vm3416 = vcmp.lt.s32.totalorder %v3128, 286
        %vm3417 = vcmp.lt.s32.totalorder %v3129, 286
        %vm3418 = vmand %vm3346, %vm3382
        %vm3419 = vmand %vm3347, %vm3383
        %vm3420 = vmand %vm3348, %vm3384
        %vm3421 = vmand %vm3349, %vm3385
        %vm3422 = vmand %vm3350, %vm3386
        %vm3423 = vmand %vm3351, %vm3387
        %vm3424 = vmand %vm3352, %vm3388
        %vm3425 = vmand %vm3353, %vm3389
        %vm3426 = vmand %vm3354, %vm3390
        %vm3427 = vmand %vm3355, %vm3391
        %vm3428 = vmand %vm3356, %vm3392
        %vm3429 = vmand %vm3357, %vm3393
        %vm3430 = vmand %vm3358, %vm3394
        %vm3431 = vmand %vm3359, %vm3395
        %vm3432 = vmand %vm3360, %vm3396
        %vm3433 = vmand %vm3361, %vm3397
        %vm3434 = vmand %vm3362, %vm3398
        %vm3435 = vmand %vm3363, %vm3399
        %vm3436 = vmand %vm3364, %vm3400
        %vm3437 = vmand %vm3365, %vm3401
        %vm3438 = vmand %vm3366, %vm3402
        %vm3439 = vmand %vm3367, %vm3403
        %vm3440 = vmand %vm3368, %vm3404
        %vm3441 = vmand %vm3369, %vm3405
        %vm3442 = vmand %vm3370, %vm3406
        %vm3443 = vmand %vm3371, %vm3407
        %vm3444 = vmand %vm3372, %vm3408
        %vm3445 = vmand %vm3373, %vm3409
        %vm3446 = vmand %vm3374, %vm3410
        %vm3447 = vmand %vm3375, %vm3411
        %vm3448 = vmand %vm3376, %vm3412
        %vm3449 = vmand %vm3377, %vm3413
        %vm3450 = vmand %vm3378, %vm3414
        %vm3451 = vmand %vm3379, %vm3415
        %vm3452 = vmand %vm3380, %vm3416
        %vm3453 = vmand %vm3381, %vm3417
        %v3454 = vsel %vm3418, 1, 0
        %v3455 = vsel %vm3419, 1, 0
        %v3456 = vsel %vm3420, 1, 0
        %v3457 = vsel %vm3421, 1, 0
        %v3458 = vsel %vm3422, 1, 0
        %v3459 = vsel %vm3423, 1, 0
        %v3460 = vsel %vm3424, 1, 0
        %v3461 = vsel %vm3425, 1, 0
        %v3462 = vsel %vm3426, 1, 0
        %v3463 = vsel %vm3427, 1, 0
        %v3464 = vsel %vm3428, 1, 0
        %v3465 = vsel %vm3429, 1, 0
        %v3466 = vsel %vm3430, 1, 0
        %v3467 = vsel %vm3431, 1, 0
        %v3468 = vsel %vm3432, 1, 0
        %v3469 = vsel %vm3433, 1, 0
        %v3470 = vsel %vm3434, 1, 0
        %v3471 = vsel %vm3435, 1, 0
        %v3472 = vsel %vm3436, 1, 0
        %v3473 = vsel %vm3437, 1, 0
        %v3474 = vsel %vm3438, 1, 0
        %v3475 = vsel %vm3439, 1, 0
        %v3476 = vsel %vm3440, 1, 0
        %v3477 = vsel %vm3441, 1, 0
        %v3478 = vsel %vm3442, 1, 0
        %v3479 = vsel %vm3443, 1, 0
        %v3480 = vsel %vm3444, 1, 0
        %v3481 = vsel %vm3445, 1, 0
        %v3482 = vsel %vm3446, 1, 0
        %v3483 = vsel %vm3447, 1, 0
        %v3484 = vsel %vm3448, 1, 0
        %v3485 = vsel %vm3449, 1, 0
        %v3486 = vsel %vm3450, 1, 0
        %v3487 = vsel %vm3451, 1, 0
        %v3488 = vsel %vm3452, 1, 0
        %v3489 = vsel %vm3453, 1, 0
        %v3490 = vcvt.s32.f32 %v3454
        %v3491 = vcvt.s32.f32 %v3455
        %v3492 = vcvt.s32.f32 %v3456
        %v3493 = vcvt.s32.f32 %v3457
        %v3494 = vcvt.s32.f32 %v3458
        %v3495 = vcvt.s32.f32 %v3459
        %v3496 = vcvt.s32.f32 %v3460
        %v3497 = vcvt.s32.f32 %v3461
        %v3498 = vcvt.s32.f32 %v3462
        %v3499 = vcvt.s32.f32 %v3463
        %v3500 = vcvt.s32.f32 %v3464
        %v3501 = vcvt.s32.f32 %v3465
        %v3502 = vcvt.s32.f32 %v3466
        %v3503 = vcvt.s32.f32 %v3467
        %v3504 = vcvt.s32.f32 %v3468
        %v3505 = vcvt.s32.f32 %v3469
        %v3506 = vcvt.s32.f32 %v3470
        %v3507 = vcvt.s32.f32 %v3471
        %v3508 = vcvt.s32.f32 %v3472
        %v3509 = vcvt.s32.f32 %v3473
        %v3510 = vcvt.s32.f32 %v3474
        %v3511 = vcvt.s32.f32 %v3475
        %v3512 = vcvt.s32.f32 %v3476
        %v3513 = vcvt.s32.f32 %v3477
        %v3514 = vcvt.s32.f32 %v3478
        %v3515 = vcvt.s32.f32 %v3479
        %v3516 = vcvt.s32.f32 %v3480
        %v3517 = vcvt.s32.f32 %v3481
        %v3518 = vcvt.s32.f32 %v3482
        %v3519 = vcvt.s32.f32 %v3483
        %v3520 = vcvt.s32.f32 %v3484
        %v3521 = vcvt.s32.f32 %v3485
        %v3522 = vcvt.s32.f32 %v3486
        %v3523 = vcvt.s32.f32 %v3487
        %v3524 = vcvt.s32.f32 %v3488
        %v3525 = vcvt.s32.f32 %v3489
        %v3526 = vmul.f32 %v3020, %v3490
        %v3527 = vmul.f32 %v3021, %v3491
        %v3528 = vmul.f32 %v3022, %v3492
        %v3529 = vmul.f32 %v3023, %v3493
        %v3530 = vmul.f32 %v3024, %v3494
        %v3531 = vmul.f32 %v3025, %v3495
        %v3532 = vmul.f32 %v3026, %v3496
        %v3533 = vmul.f32 %v3027, %v3497
        %v3534 = vmul.f32 %v3028, %v3498
        %v3535 = vmul.f32 %v3029, %v3499
        %v3536 = vmul.f32 %v3030, %v3500
        %v3537 = vmul.f32 %v3031, %v3501
        %v3538 = vmul.f32 %v3032, %v3502
        %v3539 = vmul.f32 %v3033, %v3503
        %v3540 = vmul.f32 %v3034, %v3504
        %v3541 = vmul.f32 %v3035, %v3505
        %v3542 = vmul.f32 %v3036, %v3506
        %v3543 = vmul.f32 %v3037, %v3507
        %v3544 = vmul.f32 %v3038, %v3508
        %v3545 = vmul.f32 %v3039, %v3509
        %v3546 = vmul.f32 %v3040, %v3510
        %v3547 = vmul.f32 %v3041, %v3511
        %v3548 = vmul.f32 %v3042, %v3512
        %v3549 = vmul.f32 %v3043, %v3513
        %v3550 = vmul.f32 %v3044, %v3514
        %v3551 = vmul.f32 %v3045, %v3515
        %v3552 = vmul.f32 %v3046, %v3516
        %v3553 = vmul.f32 %v3047, %v3517
        %v3554 = vmul.f32 %v3048, %v3518
        %v3555 = vmul.f32 %v3049, %v3519
        %v3556 = vmul.f32 %v3050, %v3520
        %v3557 = vmul.f32 %v3051, %v3521
        %v3558 = vmul.f32 %v3052, %v3522
        %v3559 = vmul.f32 %v3053, %v3523
        %v3560 = vmul.f32 %v3054, %v3524
        %v3561 = vmul.f32 %v3055, %v3525
        %v3562 = vadd.f32 %v3526, %v3527
        %v3563 = vadd.f32 %v3562, %v3528
        %v3564 = vadd.f32 %v3563, %v3529
        %v3565 = vadd.f32 %v3564, %v3530
        %v3566 = vadd.f32 %v3565, %v3531
        %v3567 = vadd.f32 %v3566, %v3532
        %v3568 = vadd.f32 %v3567, %v3533
        %v3569 = vadd.f32 %v3568, %v3534
        %v3570 = vadd.f32 %v3569, %v3535
        %v3571 = vadd.f32 %v3570, %v3536
        %v3572 = vadd.f32 %v3571, %v3537
        %v3573 = vadd.f32 %v3572, %v3538
        %v3574 = vadd.f32 %v3573, %v3539
        %v3575 = vadd.f32 %v3574, %v3540
        %v3576 = vadd.f32 %v3575, %v3541
        %v3577 = vadd.f32 %v3576, %v3542
        %v3578 = vadd.f32 %v3577, %v3543
        %v3579 = vadd.f32 %v3578, %v3544
        %v3580 = vadd.f32 %v3579, %v3545
        %v3581 = vadd.f32 %v3580, %v3546
        %v3582 = vadd.f32 %v3581, %v3547
        %v3583 = vadd.f32 %v3582, %v3548
        %v3584 = vadd.f32 %v3583, %v3549
        %v3585 = vadd.f32 %v3584, %v3550
        %v3586 = vadd.f32 %v3585, %v3551
        %v3587 = vadd.f32 %v3586, %v3552
        %v3588 = vadd.f32 %v3587, %v3553
        %v3589 = vadd.f32 %v3588, %v3554
        %v3590 = vadd.f32 %v3589, %v3555
        %v3591 = vadd.f32 %v3590, %v3556
        %v3592 = vadd.f32 %v3591, %v3557
        %v3593 = vadd.f32 %v3592, %v3558
        %v3594 = vadd.f32 %v3593, %v3559
        %v3595 = vadd.f32 %v3594, %v3560
        %v3596 = vadd.f32 %v3595, %v3561
        %v3597 = vrot.slane %v3596, 4
        %v3598 = vadd.f32 %v3596, %v3597
        %v3599 = vrot.slane %v3598, 2
        %v3600 = vadd.f32 %v3598, %v3599
        %v3601 = vrot.slane %v3600, 1
        %v3602 = vadd.f32 %v3600, %v3601
        %3603 = vst [vmem:[%s190] sm:$0x1] %v3602
        %v3604 = vmul.f32 %v3526, %v3020
        %v3605 = vmul.f32 %v3527, %v3021
        %v3606 = vmul.f32 %v3528, %v3022
        %v3607 = vmul.f32 %v3529, %v3023
        %v3608 = vmul.f32 %v3530, %v3024
        %v3609 = vmul.f32 %v3531, %v3025
        %v3610 = vmul.f32 %v3532, %v3026
        %v3611 = vmul.f32 %v3533, %v3027
        %v3612 = vmul.f32 %v3534, %v3028
        %v3613 = vmul.f32 %v3535, %v3029
        %v3614 = vmul.f32 %v3536, %v3030
        %v3615 = vmul.f32 %v3537, %v3031
        %v3616 = vmul.f32 %v3538, %v3032
        %v3617 = vmul.f32 %v3539, %v3033
        %v3618 = vmul.f32 %v3540, %v3034
        %v3619 = vmul.f32 %v3541, %v3035
        %v3620 = vmul.f32 %v3542, %v3036
        %v3621 = vmul.f32 %v3543, %v3037
        %v3622 = vmul.f32 %v3544, %v3038
        %v3623 = vmul.f32 %v3545, %v3039
        %v3624 = vmul.f32 %v3546, %v3040
        %v3625 = vmul.f32 %v3547, %v3041
        %v3626 = vmul.f32 %v3548, %v3042
        %v3627 = vmul.f32 %v3549, %v3043
        %v3628 = vmul.f32 %v3550, %v3044
        %v3629 = vmul.f32 %v3551, %v3045
        %v3630 = vmul.f32 %v3552, %v3046
        %v3631 = vmul.f32 %v3553, %v3047
        %v3632 = vmul.f32 %v3554, %v3048
        %v3633 = vmul.f32 %v3555, %v3049
        %v3634 = vmul.f32 %v3556, %v3050
        %v3635 = vmul.f32 %v3557, %v3051
        %v3636 = vmul.f32 %v3558, %v3052
        %v3637 = vmul.f32 %v3559, %v3053
        %v3638 = vmul.f32 %v3560, %v3054
        %v3639 = vmul.f32 %v3561, %v3055
        %v3640 = vadd.f32 %v3604, %v3605
        %v3641 = vadd.f32 %v3640, %v3606
        %v3642 = vadd.f32 %v3641, %v3607
        %v3643 = vadd.f32 %v3642, %v3608
        %v3644 = vadd.f32 %v3643, %v3609
        %v3645 = vadd.f32 %v3644, %v3610
        %v3646 = vadd.f32 %v3645, %v3611
        %v3647 = vadd.f32 %v3646, %v3612
        %v3648 = vadd.f32 %v3647, %v3613
        %v3649 = vadd.f32 %v3648, %v3614
        %v3650 = vadd.f32 %v3649, %v3615
        %v3651 = vadd.f32 %v3650, %v3616
        %v3652 = vadd.f32 %v3651, %v3617
        %v3653 = vadd.f32 %v3652, %v3618
        %v3654 = vadd.f32 %v3653, %v3619
        %v3655 = vadd.f32 %v3654, %v3620
        %v3656 = vadd.f32 %v3655, %v3621
        %v3657 = vadd.f32 %v3656, %v3622
        %v3658 = vadd.f32 %v3657, %v3623
        %v3659 = vadd.f32 %v3658, %v3624
        %v3660 = vadd.f32 %v3659, %v3625
        %v3661 = vadd.f32 %v3660, %v3626
        %v3662 = vadd.f32 %v3661, %v3627
        %v3663 = vadd.f32 %v3662, %v3628
        %v3664 = vadd.f32 %v3663, %v3629
        %v3665 = vadd.f32 %v3664, %v3630
        %v3666 = vadd.f32 %v3665, %v3631
        %v3667 = vadd.f32 %v3666, %v3632
        %v3668 = vadd.f32 %v3667, %v3633
        %v3669 = vadd.f32 %v3668, %v3634
        %v3670 = vadd.f32 %v3669, %v3635
        %v3671 = vadd.f32 %v3670, %v3636
        %v3672 = vadd.f32 %v3671, %v3637
        %v3673 = vadd.f32 %v3672, %v3638
        %v3674 = vadd.f32 %v3673, %v3639
        %v3675 = vrot.slane %v3674, 4
        %v3676 = vadd.f32 %v3674, %v3675
        %v3677 = vrot.slane %v3676, 2
        %v3678 = vadd.f32 %v3676, %v3677
        %v3679 = vrot.slane %v3678, 1
        %v3680 = vadd.f32 %v3678, %v3679
        %3681 = vst [vmem:[%s190 + $0x1] sm:$0x1] %v3680
        %v3682 = vpack.c.bf16 %v3021, %v3020
        %v3683 = vpack.c.bf16 %v3023, %v3022
        %v3684 = vpack.c.bf16 %v3025, %v3024
        %v3685 = vpack.c.bf16 %v3027, %v3026
        %v3686 = vpack.c.bf16 %v3029, %v3028
        %v3687 = vpack.c.bf16 %v3031, %v3030
        %v3688 = vpack.c.bf16 %v3033, %v3032
        %v3689 = vpack.c.bf16 %v3035, %v3034
        %v3690 = vpack.c.bf16 %v3037, %v3036
        %v3691 = vpack.c.bf16 %v3039, %v3038
        %v3692 = vpack.c.bf16 %v3041, %v3040
        %v3693 = vpack.c.bf16 %v3043, %v3042
        %v3694 = vpack.c.bf16 %v3045, %v3044
        %v3695 = vpack.c.bf16 %v3047, %v3046
        %v3696 = vpack.c.bf16 %v3049, %v3048
        %v3697 = vpack.c.bf16 %v3051, %v3050
        %v3698 = vpack.c.bf16 %v3053, %v3052
        %v3699 = vpack.c.bf16 %v3055, %v3054
        %v3718 = vunpack.c.l.b16 %v3682
        %v3719 = vunpack.c.h.b16 %v3682
        %v3720 = vunpack.c.l.b16 %v3683
        %v3721 = vunpack.c.h.b16 %v3683
        %v3722 = vunpack.c.l.b16 %v3684
        %v3723 = vunpack.c.h.b16 %v3684
        %v3724 = vunpack.c.l.b16 %v3685
        %v3725 = vunpack.c.h.b16 %v3685
        %v3726 = vunpack.c.l.b16 %v3686
        %v3727 = vunpack.c.h.b16 %v3686
        %v3728 = vunpack.c.l.b16 %v3687
        %v3729 = vunpack.c.h.b16 %v3687
        %v3730 = vunpack.c.l.b16 %v3688
        %v3731 = vunpack.c.h.b16 %v3688
        %v3732 = vunpack.c.l.b16 %v3689
        %v3733 = vunpack.c.h.b16 %v3689
        %v3734 = vunpack.c.l.b16 %v3690
        %v3735 = vunpack.c.h.b16 %v3690
        %v3736 = vunpack.c.l.b16 %v3691
        %v3737 = vunpack.c.h.b16 %v3691
        %v3738 = vunpack.c.l.b16 %v3692
        %v3739 = vunpack.c.h.b16 %v3692
        %v3740 = vunpack.c.l.b16 %v3693
        %v3741 = vunpack.c.h.b16 %v3693
        %v3742 = vunpack.c.l.b16 %v3694
        %v3743 = vunpack.c.h.b16 %v3694
        %v3744 = vunpack.c.l.b16 %v3695
        %v3745 = vunpack.c.h.b16 %v3695
        %v3746 = vunpack.c.l.b16 %v3696
        %v3747 = vunpack.c.h.b16 %v3696
        %v3748 = vunpack.c.l.b16 %v3697
        %v3749 = vunpack.c.h.b16 %v3697
        %v3750 = vunpack.c.l.b16 %v3698
        %v3751 = vunpack.c.h.b16 %v3698
        %v3752 = vunpack.c.l.b16 %v3699
        %v3753 = vunpack.c.h.b16 %v3699
        %v3754 = vpack.c.b16 %v3718, %v3718
        %v3755 = vpack.c.b16 %v3719, %v3719
        %v3756 = vpack.c.b16 %v3720, %v3720
        %v3757 = vpack.c.b16 %v3721, %v3721
        %v3758 = vpack.c.b16 %v3722, %v3722
        %v3759 = vpack.c.b16 %v3723, %v3723
        %v3760 = vpack.c.b16 %v3724, %v3724
        %v3761 = vpack.c.b16 %v3725, %v3725
        %v3762 = vpack.c.b16 %v3726, %v3726
        %v3763 = vpack.c.b16 %v3727, %v3727
        %v3764 = vpack.c.b16 %v3728, %v3728
        %v3765 = vpack.c.b16 %v3729, %v3729
        %v3766 = vpack.c.b16 %v3730, %v3730
        %v3767 = vpack.c.b16 %v3731, %v3731
        %v3768 = vpack.c.b16 %v3732, %v3732
        %v3769 = vpack.c.b16 %v3733, %v3733
        %v3770 = vpack.c.b16 %v3734, %v3734
        %v3771 = vpack.c.b16 %v3735, %v3735
        %v3772 = vpack.c.b16 %v3736, %v3736
        %v3773 = vpack.c.b16 %v3737, %v3737
        %v3774 = vpack.c.b16 %v3738, %v3738
        %v3775 = vpack.c.b16 %v3739, %v3739
        %v3776 = vpack.c.b16 %v3740, %v3740
        %v3777 = vpack.c.b16 %v3741, %v3741
        %v3778 = vpack.c.b16 %v3742, %v3742
        %v3779 = vpack.c.b16 %v3743, %v3743
        %v3780 = vpack.c.b16 %v3744, %v3744
        %v3781 = vpack.c.b16 %v3745, %v3745
        %v3782 = vpack.c.b16 %v3746, %v3746
        %v3783 = vpack.c.b16 %v3747, %v3747
        %v3784 = vpack.c.b16 %v3748, %v3748
        %v3785 = vpack.c.b16 %v3749, %v3749
        %v3786 = vpack.c.b16 %v3750, %v3750
        %v3787 = vpack.c.b16 %v3751, %v3751
        %v3788 = vpack.c.b16 %v3752, %v3752
        %v3789 = vpack.c.b16 %v3753, %v3753
        %3826 = vst [vmem:[%s183] sm:$0xf] %v3754
        %3827 = vst [vmem:[%s183 + $0x4] sm:$0xf] %v3755
        %3828 = vst [vmem:[%s183 + $0x8] sm:$0xf] %v3756
        %3829 = vst [vmem:[%s183 + $0xc] sm:$0xf] %v3757
        %3830 = vst [vmem:[%s183 + $0x10] sm:$0xf] %v3758
        %3831 = vst [vmem:[%s183 + $0x14] sm:$0xf] %v3759
        %3832 = vst [vmem:[%s183 + $0x18] sm:$0xf] %v3760
        %3833 = vst [vmem:[%s183 + $0x1c] sm:$0xf] %v3761
        %3834 = vst [vmem:[%s183 + $0x20] sm:$0xf] %v3762
        %3835 = vst [vmem:[%s183 + $0x24] sm:$0xf] %v3763
        %3836 = vst [vmem:[%s183 + $0x28] sm:$0xf] %v3764
        %3837 = vst [vmem:[%s183 + $0x2c] sm:$0xf] %v3765
        %3838 = vst [vmem:[%s183 + $0x30] sm:$0xf] %v3766
        %3839 = vst [vmem:[%s183 + $0x34] sm:$0xf] %v3767
        %3840 = vst [vmem:[%s183 + $0x38] sm:$0xf] %v3768
        %3841 = vst [vmem:[%s183 + $0x3c] sm:$0xf] %v3769
        %3842 = vst [vmem:[%s183 + $0x40] sm:$0xf] %v3770
        %3843 = vst [vmem:[%s183 + $0x44] sm:$0xf] %v3771
        %3844 = vst [vmem:[%s183 + $0x48] sm:$0xf] %v3772
        %3845 = vst [vmem:[%s183 + $0x4c] sm:$0xf] %v3773
        %3846 = vst [vmem:[%s183 + $0x50] sm:$0xf] %v3774
        %3847 = vst [vmem:[%s183 + $0x54] sm:$0xf] %v3775
        %3848 = vst [vmem:[%s183 + $0x58] sm:$0xf] %v3776
        %3849 = vst [vmem:[%s183 + $0x5c] sm:$0xf] %v3777
        %3850 = vst [vmem:[%s183 + $0x60] sm:$0xf] %v3778
        %3851 = vst [vmem:[%s183 + $0x64] sm:$0xf] %v3779
        %3852 = vst [vmem:[%s183 + $0x68] sm:$0xf] %v3780
        %3853 = vst [vmem:[%s183 + $0x6c] sm:$0xf] %v3781
        %3854 = vst [vmem:[%s183 + $0x70] sm:$0xf] %v3782
        %3855 = vst [vmem:[%s183 + $0x74] sm:$0xf] %v3783
        %3856 = vst [vmem:[%s183 + $0x78] sm:$0xf] %v3784
        %3857 = vst [vmem:[%s183 + $0x7c] sm:$0xf] %v3785
        %3858 = vst [vmem:[%s183 + $0x80] sm:$0xf] %v3786
        %3859 = vst [vmem:[%s183 + $0x84] sm:$0xf] %v3787
        %3860 = vst [vmem:[%s183 + $0x88] sm:$0xf] %v3788
        %3861 = vst [vmem:[%s183 + $0x8c] sm:$0xf] %v3789
        %s3862 = sand.u32 %s90, 1
        %s3863 = scalar_lea.sflag [#allocation3], %s3862
        %s3864 = sand.u32 %s90, 1
        %s3865 = smul.addr %s3864, 144
        %s3866 = scalar_lea.vmem [#allocation2], %s3865
        %s3867 = sand.u32 %s118, 1
        %s3868 = scalar_lea.sflag [#allocation5], %s3867
        %s3869 = sand.u32 %s118, 1
        %s3870 = smul.addr %s3869, 2
        %s3871 = scalar_lea.vmem [#allocation4], %s3870
        // Predicated region
        $region29: #{tpu_custom_call.1} parent=27 // pred_check
          %p3872 = pneg %p100
        $region30: #{tpu_custom_call.1} parent=27 // pred_check_branch
          %3874 = sbr.rel (%p3872) target = $region32
        $region31: #{tpu_custom_call.1} parent=27 // pred_region
          %s3875 = smul.u32 36, %s26
          %s3877 = ssub.s32 2304, 2304
          %3878 = vsyncadd %s3863, %s3877
          %s3879 = smul.addr %s25, 36
          %s3880 = sadd.s32 %s3875, %s3879
          %s3881 = smul.addr %s3880, 64
          %s3882 = scalar_lea.hbm %s2, %s3881
          %s3883 = sshll.u32 %s3866, 4
          %s3884 = int_to_ptr.vmem [resolvable:$true] %s3883
          %3889 = dma.vmem_to_hbm [thread:$0]  %s3884, 2304, %s3882, %s3863, 64, 64, 4
        $region32: #{tpu_custom_call.1} parent=27 // pred_fallthru
          _
        // Predicated region
        $region33: #{tpu_custom_call.1} parent=27 // pred_check
          %p3890 = pneg %p128
        $region34: #{tpu_custom_call.1} parent=27 // pred_check_branch
          %3892 = sbr.rel (%p3890) target = $region36
        $region35: #{tpu_custom_call.1} parent=27 // pred_region
          %s3893 = sadd.s32 %s25, %s26
          %s3895 = ssub.s32 32, 32
          %3896 = vsyncadd %s3868, %s3895
          %s3897 = smul.addr %s3893, 32
          %s3898 = scalar_lea.hbm %s3, %s3897
          %s3900 = sshll.u32 %s3871, 4
          %s3901 = int_to_ptr.vmem [resolvable:$true] %s3900
          %3903 = dma.vmem_to_hbm [thread:$0]  %s3901, 32, %s3898, %s3868
        $region36: #{tpu_custom_call.1} parent=27 // pred_fallthru
          _
      $region28: #{tpu_custom_call.1} parent=5 // pred_fallthru
        _
      %p3904 = scmp.le.s32.totalorder 2, %s16
      // Predicated region
      $region37: #{tpu_custom_call.1} parent=5 // pred_check
        %p3905 = pneg %p3904
      $region38: #{tpu_custom_call.1} parent=5 // pred_check_branch
        %3907 = sbr.rel (%p3905) target = $region40
      $region39: #{tpu_custom_call.1} parent=5 // pred_region
        %s3908 = ssub.s32 %s16, 2
        // Predicated region
        $region41: #{tpu_custom_call.1} parent=39 // pred_check
          %p3909 = pneg %p106
        $region42: #{tpu_custom_call.1} parent=39 // pred_check_branch
          %3911 = sbr.rel (%p3909) target = $region44
        $region43: #{tpu_custom_call.1} parent=39 // pred_region
          %s3912 = sand.u32 %s91, 1
          %s3913 = scalar_lea.sflag [#allocation3], %s3912
          %s3914 = sand.u32 %s91, 1
          %s3915 = smul.addr %s3914, 144
          %s3916 = scalar_lea.vmem [#allocation2], %s3915
          %3917 = dma.done %s3913, 2304
        $region44: #{tpu_custom_call.1} parent=39 // pred_fallthru
          _
        // Predicated region
        $region45: #{tpu_custom_call.1} parent=39 // pred_check
          %p3918 = pneg %p134
        $region46: #{tpu_custom_call.1} parent=39 // pred_check_branch
          %3920 = sbr.rel (%p3918) target = $region48
        $region47: #{tpu_custom_call.1} parent=39 // pred_region
          %s3921 = sand.u32 %s119, 1
          %s3922 = scalar_lea.sflag [#allocation5], %s3921
          %s3923 = sand.u32 %s119, 1
          %s3924 = smul.addr %s3923, 2
          %s3925 = scalar_lea.vmem [#allocation4], %s3924
          %3926 = dma.done %s3922, 32
        $region48: #{tpu_custom_call.1} parent=39 // pred_fallthru
          _
      $region40: #{tpu_custom_call.1} parent=5 // pred_fallthru
        _
    $region6: #{tpu_custom_call.1} parent=1 // loop_footer
      %s20 = sadd.s32 1, %s16
    $region7: #{tpu_custom_call.1} parent=1 // loop_footer_branch
      %15 = sbr.rel target = $region3
    $region8: #{tpu_custom_call.1} parent=1 // loop_exit
      _
    %3927 = vsyncpa [#allocation3], 1
    %s3928 = scalar_lea.sflag [#allocation3], 1
    %3929 = vsyncpa %s3928, 1
    %3930 = vsyncpa [#allocation5], 1
    %s3931 = scalar_lea.sflag [#allocation5], 1
    %3932 = vsyncpa %s3931, 1

</llo_original>
